<compile_context>
chip_gen: v7x
topology: tpu7x:2x2x1
jax: 0.10.0
libtpu: 0.0.40
codegen_flags: <defaults>
</compile_context>

<pallas_src>
import jax
import jax.numpy as jnp
import numpy as np
from jax.experimental import pallas as pl
from jax.experimental.pallas import tpu as pltpu

S_VALS = (-3.0, -1.0, 1.0, 3.0)   # constellation
K = 4                             # constellation size
NUM_LAYERS = 5


def _round_up(x, m):
    return ((x + m - 1) // m) * m


def _nr_reciprocal(x):
    """EUP vrcp + one Newton-Raphson step: ~f32 accuracy without the VALU divide chain."""
    r = pl.reciprocal(x, approx=True)
    return r * (2.0 - x * r)


def dbp5_kernel(damp_ref, noise_ref, y_ref, H_ref, P_ref, P_out_ref, gamma_out_ref):
    H = H_ref[...]            # (M, N, TB)   lanes = batch
    y = y_ref[...]            # (M, 1, TB)
    nv = noise_ref[0]         # scalar (SMEM)

    H2 = H * H                # hoisted; reused every layer

    # unroll constellation axis: 4 planes of (M, N, TB)
    P0 = P_ref[0]
    P1 = P_ref[1]
    P2 = P_ref[2]
    P3 = P_ref[3]

    sA = sB = None            # last-layer per-antenna sums -> gamma

    for layer in range(NUM_LAYERS):           # 5 DBP layers, statically unrolled
        damp = damp_ref[layer]                # scalar from SMEM
        one_m = 1.0 - damp

        # Factored constellation sums (exact)
        Ps = (P2 - P1) + 3.0 * (P3 - P0)                      # sum_k P_k * s_k
        hps = H * Ps
        mean_z = jnp.sum(hps, axis=1, keepdims=True) - hps    # (M, N, TB), sublane reduce

        Pss = (P1 + P2) + 9.0 * (P0 + P3)                     # sum_k P_k * s_k^2
        vt = H2 * (Pss - Ps * Ps)
        var_z = jnp.sum(vt, axis=1, keepdims=True) - vt + nv  # (M, N, TB)

        inv = _nr_reciprocal(var_z)                           # 1 / var_z  (EUP + 1 NR step)

        # beta_0 == 0 exactly; beta_1 = A + Bv, beta_2 = 2A + Bv, beta_3 = 3A
        A = 2.0 * (H * (y - mean_z)) * inv                    # = 4*H*(y-mean_z)/(2*var_z)
        Bv = 4.0 * H2 * inv                                   # = 8*H^2     /(2*var_z)

        sA = jnp.sum(A, axis=0, keepdims=True)                # (1, N, TB)
        sB = jnp.sum(Bv, axis=0, keepdims=True)

        # alpha_k = gamma_k - beta_k, factored through the same A/Bv basis
        aA = sA - A
        aB = sB - Bv
        a1 = aA + aB
        a2 = a1 + aA
        a3 = 3.0 * aA

        # softmax over the (unrolled) constellation axis, including the implicit zero plane
        amax = jnp.maximum(jnp.maximum(a1, a2), jnp.maximum(a3, 0.0))
        e0 = jnp.exp(0.0 - amax)
        e1 = jnp.exp(a1 - amax)
        e2 = jnp.exp(a2 - amax)
        e3 = jnp.exp(a3 - amax)

        scale = one_m * _nr_reciprocal(e0 + e1 + e2 + e3)     # (1-damp)/denom, computed once

        # damped update (detach() is a no-op for the forward pass)
        P0 = e0 * scale + damp * P0
        P1 = e1 * scale + damp * P1
        P2 = e2 * scale + damp * P2
        P3 = e3 * scale + damp * P3

    P_out_ref[0] = P0
    P_out_ref[1] = P1
    P_out_ref[2] = P2
    P_out_ref[3] = P3

    # gamma of the final layer: gamma_0 == 0; gamma_1 = sA+sB, gamma_2 = 2sA+sB, gamma_3 = 3sA
    g1 = sA + sB
    gamma_out_ref[0] = jnp.zeros_like(g1)
    gamma_out_ref[1] = g1
    gamma_out_ref[2] = g1 + sA
    gamma_out_ref[3] = 3.0 * sA


def _pick_tiles(B, M, N, tb_max):
    """VMEM-aware batch-tile (lane) size + compiler VMEM limit."""
    try:
        vmem_cap = int(pltpu.get_tpu_info().vmem_capacity_bytes)
    except Exception:
        vmem_cap = 64 * 1024 * 1024            # conservative (v7x per-core VMEM)
    vmem_limit = min((vmem_cap * 3) // 4, 96 * 1024 * 1024)

    # per-lane f32 footprint: double-buffered I/O blocks + ~16 live (M,N) temporaries
    # (compiler spill scratch) in the unrolled 5-layer body.
    per_lane = 4 * (2 * (9 * M * N + M + 8 * N) + 16 * M * N)
    tb_fit = max(128, (((vmem_limit * 2) // 3) // per_lane) // 128 * 128)

    b128 = _round_up(B, 128)
    tb = min(tb_max, tb_fit, b128)
    if b128 >= 256:
        # keep >= 2 grid steps: feeds both TensorCores on v7x, enables pipelining everywhere
        tb = min(tb, max(128, ((b128 // 2) // 128) * 128))
    tb = max(128, tb)
    return tb, vmem_limit


def dnn_dbp_5_pallas(y, H, P, noise_var, damps, *, tb_max=2048):
    """y: (B,M,1), H: (B,M,N), P: (B,M,N,4) float32. Returns (P, gamma) in PyTorch layout.

    NOTE: for large B in a hot loop, prefer keeping data in the lane-dense
    (.., B) layout across calls; the transposes below are full HBM repacks.
    """
    B, M, N = H.shape

    TB, vmem_limit = _pick_tiles(B, M, N, tb_max)
    B_pad = _round_up(B, TB)
    pad = B_pad - B

    # Repack so B is the last (lane) axis. One repack each way; kernel stays lane-dense.
    Hl = jnp.transpose(H.astype(jnp.float32), (1, 2, 0))          # (M, N, B)
    yl = jnp.transpose(y.astype(jnp.float32), (1, 2, 0))          # (M, 1, B)
    Pl = jnp.transpose(P.astype(jnp.float32), (3, 1, 2, 0))       # (K, M, N, B)
    if pad:
        # Padded lanes get H=1, P=uniform(0.25): var_z stays positive even if noise_var==0,
        # so no inf/NaN is ever produced in lanes that get sliced off below.
        Hl = jnp.pad(Hl, ((0, 0), (0, 0), (0, pad)), constant_values=1.0)
        yl = jnp.pad(yl, ((0, 0), (0, 0), (0, pad)))
        Pl = jnp.pad(Pl, ((0, 0), (0, 0), (0, 0), (0, pad)), constant_values=0.25)

    noise_arr = jnp.asarray(noise_var, jnp.float32).reshape((1,))
    damp_arr = jnp.asarray(damps, jnp.float32).reshape((NUM_LAYERS,))

    num_blocks = B_pad // TB

    grid_spec = pltpu.PrefetchScalarGridSpec(
        num_scalar_prefetch=0,
        grid=(num_blocks,),
        in_specs=[
            pl.BlockSpec(memory_space=pltpu.MemorySpace.SMEM),            # damps (5,)
            pl.BlockSpec(memory_space=pltpu.MemorySpace.SMEM),            # noise_var (1,)
            pl.BlockSpec((M, 1, TB), lambda b: (0, 0, b)),                # y
            pl.BlockSpec((M, N, TB), lambda b: (0, 0, b)),                # H
            pl.BlockSpec((K, M, N, TB), lambda b: (0, 0, 0, b)),          # P
        ],
        out_specs=[
            pl.BlockSpec((K, M, N, TB), lambda b: (0, 0, 0, b)),          # P_out
            pl.BlockSpec((K, 1, N, TB), lambda b: (0, 0, 0, b)),          # gamma_out
        ],
    )

    P_out, gamma_out = pl.pallas_call(
        dbp5_kernel,
        out_shape=(
            jax.ShapeDtypeStruct((K, M, N, B_pad), jnp.float32),
            jax.ShapeDtypeStruct((K, 1, N, B_pad), jnp.float32),
        ),
        grid_spec=grid_spec,
        compiler_params=pltpu.CompilerParams(
            dimension_semantics=("parallel",),
            vmem_limit_bytes=int(vmem_limit),
        ),
    )(damp_arr, noise_arr, yl, Hl, Pl)

    # slice off lane padding, repack to PyTorch layout
    P_out = P_out[..., :B]                                # (K, M, N, B)
    gamma_out = gamma_out[..., :B]                        # (K, 1, N, B)
    P_final = jnp.transpose(P_out, (3, 1, 2, 0))          # (B, M, N, K)
    gamma = jnp.transpose(gamma_out, (3, 1, 2, 0))        # (B, 1, N, K)
    return P_final, gamma


# ---------------- pure-JAX reference (mirrors the PyTorch forward) ----------------
def _dbp_layer_ref(y, H, P, noise_var, damp):
    s = jnp.array(S_VALS, jnp.float32)
    Ps = P @ s                                                      # (B, M, N)
    Pss = P @ (s * s)
    mean_z = jnp.sum(H * Ps, axis=2, keepdims=True) - H * Ps
    vt = H ** 2 * (Pss - Ps ** 2)
    var_z = jnp.sum(vt, axis=2, keepdims=True) - vt + noise_var
    beta = ((2.0 * H * (y - mean_z))[..., None] * (s - s[0])[None, None, None, :]
            - (H ** 2)[..., None] * (s ** 2 - s[0] ** 2)[None, None, None, :]) \
           / (2.0 * var_z[..., None])
    gamma = jnp.sum(beta, axis=1, keepdims=True)
    alpha = gamma - beta
    post = jax.nn.softmax(alpha, axis=3)
    P1 = (1.0 - damp) * post + damp * P
    return P1, gamma


def _dnn_dbp_5_ref(y, H, P, noise_var, damps):
    gamma = None
    for i in range(NUM_LAYERS):
        P, gamma = _dbp_layer_ref(y, H, P, noise_var, damps[i])
    return P, gamma


if __name__ == "__main__":
    B, M, N = 2, 8, 8
    key = jax.random.PRNGKey(0)
    k1, k2, k3 = jax.random.split(key, 3)

    H = jax.random.normal(k1, (B, M, N), dtype=jnp.float32)
    y = jax.random.normal(k2, (B, M, 1), dtype=jnp.float32)
    P0 = jax.nn.softmax(jax.random.normal(k3, (B, M, N, K), dtype=jnp.float32), axis=-1)
    noise_var = 0.1
    damps = np.full((NUM_LAYERS,), 0.5, dtype=np.float32)   # nn.Parameter init = 0.5 per layer

    P_out, gamma_out = dnn_dbp_5_pallas(y, H, P0, noise_var, damps)
    P_out = jax.block_until_ready(P_out)
    gamma_out = jax.block_until_ready(gamma_out)

    P_ref, gamma_ref = _dnn_dbp_5_ref(y, H, P0, noise_var, damps)
    np.testing.assert_allclose(np.asarray(P_out), np.asarray(P_ref), rtol=5e-4, atol=1e-5)
    np.testing.assert_allclose(np.asarray(gamma_out), np.asarray(gamma_ref), rtol=5e-4, atol=5e-4)

    print("KERNEL_OK")
</pallas_src>

<mosaic_0001>
module attributes {stable_mosaic.version = 11 : i64} {
  func.func @dbp5_kernel(%arg0: i32, %arg1: memref<5xf32, #tpu.memory_space<smem>>, %arg2: memref<1xf32, #tpu.memory_space<smem>>, %arg3: memref<8x1x128xf32, #tpu.memory_space<vmem>>, %arg4: memref<8x8x128xf32, #tpu.memory_space<vmem>>, %arg5: memref<4x8x8x128xf32, #tpu.memory_space<vmem>>, %arg6: memref<4x8x8x128xf32, #tpu.memory_space<vmem>>, %arg7: memref<4x1x8x128xf32, #tpu.memory_space<vmem>>) attributes {dimension_semantics = [#tpu.dimension_semantics<parallel>], iteration_bounds = array<i64: 1>, scalar_prefetch = 0 : i64, scratch_operands = 0 : i64, tpu.core_type = #tpu.core_type<tc>, window_params = [{transform_indices = @transform_0, window_bounds = array<i64: 5>}, {transform_indices = @transform_1, window_bounds = array<i64: 1>}, {transform_indices = @transform_2, window_bounds = array<i64: 8, 1, 128>}, {transform_indices = @transform_3, window_bounds = array<i64: 8, 8, 128>}, {transform_indices = @transform_4, window_bounds = array<i64: 4, 8, 8, 128>}, {transform_indices = @transform_5, window_bounds = array<i64: 4, 8, 8, 128>}, {transform_indices = @transform_6, window_bounds = array<i64: 4, 1, 8, 128>}]} {
    %c0 = arith.constant 0 : index
    %c0_0 = arith.constant 0 : index
    %c0_1 = arith.constant 0 : index
    %0 = vector.load %arg4[%c0, %c0_0, %c0_1] : memref<8x8x128xf32, #tpu.memory_space<vmem>>, vector<8x8x128xf32>
    %c0_2 = arith.constant 0 : index
    %c0_3 = arith.constant 0 : index
    %c0_4 = arith.constant 0 : index
    %1 = vector.load %arg3[%c0_2, %c0_3, %c0_4] : memref<8x1x128xf32, #tpu.memory_space<vmem>>, vector<8x1x128xf32>
    %c0_5 = arith.constant 0 : index
    %2 = memref.load %arg2[%c0_5] : memref<1xf32, #tpu.memory_space<smem>>
    %3 = arith.mulf %0, %0 : vector<8x8x128xf32>
    %c0_6 = arith.constant 0 : index
    %c0_7 = arith.constant 0 : index
    %c0_8 = arith.constant 0 : index
    %c0_9 = arith.constant 0 : index
    %4 = vector.load %arg5[%c0_6, %c0_7, %c0_8, %c0_9] : memref<4x8x8x128xf32, #tpu.memory_space<vmem>>, vector<1x8x8x128xf32>
    %5 = vector.shape_cast %4 : vector<1x8x8x128xf32> to vector<8x8x128xf32>
    %c1 = arith.constant 1 : index
    %c0_10 = arith.constant 0 : index
    %c0_11 = arith.constant 0 : index
    %c0_12 = arith.constant 0 : index
    %6 = vector.load %arg5[%c1, %c0_10, %c0_11, %c0_12] : memref<4x8x8x128xf32, #tpu.memory_space<vmem>>, vector<1x8x8x128xf32>
    %7 = vector.shape_cast %6 : vector<1x8x8x128xf32> to vector<8x8x128xf32>
    %c2 = arith.constant 2 : index
    %c0_13 = arith.constant 0 : index
    %c0_14 = arith.constant 0 : index
    %c0_15 = arith.constant 0 : index
    %8 = vector.load %arg5[%c2, %c0_13, %c0_14, %c0_15] : memref<4x8x8x128xf32, #tpu.memory_space<vmem>>, vector<1x8x8x128xf32>
    %9 = vector.shape_cast %8 : vector<1x8x8x128xf32> to vector<8x8x128xf32>
    %c3 = arith.constant 3 : index
    %c0_16 = arith.constant 0 : index
    %c0_17 = arith.constant 0 : index
    %c0_18 = arith.constant 0 : index
    %10 = vector.load %arg5[%c3, %c0_16, %c0_17, %c0_18] : memref<4x8x8x128xf32, #tpu.memory_space<vmem>>, vector<1x8x8x128xf32>
    %11 = vector.shape_cast %10 : vector<1x8x8x128xf32> to vector<8x8x128xf32>
    %c0_19 = arith.constant 0 : index
    %12 = memref.load %arg1[%c0_19] : memref<5xf32, #tpu.memory_space<smem>>
    %cst = arith.constant 1.000000e+00 : f32
    %13 = arith.subf %cst, %12 : f32
    %14 = arith.subf %9, %7 : vector<8x8x128xf32>
    %15 = arith.subf %11, %5 : vector<8x8x128xf32>
    %cst_20 = arith.constant 3.000000e+00 : f32
    %16 = vector.broadcast %cst_20 : f32 to vector<8x8x128xf32>
    %17 = arith.mulf %16, %15 : vector<8x8x128xf32>
    %18 = arith.addf %14, %17 : vector<8x8x128xf32>
    %19 = arith.mulf %0, %18 : vector<8x8x128xf32>
    %cst_21 = arith.constant dense<0.000000e+00> : vector<8x128xf32>
    %20 = vector.multi_reduction <add>, %19, %cst_21 [1] : vector<8x8x128xf32> to vector<8x128xf32>
    %21 = vector.shape_cast %20 : vector<8x128xf32> to vector<8x1x128xf32>
    %22 = vector.broadcast %21 : vector<8x1x128xf32> to vector<8x8x128xf32>
    %23 = arith.subf %22, %19 : vector<8x8x128xf32>
    %24 = arith.addf %7, %9 : vector<8x8x128xf32>
    %25 = arith.addf %5, %11 : vector<8x8x128xf32>
    %cst_22 = arith.constant 9.000000e+00 : f32
    %26 = vector.broadcast %cst_22 : f32 to vector<8x8x128xf32>
    %27 = arith.mulf %26, %25 : vector<8x8x128xf32>
    %28 = arith.addf %24, %27 : vector<8x8x128xf32>
    %29 = arith.mulf %18, %18 : vector<8x8x128xf32>
    %30 = arith.subf %28, %29 : vector<8x8x128xf32>
    %31 = arith.mulf %3, %30 : vector<8x8x128xf32>
    %cst_23 = arith.constant dense<0.000000e+00> : vector<8x128xf32>
    %32 = vector.multi_reduction <add>, %31, %cst_23 [1] : vector<8x8x128xf32> to vector<8x128xf32>
    %33 = vector.shape_cast %32 : vector<8x128xf32> to vector<8x1x128xf32>
    %34 = vector.broadcast %33 : vector<8x1x128xf32> to vector<8x8x128xf32>
    %35 = arith.subf %34, %31 : vector<8x8x128xf32>
    %36 = vector.broadcast %2 : f32 to vector<8x8x128xf32>
    %37 = arith.addf %35, %36 : vector<8x8x128xf32>
    %38 = tpu.reciprocal %37 {approx = true} : vector<8x8x128xf32> -> vector<8x8x128xf32>
    %39 = arith.mulf %37, %38 : vector<8x8x128xf32>
    %cst_24 = arith.constant 2.000000e+00 : f32
    %40 = vector.broadcast %cst_24 : f32 to vector<8x8x128xf32>
    %41 = arith.subf %40, %39 : vector<8x8x128xf32>
    %42 = arith.mulf %38, %41 : vector<8x8x128xf32>
    %43 = vector.broadcast %1 : vector<8x1x128xf32> to vector<8x8x128xf32>
    %44 = arith.subf %43, %23 : vector<8x8x128xf32>
    %45 = arith.mulf %0, %44 : vector<8x8x128xf32>
    %cst_25 = arith.constant 2.000000e+00 : f32
    %46 = vector.broadcast %cst_25 : f32 to vector<8x8x128xf32>
    %47 = arith.mulf %46, %45 : vector<8x8x128xf32>
    %48 = arith.mulf %47, %42 : vector<8x8x128xf32>
    %cst_26 = arith.constant 4.000000e+00 : f32
    %49 = vector.broadcast %cst_26 : f32 to vector<8x8x128xf32>
    %50 = arith.mulf %49, %3 : vector<8x8x128xf32>
    %51 = arith.mulf %50, %42 : vector<8x8x128xf32>
    %cst_27 = arith.constant dense<0.000000e+00> : vector<8x128xf32>
    %52 = vector.multi_reduction <add>, %48, %cst_27 [0] : vector<8x8x128xf32> to vector<8x128xf32>
    %53 = vector.shape_cast %52 : vector<8x128xf32> to vector<1x8x128xf32>
    %cst_28 = arith.constant dense<0.000000e+00> : vector<8x128xf32>
    %54 = vector.multi_reduction <add>, %51, %cst_28 [0] : vector<8x8x128xf32> to vector<8x128xf32>
    %55 = vector.shape_cast %54 : vector<8x128xf32> to vector<1x8x128xf32>
    %56 = vector.broadcast %53 : vector<1x8x128xf32> to vector<8x8x128xf32>
    %57 = arith.subf %56, %48 : vector<8x8x128xf32>
    %58 = vector.broadcast %55 : vector<1x8x128xf32> to vector<8x8x128xf32>
    %59 = arith.subf %58, %51 : vector<8x8x128xf32>
    %60 = arith.addf %57, %59 : vector<8x8x128xf32>
    %61 = arith.addf %60, %57 : vector<8x8x128xf32>
    %cst_29 = arith.constant 3.000000e+00 : f32
    %62 = vector.broadcast %cst_29 : f32 to vector<8x8x128xf32>
    %63 = arith.mulf %62, %57 : vector<8x8x128xf32>
    %64 = arith.maximumf %60, %61 : vector<8x8x128xf32>
    %cst_30 = arith.constant 0.000000e+00 : f32
    %65 = vector.broadcast %cst_30 : f32 to vector<8x8x128xf32>
    %66 = arith.maximumf %63, %65 : vector<8x8x128xf32>
    %67 = arith.maximumf %64, %66 : vector<8x8x128xf32>
    %cst_31 = arith.constant 0.000000e+00 : f32
    %68 = vector.broadcast %cst_31 : f32 to vector<8x8x128xf32>
    %69 = arith.subf %68, %67 : vector<8x8x128xf32>
    %70 = math.exp %69 : vector<8x8x128xf32>
    %71 = arith.subf %60, %67 : vector<8x8x128xf32>
    %72 = math.exp %71 : vector<8x8x128xf32>
    %73 = arith.subf %61, %67 : vector<8x8x128xf32>
    %74 = math.exp %73 : vector<8x8x128xf32>
    %75 = arith.subf %63, %67 : vector<8x8x128xf32>
    %76 = math.exp %75 : vector<8x8x128xf32>
    %77 = arith.addf %70, %72 : vector<8x8x128xf32>
    %78 = arith.addf %77, %74 : vector<8x8x128xf32>
    %79 = arith.addf %78, %76 : vector<8x8x128xf32>
    %80 = tpu.reciprocal %79 {approx = true} : vector<8x8x128xf32> -> vector<8x8x128xf32>
    %81 = arith.mulf %79, %80 : vector<8x8x128xf32>
    %cst_32 = arith.constant 2.000000e+00 : f32
    %82 = vector.broadcast %cst_32 : f32 to vector<8x8x128xf32>
    %83 = arith.subf %82, %81 : vector<8x8x128xf32>
    %84 = arith.mulf %80, %83 : vector<8x8x128xf32>
    %85 = vector.broadcast %13 : f32 to vector<8x8x128xf32>
    %86 = arith.mulf %85, %84 : vector<8x8x128xf32>
    %87 = arith.mulf %70, %86 : vector<8x8x128xf32>
    %88 = vector.broadcast %12 : f32 to vector<8x8x128xf32>
    %89 = arith.mulf %88, %5 : vector<8x8x128xf32>
    %90 = arith.addf %87, %89 : vector<8x8x128xf32>
    %91 = arith.mulf %72, %86 : vector<8x8x128xf32>
    %92 = vector.broadcast %12 : f32 to vector<8x8x128xf32>
    %93 = arith.mulf %92, %7 : vector<8x8x128xf32>
    %94 = arith.addf %91, %93 : vector<8x8x128xf32>
    %95 = arith.mulf %74, %86 : vector<8x8x128xf32>
    %96 = vector.broadcast %12 : f32 to vector<8x8x128xf32>
    %97 = arith.mulf %96, %9 : vector<8x8x128xf32>
    %98 = arith.addf %95, %97 : vector<8x8x128xf32>
    %99 = arith.mulf %76, %86 : vector<8x8x128xf32>
    %100 = vector.broadcast %12 : f32 to vector<8x8x128xf32>
    %101 = arith.mulf %100, %11 : vector<8x8x128xf32>
    %102 = arith.addf %99, %101 : vector<8x8x128xf32>
    %c1_33 = arith.constant 1 : index
    %103 = memref.load %arg1[%c1_33] : memref<5xf32, #tpu.memory_space<smem>>
    %cst_34 = arith.constant 1.000000e+00 : f32
    %104 = arith.subf %cst_34, %103 : f32
    %105 = arith.subf %98, %94 : vector<8x8x128xf32>
    %106 = arith.subf %102, %90 : vector<8x8x128xf32>
    %cst_35 = arith.constant 3.000000e+00 : f32
    %107 = vector.broadcast %cst_35 : f32 to vector<8x8x128xf32>
    %108 = arith.mulf %107, %106 : vector<8x8x128xf32>
    %109 = arith.addf %105, %108 : vector<8x8x128xf32>
    %110 = arith.mulf %0, %109 : vector<8x8x128xf32>
    %cst_36 = arith.constant dense<0.000000e+00> : vector<8x128xf32>
    %111 = vector.multi_reduction <add>, %110, %cst_36 [1] : vector<8x8x128xf32> to vector<8x128xf32>
    %112 = vector.shape_cast %111 : vector<8x128xf32> to vector<8x1x128xf32>
    %113 = vector.broadcast %112 : vector<8x1x128xf32> to vector<8x8x128xf32>
    %114 = arith.subf %113, %110 : vector<8x8x128xf32>
    %115 = arith.addf %94, %98 : vector<8x8x128xf32>
    %116 = arith.addf %90, %102 : vector<8x8x128xf32>
    %cst_37 = arith.constant 9.000000e+00 : f32
    %117 = vector.broadcast %cst_37 : f32 to vector<8x8x128xf32>
    %118 = arith.mulf %117, %116 : vector<8x8x128xf32>
    %119 = arith.addf %115, %118 : vector<8x8x128xf32>
    %120 = arith.mulf %109, %109 : vector<8x8x128xf32>
    %121 = arith.subf %119, %120 : vector<8x8x128xf32>
    %122 = arith.mulf %3, %121 : vector<8x8x128xf32>
    %cst_38 = arith.constant dense<0.000000e+00> : vector<8x128xf32>
    %123 = vector.multi_reduction <add>, %122, %cst_38 [1] : vector<8x8x128xf32> to vector<8x128xf32>
    %124 = vector.shape_cast %123 : vector<8x128xf32> to vector<8x1x128xf32>
    %125 = vector.broadcast %124 : vector<8x1x128xf32> to vector<8x8x128xf32>
    %126 = arith.subf %125, %122 : vector<8x8x128xf32>
    %127 = vector.broadcast %2 : f32 to vector<8x8x128xf32>
    %128 = arith.addf %126, %127 : vector<8x8x128xf32>
    %129 = tpu.reciprocal %128 {approx = true} : vector<8x8x128xf32> -> vector<8x8x128xf32>
    %130 = arith.mulf %128, %129 : vector<8x8x128xf32>
    %cst_39 = arith.constant 2.000000e+00 : f32
    %131 = vector.broadcast %cst_39 : f32 to vector<8x8x128xf32>
    %132 = arith.subf %131, %130 : vector<8x8x128xf32>
    %133 = arith.mulf %129, %132 : vector<8x8x128xf32>
    %134 = vector.broadcast %1 : vector<8x1x128xf32> to vector<8x8x128xf32>
    %135 = arith.subf %134, %114 : vector<8x8x128xf32>
    %136 = arith.mulf %0, %135 : vector<8x8x128xf32>
    %cst_40 = arith.constant 2.000000e+00 : f32
    %137 = vector.broadcast %cst_40 : f32 to vector<8x8x128xf32>
    %138 = arith.mulf %137, %136 : vector<8x8x128xf32>
    %139 = arith.mulf %138, %133 : vector<8x8x128xf32>
    %cst_41 = arith.constant 4.000000e+00 : f32
    %140 = vector.broadcast %cst_41 : f32 to vector<8x8x128xf32>
    %141 = arith.mulf %140, %3 : vector<8x8x128xf32>
    %142 = arith.mulf %141, %133 : vector<8x8x128xf32>
    %cst_42 = arith.constant dense<0.000000e+00> : vector<8x128xf32>
    %143 = vector.multi_reduction <add>, %139, %cst_42 [0] : vector<8x8x128xf32> to vector<8x128xf32>
    %144 = vector.shape_cast %143 : vector<8x128xf32> to vector<1x8x128xf32>
    %cst_43 = arith.constant dense<0.000000e+00> : vector<8x128xf32>
    %145 = vector.multi_reduction <add>, %142, %cst_43 [0] : vector<8x8x128xf32> to vector<8x128xf32>
    %146 = vector.shape_cast %145 : vector<8x128xf32> to vector<1x8x128xf32>
    %147 = vector.broadcast %144 : vector<1x8x128xf32> to vector<8x8x128xf32>
    %148 = arith.subf %147, %139 : vector<8x8x128xf32>
    %149 = vector.broadcast %146 : vector<1x8x128xf32> to vector<8x8x128xf32>
    %150 = arith.subf %149, %142 : vector<8x8x128xf32>
    %151 = arith.addf %148, %150 : vector<8x8x128xf32>
    %152 = arith.addf %151, %148 : vector<8x8x128xf32>
    %cst_44 = arith.constant 3.000000e+00 : f32
    %153 = vector.broadcast %cst_44 : f32 to vector<8x8x128xf32>
    %154 = arith.mulf %153, %148 : vector<8x8x128xf32>
    %155 = arith.maximumf %151, %152 : vector<8x8x128xf32>
    %cst_45 = arith.constant 0.000000e+00 : f32
    %156 = vector.broadcast %cst_45 : f32 to vector<8x8x128xf32>
    %157 = arith.maximumf %154, %156 : vector<8x8x128xf32>
    %158 = arith.maximumf %155, %157 : vector<8x8x128xf32>
    %cst_46 = arith.constant 0.000000e+00 : f32
    %159 = vector.broadcast %cst_46 : f32 to vector<8x8x128xf32>
    %160 = arith.subf %159, %158 : vector<8x8x128xf32>
    %161 = math.exp %160 : vector<8x8x128xf32>
    %162 = arith.subf %151, %158 : vector<8x8x128xf32>
    %163 = math.exp %162 : vector<8x8x128xf32>
    %164 = arith.subf %152, %158 : vector<8x8x128xf32>
    %165 = math.exp %164 : vector<8x8x128xf32>
    %166 = arith.subf %154, %158 : vector<8x8x128xf32>
    %167 = math.exp %166 : vector<8x8x128xf32>
    %168 = arith.addf %161, %163 : vector<8x8x128xf32>
    %169 = arith.addf %168, %165 : vector<8x8x128xf32>
    %170 = arith.addf %169, %167 : vector<8x8x128xf32>
    %171 = tpu.reciprocal %170 {approx = true} : vector<8x8x128xf32> -> vector<8x8x128xf32>
    %172 = arith.mulf %170, %171 : vector<8x8x128xf32>
    %cst_47 = arith.constant 2.000000e+00 : f32
    %173 = vector.broadcast %cst_47 : f32 to vector<8x8x128xf32>
    %174 = arith.subf %173, %172 : vector<8x8x128xf32>
    %175 = arith.mulf %171, %174 : vector<8x8x128xf32>
    %176 = vector.broadcast %104 : f32 to vector<8x8x128xf32>
    %177 = arith.mulf %176, %175 : vector<8x8x128xf32>
    %178 = arith.mulf %161, %177 : vector<8x8x128xf32>
    %179 = vector.broadcast %103 : f32 to vector<8x8x128xf32>
    %180 = arith.mulf %179, %90 : vector<8x8x128xf32>
    %181 = arith.addf %178, %180 : vector<8x8x128xf32>
    %182 = arith.mulf %163, %177 : vector<8x8x128xf32>
    %183 = vector.broadcast %103 : f32 to vector<8x8x128xf32>
    %184 = arith.mulf %183, %94 : vector<8x8x128xf32>
    %185 = arith.addf %182, %184 : vector<8x8x128xf32>
    %186 = arith.mulf %165, %177 : vector<8x8x128xf32>
    %187 = vector.broadcast %103 : f32 to vector<8x8x128xf32>
    %188 = arith.mulf %187, %98 : vector<8x8x128xf32>
    %189 = arith.addf %186, %188 : vector<8x8x128xf32>
    %190 = arith.mulf %167, %177 : vector<8x8x128xf32>
    %191 = vector.broadcast %103 : f32 to vector<8x8x128xf32>
    %192 = arith.mulf %191, %102 : vector<8x8x128xf32>
    %193 = arith.addf %190, %192 : vector<8x8x128xf32>
    %c2_48 = arith.constant 2 : index
    %194 = memref.load %arg1[%c2_48] : memref<5xf32, #tpu.memory_space<smem>>
    %cst_49 = arith.constant 1.000000e+00 : f32
    %195 = arith.subf %cst_49, %194 : f32
    %196 = arith.subf %189, %185 : vector<8x8x128xf32>
    %197 = arith.subf %193, %181 : vector<8x8x128xf32>
    %cst_50 = arith.constant 3.000000e+00 : f32
    %198 = vector.broadcast %cst_50 : f32 to vector<8x8x128xf32>
    %199 = arith.mulf %198, %197 : vector<8x8x128xf32>
    %200 = arith.addf %196, %199 : vector<8x8x128xf32>
    %201 = arith.mulf %0, %200 : vector<8x8x128xf32>
    %cst_51 = arith.constant dense<0.000000e+00> : vector<8x128xf32>
    %202 = vector.multi_reduction <add>, %201, %cst_51 [1] : vector<8x8x128xf32> to vector<8x128xf32>
    %203 = vector.shape_cast %202 : vector<8x128xf32> to vector<8x1x128xf32>
    %204 = vector.broadcast %203 : vector<8x1x128xf32> to vector<8x8x128xf32>
    %205 = arith.subf %204, %201 : vector<8x8x128xf32>
    %206 = arith.addf %185, %189 : vector<8x8x128xf32>
    %207 = arith.addf %181, %193 : vector<8x8x128xf32>
    %cst_52 = arith.constant 9.000000e+00 : f32
    %208 = vector.broadcast %cst_52 : f32 to vector<8x8x128xf32>
    %209 = arith.mulf %208, %207 : vector<8x8x128xf32>
    %210 = arith.addf %206, %209 : vector<8x8x128xf32>
    %211 = arith.mulf %200, %200 : vector<8x8x128xf32>
    %212 = arith.subf %210, %211 : vector<8x8x128xf32>
    %213 = arith.mulf %3, %212 : vector<8x8x128xf32>
    %cst_53 = arith.constant dense<0.000000e+00> : vector<8x128xf32>
    %214 = vector.multi_reduction <add>, %213, %cst_53 [1] : vector<8x8x128xf32> to vector<8x128xf32>
    %215 = vector.shape_cast %214 : vector<8x128xf32> to vector<8x1x128xf32>
    %216 = vector.broadcast %215 : vector<8x1x128xf32> to vector<8x8x128xf32>
    %217 = arith.subf %216, %213 : vector<8x8x128xf32>
    %218 = vector.broadcast %2 : f32 to vector<8x8x128xf32>
    %219 = arith.addf %217, %218 : vector<8x8x128xf32>
    %220 = tpu.reciprocal %219 {approx = true} : vector<8x8x128xf32> -> vector<8x8x128xf32>
    %221 = arith.mulf %219, %220 : vector<8x8x128xf32>
    %cst_54 = arith.constant 2.000000e+00 : f32
    %222 = vector.broadcast %cst_54 : f32 to vector<8x8x128xf32>
    %223 = arith.subf %222, %221 : vector<8x8x128xf32>
    %224 = arith.mulf %220, %223 : vector<8x8x128xf32>
    %225 = vector.broadcast %1 : vector<8x1x128xf32> to vector<8x8x128xf32>
    %226 = arith.subf %225, %205 : vector<8x8x128xf32>
    %227 = arith.mulf %0, %226 : vector<8x8x128xf32>
    %cst_55 = arith.constant 2.000000e+00 : f32
    %228 = vector.broadcast %cst_55 : f32 to vector<8x8x128xf32>
    %229 = arith.mulf %228, %227 : vector<8x8x128xf32>
    %230 = arith.mulf %229, %224 : vector<8x8x128xf32>
    %cst_56 = arith.constant 4.000000e+00 : f32
    %231 = vector.broadcast %cst_56 : f32 to vector<8x8x128xf32>
    %232 = arith.mulf %231, %3 : vector<8x8x128xf32>
    %233 = arith.mulf %232, %224 : vector<8x8x128xf32>
    %cst_57 = arith.constant dense<0.000000e+00> : vector<8x128xf32>
    %234 = vector.multi_reduction <add>, %230, %cst_57 [0] : vector<8x8x128xf32> to vector<8x128xf32>
    %235 = vector.shape_cast %234 : vector<8x128xf32> to vector<1x8x128xf32>
    %cst_58 = arith.constant dense<0.000000e+00> : vector<8x128xf32>
    %236 = vector.multi_reduction <add>, %233, %cst_58 [0] : vector<8x8x128xf32> to vector<8x128xf32>
    %237 = vector.shape_cast %236 : vector<8x128xf32> to vector<1x8x128xf32>
    %238 = vector.broadcast %235 : vector<1x8x128xf32> to vector<8x8x128xf32>
    %239 = arith.subf %238, %230 : vector<8x8x128xf32>
    %240 = vector.broadcast %237 : vector<1x8x128xf32> to vector<8x8x128xf32>
    %241 = arith.subf %240, %233 : vector<8x8x128xf32>
    %242 = arith.addf %239, %241 : vector<8x8x128xf32>
    %243 = arith.addf %242, %239 : vector<8x8x128xf32>
    %cst_59 = arith.constant 3.000000e+00 : f32
    %244 = vector.broadcast %cst_59 : f32 to vector<8x8x128xf32>
    %245 = arith.mulf %244, %239 : vector<8x8x128xf32>
    %246 = arith.maximumf %242, %243 : vector<8x8x128xf32>
    %cst_60 = arith.constant 0.000000e+00 : f32
    %247 = vector.broadcast %cst_60 : f32 to vector<8x8x128xf32>
    %248 = arith.maximumf %245, %247 : vector<8x8x128xf32>
    %249 = arith.maximumf %246, %248 : vector<8x8x128xf32>
    %cst_61 = arith.constant 0.000000e+00 : f32
    %250 = vector.broadcast %cst_61 : f32 to vector<8x8x128xf32>
    %251 = arith.subf %250, %249 : vector<8x8x128xf32>
    %252 = math.exp %251 : vector<8x8x128xf32>
    %253 = arith.subf %242, %249 : vector<8x8x128xf32>
    %254 = math.exp %253 : vector<8x8x128xf32>
    %255 = arith.subf %243, %249 : vector<8x8x128xf32>
    %256 = math.exp %255 : vector<8x8x128xf32>
    %257 = arith.subf %245, %249 : vector<8x8x128xf32>
    %258 = math.exp %257 : vector<8x8x128xf32>
    %259 = arith.addf %252, %254 : vector<8x8x128xf32>
    %260 = arith.addf %259, %256 : vector<8x8x128xf32>
    %261 = arith.addf %260, %258 : vector<8x8x128xf32>
    %262 = tpu.reciprocal %261 {approx = true} : vector<8x8x128xf32> -> vector<8x8x128xf32>
    %263 = arith.mulf %261, %262 : vector<8x8x128xf32>
    %cst_62 = arith.constant 2.000000e+00 : f32
    %264 = vector.broadcast %cst_62 : f32 to vector<8x8x128xf32>
    %265 = arith.subf %264, %263 : vector<8x8x128xf32>
    %266 = arith.mulf %262, %265 : vector<8x8x128xf32>
    %267 = vector.broadcast %195 : f32 to vector<8x8x128xf32>
    %268 = arith.mulf %267, %266 : vector<8x8x128xf32>
    %269 = arith.mulf %252, %268 : vector<8x8x128xf32>
    %270 = vector.broadcast %194 : f32 to vector<8x8x128xf32>
    %271 = arith.mulf %270, %181 : vector<8x8x128xf32>
    %272 = arith.addf %269, %271 : vector<8x8x128xf32>
    %273 = arith.mulf %254, %268 : vector<8x8x128xf32>
    %274 = vector.broadcast %194 : f32 to vector<8x8x128xf32>
    %275 = arith.mulf %274, %185 : vector<8x8x128xf32>
    %276 = arith.addf %273, %275 : vector<8x8x128xf32>
    %277 = arith.mulf %256, %268 : vector<8x8x128xf32>
    %278 = vector.broadcast %194 : f32 to vector<8x8x128xf32>
    %279 = arith.mulf %278, %189 : vector<8x8x128xf32>
    %280 = arith.addf %277, %279 : vector<8x8x128xf32>
    %281 = arith.mulf %258, %268 : vector<8x8x128xf32>
    %282 = vector.broadcast %194 : f32 to vector<8x8x128xf32>
    %283 = arith.mulf %282, %193 : vector<8x8x128xf32>
    %284 = arith.addf %281, %283 : vector<8x8x128xf32>
    %c3_63 = arith.constant 3 : index
    %285 = memref.load %arg1[%c3_63] : memref<5xf32, #tpu.memory_space<smem>>
    %cst_64 = arith.constant 1.000000e+00 : f32
    %286 = arith.subf %cst_64, %285 : f32
    %287 = arith.subf %280, %276 : vector<8x8x128xf32>
    %288 = arith.subf %284, %272 : vector<8x8x128xf32>
    %cst_65 = arith.constant 3.000000e+00 : f32
    %289 = vector.broadcast %cst_65 : f32 to vector<8x8x128xf32>
    %290 = arith.mulf %289, %288 : vector<8x8x128xf32>
    %291 = arith.addf %287, %290 : vector<8x8x128xf32>
    %292 = arith.mulf %0, %291 : vector<8x8x128xf32>
    %cst_66 = arith.constant dense<0.000000e+00> : vector<8x128xf32>
    %293 = vector.multi_reduction <add>, %292, %cst_66 [1] : vector<8x8x128xf32> to vector<8x128xf32>
    %294 = vector.shape_cast %293 : vector<8x128xf32> to vector<8x1x128xf32>
    %295 = vector.broadcast %294 : vector<8x1x128xf32> to vector<8x8x128xf32>
    %296 = arith.subf %295, %292 : vector<8x8x128xf32>
    %297 = arith.addf %276, %280 : vector<8x8x128xf32>
    %298 = arith.addf %272, %284 : vector<8x8x128xf32>
    %cst_67 = arith.constant 9.000000e+00 : f32
    %299 = vector.broadcast %cst_67 : f32 to vector<8x8x128xf32>
    %300 = arith.mulf %299, %298 : vector<8x8x128xf32>
    %301 = arith.addf %297, %300 : vector<8x8x128xf32>
    %302 = arith.mulf %291, %291 : vector<8x8x128xf32>
    %303 = arith.subf %301, %302 : vector<8x8x128xf32>
    %304 = arith.mulf %3, %303 : vector<8x8x128xf32>
    %cst_68 = arith.constant dense<0.000000e+00> : vector<8x128xf32>
    %305 = vector.multi_reduction <add>, %304, %cst_68 [1] : vector<8x8x128xf32> to vector<8x128xf32>
    %306 = vector.shape_cast %305 : vector<8x128xf32> to vector<8x1x128xf32>
    %307 = vector.broadcast %306 : vector<8x1x128xf32> to vector<8x8x128xf32>
    %308 = arith.subf %307, %304 : vector<8x8x128xf32>
    %309 = vector.broadcast %2 : f32 to vector<8x8x128xf32>
    %310 = arith.addf %308, %309 : vector<8x8x128xf32>
    %311 = tpu.reciprocal %310 {approx = true} : vector<8x8x128xf32> -> vector<8x8x128xf32>
    %312 = arith.mulf %310, %311 : vector<8x8x128xf32>
    %cst_69 = arith.constant 2.000000e+00 : f32
    %313 = vector.broadcast %cst_69 : f32 to vector<8x8x128xf32>
    %314 = arith.subf %313, %312 : vector<8x8x128xf32>
    %315 = arith.mulf %311, %314 : vector<8x8x128xf32>
    %316 = vector.broadcast %1 : vector<8x1x128xf32> to vector<8x8x128xf32>
    %317 = arith.subf %316, %296 : vector<8x8x128xf32>
    %318 = arith.mulf %0, %317 : vector<8x8x128xf32>
    %cst_70 = arith.constant 2.000000e+00 : f32
    %319 = vector.broadcast %cst_70 : f32 to vector<8x8x128xf32>
    %320 = arith.mulf %319, %318 : vector<8x8x128xf32>
    %321 = arith.mulf %320, %315 : vector<8x8x128xf32>
    %cst_71 = arith.constant 4.000000e+00 : f32
    %322 = vector.broadcast %cst_71 : f32 to vector<8x8x128xf32>
    %323 = arith.mulf %322, %3 : vector<8x8x128xf32>
    %324 = arith.mulf %323, %315 : vector<8x8x128xf32>
    %cst_72 = arith.constant dense<0.000000e+00> : vector<8x128xf32>
    %325 = vector.multi_reduction <add>, %321, %cst_72 [0] : vector<8x8x128xf32> to vector<8x128xf32>
    %326 = vector.shape_cast %325 : vector<8x128xf32> to vector<1x8x128xf32>
    %cst_73 = arith.constant dense<0.000000e+00> : vector<8x128xf32>
    %327 = vector.multi_reduction <add>, %324, %cst_73 [0] : vector<8x8x128xf32> to vector<8x128xf32>
    %328 = vector.shape_cast %327 : vector<8x128xf32> to vector<1x8x128xf32>
    %329 = vector.broadcast %326 : vector<1x8x128xf32> to vector<8x8x128xf32>
    %330 = arith.subf %329, %321 : vector<8x8x128xf32>
    %331 = vector.broadcast %328 : vector<1x8x128xf32> to vector<8x8x128xf32>
    %332 = arith.subf %331, %324 : vector<8x8x128xf32>
    %333 = arith.addf %330, %332 : vector<8x8x128xf32>
    %334 = arith.addf %333, %330 : vector<8x8x128xf32>
    %cst_74 = arith.constant 3.000000e+00 : f32
    %335 = vector.broadcast %cst_74 : f32 to vector<8x8x128xf32>
    %336 = arith.mulf %335, %330 : vector<8x8x128xf32>
    %337 = arith.maximumf %333, %334 : vector<8x8x128xf32>
    %cst_75 = arith.constant 0.000000e+00 : f32
    %338 = vector.broadcast %cst_75 : f32 to vector<8x8x128xf32>
    %339 = arith.maximumf %336, %338 : vector<8x8x128xf32>
    %340 = arith.maximumf %337, %339 : vector<8x8x128xf32>
    %cst_76 = arith.constant 0.000000e+00 : f32
    %341 = vector.broadcast %cst_76 : f32 to vector<8x8x128xf32>
    %342 = arith.subf %341, %340 : vector<8x8x128xf32>
    %343 = math.exp %342 : vector<8x8x128xf32>
    %344 = arith.subf %333, %340 : vector<8x8x128xf32>
    %345 = math.exp %344 : vector<8x8x128xf32>
    %346 = arith.subf %334, %340 : vector<8x8x128xf32>
    %347 = math.exp %346 : vector<8x8x128xf32>
    %348 = arith.subf %336, %340 : vector<8x8x128xf32>
    %349 = math.exp %348 : vector<8x8x128xf32>
    %350 = arith.addf %343, %345 : vector<8x8x128xf32>
    %351 = arith.addf %350, %347 : vector<8x8x128xf32>
    %352 = arith.addf %351, %349 : vector<8x8x128xf32>
    %353 = tpu.reciprocal %352 {approx = true} : vector<8x8x128xf32> -> vector<8x8x128xf32>
    %354 = arith.mulf %352, %353 : vector<8x8x128xf32>
    %cst_77 = arith.constant 2.000000e+00 : f32
    %355 = vector.broadcast %cst_77 : f32 to vector<8x8x128xf32>
    %356 = arith.subf %355, %354 : vector<8x8x128xf32>
    %357 = arith.mulf %353, %356 : vector<8x8x128xf32>
    %358 = vector.broadcast %286 : f32 to vector<8x8x128xf32>
    %359 = arith.mulf %358, %357 : vector<8x8x128xf32>
    %360 = arith.mulf %343, %359 : vector<8x8x128xf32>
    %361 = vector.broadcast %285 : f32 to vector<8x8x128xf32>
    %362 = arith.mulf %361, %272 : vector<8x8x128xf32>
    %363 = arith.addf %360, %362 : vector<8x8x128xf32>
    %364 = arith.mulf %345, %359 : vector<8x8x128xf32>
    %365 = vector.broadcast %285 : f32 to vector<8x8x128xf32>
    %366 = arith.mulf %365, %276 : vector<8x8x128xf32>
    %367 = arith.addf %364, %366 : vector<8x8x128xf32>
    %368 = arith.mulf %347, %359 : vector<8x8x128xf32>
    %369 = vector.broadcast %285 : f32 to vector<8x8x128xf32>
    %370 = arith.mulf %369, %280 : vector<8x8x128xf32>
    %371 = arith.addf %368, %370 : vector<8x8x128xf32>
    %372 = arith.mulf %349, %359 : vector<8x8x128xf32>
    %373 = vector.broadcast %285 : f32 to vector<8x8x128xf32>
    %374 = arith.mulf %373, %284 : vector<8x8x128xf32>
    %375 = arith.addf %372, %374 : vector<8x8x128xf32>
    %c4 = arith.constant 4 : index
    %376 = memref.load %arg1[%c4] : memref<5xf32, #tpu.memory_space<smem>>
    %cst_78 = arith.constant 1.000000e+00 : f32
    %377 = arith.subf %cst_78, %376 : f32
    %378 = arith.subf %371, %367 : vector<8x8x128xf32>
    %379 = arith.subf %375, %363 : vector<8x8x128xf32>
    %cst_79 = arith.constant 3.000000e+00 : f32
    %380 = vector.broadcast %cst_79 : f32 to vector<8x8x128xf32>
    %381 = arith.mulf %380, %379 : vector<8x8x128xf32>
    %382 = arith.addf %378, %381 : vector<8x8x128xf32>
    %383 = arith.mulf %0, %382 : vector<8x8x128xf32>
    %cst_80 = arith.constant dense<0.000000e+00> : vector<8x128xf32>
    %384 = vector.multi_reduction <add>, %383, %cst_80 [1] : vector<8x8x128xf32> to vector<8x128xf32>
    %385 = vector.shape_cast %384 : vector<8x128xf32> to vector<8x1x128xf32>
    %386 = vector.broadcast %385 : vector<8x1x128xf32> to vector<8x8x128xf32>
    %387 = arith.subf %386, %383 : vector<8x8x128xf32>
    %388 = arith.addf %367, %371 : vector<8x8x128xf32>
    %389 = arith.addf %363, %375 : vector<8x8x128xf32>
    %cst_81 = arith.constant 9.000000e+00 : f32
    %390 = vector.broadcast %cst_81 : f32 to vector<8x8x128xf32>
    %391 = arith.mulf %390, %389 : vector<8x8x128xf32>
    %392 = arith.addf %388, %391 : vector<8x8x128xf32>
    %393 = arith.mulf %382, %382 : vector<8x8x128xf32>
    %394 = arith.subf %392, %393 : vector<8x8x128xf32>
    %395 = arith.mulf %3, %394 : vector<8x8x128xf32>
    %cst_82 = arith.constant dense<0.000000e+00> : vector<8x128xf32>
    %396 = vector.multi_reduction <add>, %395, %cst_82 [1] : vector<8x8x128xf32> to vector<8x128xf32>
    %397 = vector.shape_cast %396 : vector<8x128xf32> to vector<8x1x128xf32>
    %398 = vector.broadcast %397 : vector<8x1x128xf32> to vector<8x8x128xf32>
    %399 = arith.subf %398, %395 : vector<8x8x128xf32>
    %400 = vector.broadcast %2 : f32 to vector<8x8x128xf32>
    %401 = arith.addf %399, %400 : vector<8x8x128xf32>
    %402 = tpu.reciprocal %401 {approx = true} : vector<8x8x128xf32> -> vector<8x8x128xf32>
    %403 = arith.mulf %401, %402 : vector<8x8x128xf32>
    %cst_83 = arith.constant 2.000000e+00 : f32
    %404 = vector.broadcast %cst_83 : f32 to vector<8x8x128xf32>
    %405 = arith.subf %404, %403 : vector<8x8x128xf32>
    %406 = arith.mulf %402, %405 : vector<8x8x128xf32>
    %407 = vector.broadcast %1 : vector<8x1x128xf32> to vector<8x8x128xf32>
    %408 = arith.subf %407, %387 : vector<8x8x128xf32>
    %409 = arith.mulf %0, %408 : vector<8x8x128xf32>
    %cst_84 = arith.constant 2.000000e+00 : f32
    %410 = vector.broadcast %cst_84 : f32 to vector<8x8x128xf32>
    %411 = arith.mulf %410, %409 : vector<8x8x128xf32>
    %412 = arith.mulf %411, %406 : vector<8x8x128xf32>
    %cst_85 = arith.constant 4.000000e+00 : f32
    %413 = vector.broadcast %cst_85 : f32 to vector<8x8x128xf32>
    %414 = arith.mulf %413, %3 : vector<8x8x128xf32>
    %415 = arith.mulf %414, %406 : vector<8x8x128xf32>
    %cst_86 = arith.constant dense<0.000000e+00> : vector<8x128xf32>
    %416 = vector.multi_reduction <add>, %412, %cst_86 [0] : vector<8x8x128xf32> to vector<8x128xf32>
    %417 = vector.shape_cast %416 : vector<8x128xf32> to vector<1x8x128xf32>
    %cst_87 = arith.constant dense<0.000000e+00> : vector<8x128xf32>
    %418 = vector.multi_reduction <add>, %415, %cst_87 [0] : vector<8x8x128xf32> to vector<8x128xf32>
    %419 = vector.shape_cast %418 : vector<8x128xf32> to vector<1x8x128xf32>
    %420 = vector.broadcast %417 : vector<1x8x128xf32> to vector<8x8x128xf32>
    %421 = arith.subf %420, %412 : vector<8x8x128xf32>
    %422 = vector.broadcast %419 : vector<1x8x128xf32> to vector<8x8x128xf32>
    %423 = arith.subf %422, %415 : vector<8x8x128xf32>
    %424 = arith.addf %421, %423 : vector<8x8x128xf32>
    %425 = arith.addf %424, %421 : vector<8x8x128xf32>
    %cst_88 = arith.constant 3.000000e+00 : f32
    %426 = vector.broadcast %cst_88 : f32 to vector<8x8x128xf32>
    %427 = arith.mulf %426, %421 : vector<8x8x128xf32>
    %428 = arith.maximumf %424, %425 : vector<8x8x128xf32>
    %cst_89 = arith.constant 0.000000e+00 : f32
    %429 = vector.broadcast %cst_89 : f32 to vector<8x8x128xf32>
    %430 = arith.maximumf %427, %429 : vector<8x8x128xf32>
    %431 = arith.maximumf %428, %430 : vector<8x8x128xf32>
    %cst_90 = arith.constant 0.000000e+00 : f32
    %432 = vector.broadcast %cst_90 : f32 to vector<8x8x128xf32>
    %433 = arith.subf %432, %431 : vector<8x8x128xf32>
    %434 = math.exp %433 : vector<8x8x128xf32>
    %435 = arith.subf %424, %431 : vector<8x8x128xf32>
    %436 = math.exp %435 : vector<8x8x128xf32>
    %437 = arith.subf %425, %431 : vector<8x8x128xf32>
    %438 = math.exp %437 : vector<8x8x128xf32>
    %439 = arith.subf %427, %431 : vector<8x8x128xf32>
    %440 = math.exp %439 : vector<8x8x128xf32>
    %441 = arith.addf %434, %436 : vector<8x8x128xf32>
    %442 = arith.addf %441, %438 : vector<8x8x128xf32>
    %443 = arith.addf %442, %440 : vector<8x8x128xf32>
    %444 = tpu.reciprocal %443 {approx = true} : vector<8x8x128xf32> -> vector<8x8x128xf32>
    %445 = arith.mulf %443, %444 : vector<8x8x128xf32>
    %cst_91 = arith.constant 2.000000e+00 : f32
    %446 = vector.broadcast %cst_91 : f32 to vector<8x8x128xf32>
    %447 = arith.subf %446, %445 : vector<8x8x128xf32>
    %448 = arith.mulf %444, %447 : vector<8x8x128xf32>
    %449 = vector.broadcast %377 : f32 to vector<8x8x128xf32>
    %450 = arith.mulf %449, %448 : vector<8x8x128xf32>
    %451 = arith.mulf %434, %450 : vector<8x8x128xf32>
    %452 = vector.broadcast %376 : f32 to vector<8x8x128xf32>
    %453 = arith.mulf %452, %363 : vector<8x8x128xf32>
    %454 = arith.addf %451, %453 : vector<8x8x128xf32>
    %455 = arith.mulf %436, %450 : vector<8x8x128xf32>
    %456 = vector.broadcast %376 : f32 to vector<8x8x128xf32>
    %457 = arith.mulf %456, %367 : vector<8x8x128xf32>
    %458 = arith.addf %455, %457 : vector<8x8x128xf32>
    %459 = arith.mulf %438, %450 : vector<8x8x128xf32>
    %460 = vector.broadcast %376 : f32 to vector<8x8x128xf32>
    %461 = arith.mulf %460, %371 : vector<8x8x128xf32>
    %462 = arith.addf %459, %461 : vector<8x8x128xf32>
    %463 = arith.mulf %440, %450 : vector<8x8x128xf32>
    %464 = vector.broadcast %376 : f32 to vector<8x8x128xf32>
    %465 = arith.mulf %464, %375 : vector<8x8x128xf32>
    %466 = arith.addf %463, %465 : vector<8x8x128xf32>
    %c0_92 = arith.constant 0 : index
    %c0_93 = arith.constant 0 : index
    %c0_94 = arith.constant 0 : index
    %c0_95 = arith.constant 0 : index
    %467 = vector.load %arg6[%c0_92, %c0_93, %c0_94, %c0_95] : memref<4x8x8x128xf32, #tpu.memory_space<vmem>>, vector<1x8x8x128xf32>
    %468 = vector.shape_cast %467 : vector<1x8x8x128xf32> to vector<8x8x128xf32>
    %469 = vector.shape_cast %454 : vector<8x8x128xf32> to vector<1x8x8x128xf32>
    tpu.vector_store %arg6[%c0_92, %c0_93, %c0_94, %c0_95], %469 {strides = array<i32>} : memref<4x8x8x128xf32, #tpu.memory_space<vmem>>, vector<1x8x8x128xf32>,
    %c1_96 = arith.constant 1 : index
    %c0_97 = arith.constant 0 : index
    %c0_98 = arith.constant 0 : index
    %c0_99 = arith.constant 0 : index
    %470 = vector.load %arg6[%c1_96, %c0_97, %c0_98, %c0_99] : memref<4x8x8x128xf32, #tpu.memory_space<vmem>>, vector<1x8x8x128xf32>
    %471 = vector.shape_cast %470 : vector<1x8x8x128xf32> to vector<8x8x128xf32>
    %472 = vector.shape_cast %458 : vector<8x8x128xf32> to vector<1x8x8x128xf32>
    tpu.vector_store %arg6[%c1_96, %c0_97, %c0_98, %c0_99], %472 {strides = array<i32>} : memref<4x8x8x128xf32, #tpu.memory_space<vmem>>, vector<1x8x8x128xf32>,
    %c2_100 = arith.constant 2 : index
    %c0_101 = arith.constant 0 : index
    %c0_102 = arith.constant 0 : index
    %c0_103 = arith.constant 0 : index
    %473 = vector.load %arg6[%c2_100, %c0_101, %c0_102, %c0_103] : memref<4x8x8x128xf32, #tpu.memory_space<vmem>>, vector<1x8x8x128xf32>
    %474 = vector.shape_cast %473 : vector<1x8x8x128xf32> to vector<8x8x128xf32>
    %475 = vector.shape_cast %462 : vector<8x8x128xf32> to vector<1x8x8x128xf32>
    tpu.vector_store %arg6[%c2_100, %c0_101, %c0_102, %c0_103], %475 {strides = array<i32>} : memref<4x8x8x128xf32, #tpu.memory_space<vmem>>, vector<1x8x8x128xf32>,
    %c3_104 = arith.constant 3 : index
    %c0_105 = arith.constant 0 : index
    %c0_106 = arith.constant 0 : index
    %c0_107 = arith.constant 0 : index
    %476 = vector.load %arg6[%c3_104, %c0_105, %c0_106, %c0_107] : memref<4x8x8x128xf32, #tpu.memory_space<vmem>>, vector<1x8x8x128xf32>
    %477 = vector.shape_cast %476 : vector<1x8x8x128xf32> to vector<8x8x128xf32>
    %478 = vector.shape_cast %466 : vector<8x8x128xf32> to vector<1x8x8x128xf32>
    tpu.vector_store %arg6[%c3_104, %c0_105, %c0_106, %c0_107], %478 {strides = array<i32>} : memref<4x8x8x128xf32, #tpu.memory_space<vmem>>, vector<1x8x8x128xf32>,
    %479 = arith.addf %417, %419 : vector<1x8x128xf32>
    %cst_108 = arith.constant 0.000000e+00 : f32
    %480 = vector.broadcast %cst_108 : f32 to vector<1x8x128xf32>
    %c0_109 = arith.constant 0 : index
    %c0_110 = arith.constant 0 : index
    %c0_111 = arith.constant 0 : index
    %c0_112 = arith.constant 0 : index
    %481 = vector.load %arg7[%c0_109, %c0_110, %c0_111, %c0_112] : memref<4x1x8x128xf32, #tpu.memory_space<vmem>>, vector<1x1x8x128xf32>
    %482 = vector.shape_cast %481 : vector<1x1x8x128xf32> to vector<1x8x128xf32>
    %483 = vector.shape_cast %480 : vector<1x8x128xf32> to vector<1x1x8x128xf32>
    tpu.vector_store %arg7[%c0_109, %c0_110, %c0_111, %c0_112], %483 {strides = array<i32>} : memref<4x1x8x128xf32, #tpu.memory_space<vmem>>, vector<1x1x8x128xf32>,
    %c1_113 = arith.constant 1 : index
    %c0_114 = arith.constant 0 : index
    %c0_115 = arith.constant 0 : index
    %c0_116 = arith.constant 0 : index
    %484 = vector.load %arg7[%c1_113, %c0_114, %c0_115, %c0_116] : memref<4x1x8x128xf32, #tpu.memory_space<vmem>>, vector<1x1x8x128xf32>
    %485 = vector.shape_cast %484 : vector<1x1x8x128xf32> to vector<1x8x128xf32>
    %486 = vector.shape_cast %479 : vector<1x8x128xf32> to vector<1x1x8x128xf32>
    tpu.vector_store %arg7[%c1_113, %c0_114, %c0_115, %c0_116], %486 {strides = array<i32>} : memref<4x1x8x128xf32, #tpu.memory_space<vmem>>, vector<1x1x8x128xf32>,
    %487 = arith.addf %479, %417 : vector<1x8x128xf32>
    %c2_117 = arith.constant 2 : index
    %c0_118 = arith.constant 0 : index
    %c0_119 = arith.constant 0 : index
    %c0_120 = arith.constant 0 : index
    %488 = vector.load %arg7[%c2_117, %c0_118, %c0_119, %c0_120] : memref<4x1x8x128xf32, #tpu.memory_space<vmem>>, vector<1x1x8x128xf32>
    %489 = vector.shape_cast %488 : vector<1x1x8x128xf32> to vector<1x8x128xf32>
    %490 = vector.shape_cast %487 : vector<1x8x128xf32> to vector<1x1x8x128xf32>
    tpu.vector_store %arg7[%c2_117, %c0_118, %c0_119, %c0_120], %490 {strides = array<i32>} : memref<4x1x8x128xf32, #tpu.memory_space<vmem>>, vector<1x1x8x128xf32>,
    %cst_121 = arith.constant 3.000000e+00 : f32
    %491 = vector.broadcast %cst_121 : f32 to vector<1x8x128xf32>
    %492 = arith.mulf %491, %417 : vector<1x8x128xf32>
    %c3_122 = arith.constant 3 : index
    %c0_123 = arith.constant 0 : index
    %c0_124 = arith.constant 0 : index
    %c0_125 = arith.constant 0 : index
    %493 = vector.load %arg7[%c3_122, %c0_123, %c0_124, %c0_125] : memref<4x1x8x128xf32, #tpu.memory_space<vmem>>, vector<1x1x8x128xf32>
    %494 = vector.shape_cast %493 : vector<1x1x8x128xf32> to vector<1x8x128xf32>
    %495 = vector.shape_cast %492 : vector<1x8x128xf32> to vector<1x1x8x128xf32>
    tpu.vector_store %arg7[%c3_122, %c0_123, %c0_124, %c0_125], %495 {strides = array<i32>} : memref<4x1x8x128xf32, #tpu.memory_space<vmem>>, vector<1x1x8x128xf32>,
    return
  }
  func.func @transform_0(%arg0: i32) -> i32 {
    %c0_i32 = arith.constant 0 : i32
    %c0_i32_0 = arith.constant 0 : i32
    return %c0_i32 : i32
  }
  func.func @transform_1(%arg0: i32) -> i32 {
    %c0_i32 = arith.constant 0 : i32
    %c0_i32_0 = arith.constant 0 : i32
    return %c0_i32 : i32
  }
  func.func @transform_2(%arg0: i32) -> (i32, i32, i32) {
    %c0_i32 = arith.constant 0 : i32
    %c0_i32_0 = arith.constant 0 : i32
    %c0_i32_1 = arith.constant 0 : i32
    return %c0_i32, %c0_i32_0, %arg0 : i32, i32, i32
  }
  func.func @transform_3(%arg0: i32) -> (i32, i32, i32) {
    %c0_i32 = arith.constant 0 : i32
    %c0_i32_0 = arith.constant 0 : i32
    %c0_i32_1 = arith.constant 0 : i32
    return %c0_i32, %c0_i32_0, %arg0 : i32, i32, i32
  }
  func.func @transform_4(%arg0: i32) -> (i32, i32, i32, i32) {
    %c0_i32 = arith.constant 0 : i32
    %c0_i32_0 = arith.constant 0 : i32
    %c0_i32_1 = arith.constant 0 : i32
    %c0_i32_2 = arith.constant 0 : i32
    return %c0_i32, %c0_i32_0, %c0_i32_1, %arg0 : i32, i32, i32, i32
  }
  func.func @transform_5(%arg0: i32) -> (i32, i32, i32, i32) {
    %c0_i32 = arith.constant 0 : i32
    %c0_i32_0 = arith.constant 0 : i32
    %c0_i32_1 = arith.constant 0 : i32
    %c0_i32_2 = arith.constant 0 : i32
    return %c0_i32, %c0_i32_0, %c0_i32_1, %arg0 : i32, i32, i32, i32
  }
  func.func @transform_6(%arg0: i32) -> (i32, i32, i32, i32) {
    %c0_i32 = arith.constant 0 : i32
    %c0_i32_0 = arith.constant 0 : i32
    %c0_i32_1 = arith.constant 0 : i32
    %c0_i32_2 = arith.constant 0 : i32
    return %c0_i32, %c0_i32_0, %c0_i32_1, %arg0 : i32, i32, i32, i32
  }
}

</mosaic_0001>

<llo_original>
// kernel: tpu_custom_call.1
$region0: #{tpu_custom_call.1}
  #allocation0 [shape = 'u32[]', space=smem, size = 0x4, offset = 0x4, fixed_abs, tag = 'smem constant byte address 0x4 - core index']
  #allocation1 [shape = 'u32[144,128]{1,0:T(1,128)}', space=vmem, size = 0x12000, scoped, tag = 'internal scratch']
  #allocation2 [shape = 'f32[1]{0:T(128)S(6)}', space=smem, size = 0x200, scoped, tag = 'scoped memory for tpu_custom_call.1']
  %s0 = inlined_call_operand.vmem [shape: f32[5], index: 0, kind: input, shape index: {}]
  %s1 = inlined_call_operand.<no memory space> [shape: f32[1], index: 1, kind: input, shape index: {}]
  %s2 = inlined_call_operand.hbm [shape: f32[8,1,128], index: 2, kind: input, shape index: {}]
  %s3 = inlined_call_operand.hbm [shape: f32[8,8,128], index: 3, kind: input, shape index: {}]
  %s4 = inlined_call_operand.hbm [shape: f32[4,8,8,128], index: 4, kind: input, shape index: {}]
  %s5 = inlined_call_operand.hbm [shape: f32[4,8,8,128], index: 5, kind: output, shape index: {0}]
  %s6 = inlined_call_operand.hbm [shape: f32[4,1,8,128], index: 6, kind: output, shape index: {1}]
  %7 = xla_tuple %s5, %s6
  %s8 = sld [smem:[#allocation0]]
  $region54: #{tpu_custom_call.1} parent=0
    _
  %s10 = ssub.s32 1, %s8
  %s11 = scalar_select 0, %s10, %s8
  %12 = sst [smem:[#allocation2]] %s1
  $region1: #{tpu_custom_call.1} parent=0
    #allocation3 [shape = 'u8[512]{0}', space=smem, size = 0x200, scoped, tag = 'input window, operand 0, single buffered']
    #allocation4 [shape = 's32[1]{0}', space=sflag, size = 0x4, scoped, tag = 'scoped memory for tpu_custom_call.1']
    #allocation5 [shape = 's32[1]{0}', space=sflag, size = 0x4, scoped, tag = 'scoped memory for tpu_custom_call.1']
    #allocation6 [shape = 's32[1]{0}', space=sflag, size = 0x4, scoped, tag = 'scoped memory for tpu_custom_call.1']
    #allocation7 [shape = 'u8[4096]{0}', space=vmem, size = 0x1000, scoped, tag = 'input window, operand 2, single buffered']
    #allocation8 [shape = 'u8[32768]{0}', space=vmem, size = 0x8000, scoped, tag = 'input window, operand 3, single buffered']
    #allocation9 [shape = 's32[1]{0}', space=sflag, size = 0x4, scoped, tag = 'scoped memory for tpu_custom_call.1']
    #allocation10 [shape = 'u8[131072]{0}', space=vmem, size = 0x20000, scoped, tag = 'input window, operand 4, single buffered']
    #allocation11 [shape = 'u8[131072]{0}', space=vmem, size = 0x20000, scoped, tag = 'output window, operand 0, single buffered']
    #allocation12 [shape = 'u8[16384]{0}', space=vmem, size = 0x4000, scoped, tag = 'output window, operand 1, single buffered']
    #allocation13 [shape = 's32[1]{0}', space=sflag, size = 0x4, scoped, tag = 'scoped memory for tpu_custom_call.1']
    %13 = vsyncpa [#allocation6], 0
    %14 = vsyncpa [#allocation4], 0
    %15 = vsyncpa [#allocation9], 0
    %16 = vsyncpa [#allocation5], 0
    %17 = vsyncpa [#allocation13], 0
    // Predicated region
    $region2: #{tpu_custom_call.1} parent=1 // pred_check
      _
    $region3: #{tpu_custom_call.1} parent=1 // pred_check_branch
      %19 = sbr.rel (0) target = $region5
    $region4: #{tpu_custom_call.1} parent=1 // pred_region
      %s21 = ssub.s32 16, 16
      %22 = vsyncadd [#allocation6], %s21
      %s24 = sshll.u32 %s0, 4
      %s25 = int_to_ptr.vmem [resolvable:$true] %s24
      %27 = dma.vmem_to_smem %s25, 16, [#allocation3], [#allocation6]
    $region5: #{tpu_custom_call.1} parent=1 // pred_fallthru
      _
    // Predicated region
    $region6: #{tpu_custom_call.1} parent=1 // pred_check
      _
    $region7: #{tpu_custom_call.1} parent=1 // pred_check_branch
      %29 = sbr.rel (0) target = $region9
    $region8: #{tpu_custom_call.1} parent=1 // pred_region
      _
    $region9: #{tpu_custom_call.1} parent=1 // pred_fallthru
      _
    // Predicated region
    $region10: #{tpu_custom_call.1} parent=1 // pred_check
      _
    $region11: #{tpu_custom_call.1} parent=1 // pred_check_branch
      %31 = sbr.rel (0) target = $region13
    $region12: #{tpu_custom_call.1} parent=1 // pred_region
      %s33 = ssub.s32 128, 128
      %34 = vsyncadd [#allocation4], %s33
      %s35 = sshll.u32 [#allocation7], 4
      %s36 = int_to_ptr.vmem [resolvable:$true] %s35
      %41 = dma.hbm_to_vmem [thread:$0]  %s2, 128, %s36, [#allocation4], 16, 16, 1
    $region13: #{tpu_custom_call.1} parent=1 // pred_fallthru
      _
    // Predicated region
    $region14: #{tpu_custom_call.1} parent=1 // pred_check
      _
    $region15: #{tpu_custom_call.1} parent=1 // pred_check_branch
      %43 = sbr.rel (0) target = $region17
    $region16: #{tpu_custom_call.1} parent=1 // pred_region
      %s45 = ssub.s32 1024, 1024
      %46 = vsyncadd [#allocation9], %s45
      %s47 = sshll.u32 [#allocation8], 4
      %s48 = int_to_ptr.vmem [resolvable:$true] %s47
      %53 = dma.hbm_to_vmem [thread:$0]  %s3, 1024, %s48, [#allocation9], 128, 128, 8
    $region17: #{tpu_custom_call.1} parent=1 // pred_fallthru
      _
    // Predicated region
    $region18: #{tpu_custom_call.1} parent=1 // pred_check
      _
    $region19: #{tpu_custom_call.1} parent=1 // pred_check_branch
      %55 = sbr.rel (0) target = $region21
    $region20: #{tpu_custom_call.1} parent=1 // pred_region
      %s57 = ssub.s32 4096, 4096
      %58 = vsyncadd [#allocation9], %s57
      %s59 = sshll.u32 [#allocation10], 4
      %s60 = int_to_ptr.vmem [resolvable:$true] %s59
      %65 = dma.hbm_to_vmem [thread:$0]  %s4, 4096, %s60, [#allocation9], 128, 128, 8
    $region21: #{tpu_custom_call.1} parent=1 // pred_fallthru
      _
    // Predicated region
    $region22: #{tpu_custom_call.1} parent=1 // pred_check
      _
    $region23: #{tpu_custom_call.1} parent=1 // pred_check_branch
      %67 = sbr.rel (0) target = $region25
    $region24: #{tpu_custom_call.1} parent=1 // pred_region
      %68 = dma.done [#allocation6], 16
    $region25: #{tpu_custom_call.1} parent=1 // pred_fallthru
      _
    // Predicated region
    $region26: #{tpu_custom_call.1} parent=1 // pred_check
      _
    $region27: #{tpu_custom_call.1} parent=1 // pred_check_branch
      %70 = sbr.rel (0) target = $region29
    $region28: #{tpu_custom_call.1} parent=1 // pred_region
      %71 = dma.done [#allocation4], 128
    $region29: #{tpu_custom_call.1} parent=1 // pred_fallthru
      _
    // Predicated region
    $region30: #{tpu_custom_call.1} parent=1 // pred_check
      _
    $region31: #{tpu_custom_call.1} parent=1 // pred_check_branch
      %73 = sbr.rel (0) target = $region33
    $region32: #{tpu_custom_call.1} parent=1 // pred_region
      %74 = dma.done [#allocation9], 1024
    $region33: #{tpu_custom_call.1} parent=1 // pred_fallthru
      _
    // Predicated region
    $region34: #{tpu_custom_call.1} parent=1 // pred_check
      _
    $region35: #{tpu_custom_call.1} parent=1 // pred_check_branch
      %76 = sbr.rel (0) target = $region37
    $region36: #{tpu_custom_call.1} parent=1 // pred_region
      %77 = dma.done [#allocation9], 4096
    $region37: #{tpu_custom_call.1} parent=1 // pred_fallthru
      _
    %78 = sfence
    %v79 = vld [vmem:[#allocation8] sm:$0xff]
    %v80 = vld [vmem:[#allocation8 + $0x8] sm:$0xff]
    %v81 = vld [vmem:[#allocation8 + $0x10] sm:$0xff]
    %v82 = vld [vmem:[#allocation8 + $0x18] sm:$0xff]
    %v83 = vld [vmem:[#allocation8 + $0x20] sm:$0xff]
    %v84 = vld [vmem:[#allocation8 + $0x28] sm:$0xff]
    %v85 = vld [vmem:[#allocation8 + $0x30] sm:$0xff]
    %v86 = vld [vmem:[#allocation8 + $0x38] sm:$0xff]
    %v87 = vld [vmem:[#allocation7] sm:$0x1]
    %v88 = vld [vmem:[#allocation7 + $0x1] sm:$0x1]
    %v89 = vld [vmem:[#allocation7 + $0x2] sm:$0x1]
    %v90 = vld [vmem:[#allocation7 + $0x3] sm:$0x1]
    %v91 = vld [vmem:[#allocation7 + $0x4] sm:$0x1]
    %v92 = vld [vmem:[#allocation7 + $0x5] sm:$0x1]
    %v93 = vld [vmem:[#allocation7 + $0x6] sm:$0x1]
    %v94 = vld [vmem:[#allocation7 + $0x7] sm:$0x1]
    %s95 = sld [smem:[#allocation2]]
    %v96 = vmul.f32 %v79, %v79
    %v97 = vmul.f32 %v80, %v80
    %v98 = vmul.f32 %v81, %v81
    %v99 = vmul.f32 %v82, %v82
    %v100 = vmul.f32 %v83, %v83
    %v101 = vmul.f32 %v84, %v84
    %v102 = vmul.f32 %v85, %v85
    %v103 = vmul.f32 %v86, %v86
    %v104 = vld [vmem:[#allocation10] sm:$0xff]
    %v105 = vld [vmem:[#allocation10 + $0x8] sm:$0xff]
    %v106 = vld [vmem:[#allocation10 + $0x10] sm:$0xff]
    %v107 = vld [vmem:[#allocation10 + $0x18] sm:$0xff]
    %v108 = vld [vmem:[#allocation10 + $0x20] sm:$0xff]
    %v109 = vld [vmem:[#allocation10 + $0x28] sm:$0xff]
    %v110 = vld [vmem:[#allocation10 + $0x30] sm:$0xff]
    %v111 = vld [vmem:[#allocation10 + $0x38] sm:$0xff]
    %s112 = scalar_lea.vmem [#allocation10], 64
    %v113 = vld [vmem:[%s112] sm:$0xff]
    %v114 = vld [vmem:[%s112 + $0x8] sm:$0xff]
    %v115 = vld [vmem:[%s112 + $0x10] sm:$0xff]
    %v116 = vld [vmem:[%s112 + $0x18] sm:$0xff]
    %v117 = vld [vmem:[%s112 + $0x20] sm:$0xff]
    %v118 = vld [vmem:[%s112 + $0x28] sm:$0xff]
    %v119 = vld [vmem:[%s112 + $0x30] sm:$0xff]
    %v120 = vld [vmem:[%s112 + $0x38] sm:$0xff]
    %s121 = scalar_lea.vmem [#allocation10], 128
    %v122 = vld [vmem:[%s121] sm:$0xff]
    %v123 = vld [vmem:[%s121 + $0x8] sm:$0xff]
    %v124 = vld [vmem:[%s121 + $0x10] sm:$0xff]
    %v125 = vld [vmem:[%s121 + $0x18] sm:$0xff]
    %v126 = vld [vmem:[%s121 + $0x20] sm:$0xff]
    %v127 = vld [vmem:[%s121 + $0x28] sm:$0xff]
    %v128 = vld [vmem:[%s121 + $0x30] sm:$0xff]
    %v129 = vld [vmem:[%s121 + $0x38] sm:$0xff]
    %s130 = scalar_lea.vmem [#allocation10], 192
    %v131 = vld [vmem:[%s130] sm:$0xff]
    %v132 = vld [vmem:[%s130 + $0x8] sm:$0xff]
    %v133 = vld [vmem:[%s130 + $0x10] sm:$0xff]
    %v134 = vld [vmem:[%s130 + $0x18] sm:$0xff]
    %v135 = vld [vmem:[%s130 + $0x20] sm:$0xff]
    %v136 = vld [vmem:[%s130 + $0x28] sm:$0xff]
    %v137 = vld [vmem:[%s130 + $0x30] sm:$0xff]
    %v138 = vld [vmem:[%s130 + $0x38] sm:$0xff]
    %s139 = sld [smem:[#allocation3]]
    %s140 = ssub.f32 1.0, %s139
    %v141 = vsub.f32 %v122, %v113
    %v142 = vsub.f32 %v123, %v114
    %v143 = vsub.f32 %v124, %v115
    %v144 = vsub.f32 %v125, %v116
    %v145 = vsub.f32 %v126, %v117
    %v146 = vsub.f32 %v127, %v118
    %v147 = vsub.f32 %v128, %v119
    %v148 = vsub.f32 %v129, %v120
    %v149 = vsub.f32 %v131, %v104
    %v150 = vsub.f32 %v132, %v105
    %v151 = vsub.f32 %v133, %v106
    %v152 = vsub.f32 %v134, %v107
    %v153 = vsub.f32 %v135, %v108
    %v154 = vsub.f32 %v136, %v109
    %v155 = vsub.f32 %v137, %v110
    %v156 = vsub.f32 %v138, %v111
    %v157 = vmul.f32 %v149, 3.0
    %v158 = vmul.f32 %v150, 3.0
    %v159 = vmul.f32 %v151, 3.0
    %v160 = vmul.f32 %v152, 3.0
    %v161 = vmul.f32 %v153, 3.0
    %v162 = vmul.f32 %v154, 3.0
    %v163 = vmul.f32 %v155, 3.0
    %v164 = vmul.f32 %v156, 3.0
    %v165 = vadd.f32 %v141, %v157
    %v166 = vadd.f32 %v142, %v158
    %v167 = vadd.f32 %v143, %v159
    %v168 = vadd.f32 %v144, %v160
    %v169 = vadd.f32 %v145, %v161
    %v170 = vadd.f32 %v146, %v162
    %v171 = vadd.f32 %v147, %v163
    %v172 = vadd.f32 %v148, %v164
    %v173 = vmul.f32 %v79, %v165
    %v174 = vmul.f32 %v80, %v166
    %v175 = vmul.f32 %v81, %v167
    %v176 = vmul.f32 %v82, %v168
    %v177 = vmul.f32 %v83, %v169
    %v178 = vmul.f32 %v84, %v170
    %v179 = vmul.f32 %v85, %v171
    %v180 = vmul.f32 %v86, %v172
    %v181 = vrot.slane %v173, 4
    %v182 = vadd.f32 %v173, %v181
    %v183 = vrot.slane %v182, 2
    %v184 = vadd.f32 %v182, %v183
    %v185 = vrot.slane %v184, 1
    %v186 = vadd.f32 %v184, %v185
    %v187 = vrot.slane %v174, 4
    %v188 = vadd.f32 %v174, %v187
    %v189 = vrot.slane %v188, 2
    %v190 = vadd.f32 %v188, %v189
    %v191 = vrot.slane %v190, 1
    %v192 = vadd.f32 %v190, %v191
    %v193 = vrot.slane %v175, 4
    %v194 = vadd.f32 %v175, %v193
    %v195 = vrot.slane %v194, 2
    %v196 = vadd.f32 %v194, %v195
    %v197 = vrot.slane %v196, 1
    %v198 = vadd.f32 %v196, %v197
    %v199 = vrot.slane %v176, 4
    %v200 = vadd.f32 %v176, %v199
    %v201 = vrot.slane %v200, 2
    %v202 = vadd.f32 %v200, %v201
    %v203 = vrot.slane %v202, 1
    %v204 = vadd.f32 %v202, %v203
    %v205 = vrot.slane %v177, 4
    %v206 = vadd.f32 %v177, %v205
    %v207 = vrot.slane %v206, 2
    %v208 = vadd.f32 %v206, %v207
    %v209 = vrot.slane %v208, 1
    %v210 = vadd.f32 %v208, %v209
    %v211 = vrot.slane %v178, 4
    %v212 = vadd.f32 %v178, %v211
    %v213 = vrot.slane %v212, 2
    %v214 = vadd.f32 %v212, %v213
    %v215 = vrot.slane %v214, 1
    %v216 = vadd.f32 %v214, %v215
    %v217 = vrot.slane %v179, 4
    %v218 = vadd.f32 %v179, %v217
    %v219 = vrot.slane %v218, 2
    %v220 = vadd.f32 %v218, %v219
    %v221 = vrot.slane %v220, 1
    %v222 = vadd.f32 %v220, %v221
    %v223 = vrot.slane %v180, 4
    %v224 = vadd.f32 %v180, %v223
    %v225 = vrot.slane %v224, 2
    %v226 = vadd.f32 %v224, %v225
    %v227 = vrot.slane %v226, 1
    %v228 = vadd.f32 %v226, %v227
    %v229 = vsub.f32 %v186, %v173
    %v230 = vsub.f32 %v192, %v174
    %v231 = vsub.f32 %v198, %v175
    %v232 = vsub.f32 %v204, %v176
    %v233 = vsub.f32 %v210, %v177
    %v234 = vsub.f32 %v216, %v178
    %v235 = vsub.f32 %v222, %v179
    %v236 = vsub.f32 %v228, %v180
    %v237 = vadd.f32 %v113, %v122
    %v238 = vadd.f32 %v114, %v123
    %v239 = vadd.f32 %v115, %v124
    %v240 = vadd.f32 %v116, %v125
    %v241 = vadd.f32 %v117, %v126
    %v242 = vadd.f32 %v118, %v127
    %v243 = vadd.f32 %v119, %v128
    %v244 = vadd.f32 %v120, %v129
    %v245 = vadd.f32 %v104, %v131
    %v246 = vadd.f32 %v105, %v132
    %v247 = vadd.f32 %v106, %v133
    %v248 = vadd.f32 %v107, %v134
    %v249 = vadd.f32 %v108, %v135
    %v250 = vadd.f32 %v109, %v136
    %v251 = vadd.f32 %v110, %v137
    %v252 = vadd.f32 %v111, %v138
    %v253 = vmul.f32 %v245, 9.0
    %v254 = vmul.f32 %v246, 9.0
    %v255 = vmul.f32 %v247, 9.0
    %v256 = vmul.f32 %v248, 9.0
    %v257 = vmul.f32 %v249, 9.0
    %v258 = vmul.f32 %v250, 9.0
    %v259 = vmul.f32 %v251, 9.0
    %v260 = vmul.f32 %v252, 9.0
    %v261 = vadd.f32 %v237, %v253
    %v262 = vadd.f32 %v238, %v254
    %v263 = vadd.f32 %v239, %v255
    %v264 = vadd.f32 %v240, %v256
    %v265 = vadd.f32 %v241, %v257
    %v266 = vadd.f32 %v242, %v258
    %v267 = vadd.f32 %v243, %v259
    %v268 = vadd.f32 %v244, %v260
    %v269 = vmul.f32 %v165, %v165
    %v270 = vmul.f32 %v166, %v166
    %v271 = vmul.f32 %v167, %v167
    %v272 = vmul.f32 %v168, %v168
    %v273 = vmul.f32 %v169, %v169
    %v274 = vmul.f32 %v170, %v170
    %v275 = vmul.f32 %v171, %v171
    %v276 = vmul.f32 %v172, %v172
    %v277 = vsub.f32 %v261, %v269
    %v278 = vsub.f32 %v262, %v270
    %v279 = vsub.f32 %v263, %v271
    %v280 = vsub.f32 %v264, %v272
    %v281 = vsub.f32 %v265, %v273
    %v282 = vsub.f32 %v266, %v274
    %v283 = vsub.f32 %v267, %v275
    %v284 = vsub.f32 %v268, %v276
    %v285 = vmul.f32 %v96, %v277
    %v286 = vmul.f32 %v97, %v278
    %v287 = vmul.f32 %v98, %v279
    %v288 = vmul.f32 %v99, %v280
    %v289 = vmul.f32 %v100, %v281
    %v290 = vmul.f32 %v101, %v282
    %v291 = vmul.f32 %v102, %v283
    %v292 = vmul.f32 %v103, %v284
    %v293 = vrot.slane %v285, 4
    %v294 = vadd.f32 %v285, %v293
    %v295 = vrot.slane %v294, 2
    %v296 = vadd.f32 %v294, %v295
    %v297 = vrot.slane %v296, 1
    %v298 = vadd.f32 %v296, %v297
    %v299 = vrot.slane %v286, 4
    %v300 = vadd.f32 %v286, %v299
    %v301 = vrot.slane %v300, 2
    %v302 = vadd.f32 %v300, %v301
    %v303 = vrot.slane %v302, 1
    %v304 = vadd.f32 %v302, %v303
    %v305 = vrot.slane %v287, 4
    %v306 = vadd.f32 %v287, %v305
    %v307 = vrot.slane %v306, 2
    %v308 = vadd.f32 %v306, %v307
    %v309 = vrot.slane %v308, 1
    %v310 = vadd.f32 %v308, %v309
    %v311 = vrot.slane %v288, 4
    %v312 = vadd.f32 %v288, %v311
    %v313 = vrot.slane %v312, 2
    %v314 = vadd.f32 %v312, %v313
    %v315 = vrot.slane %v314, 1
    %v316 = vadd.f32 %v314, %v315
    %v317 = vrot.slane %v289, 4
    %v318 = vadd.f32 %v289, %v317
    %v319 = vrot.slane %v318, 2
    %v320 = vadd.f32 %v318, %v319
    %v321 = vrot.slane %v320, 1
    %v322 = vadd.f32 %v320, %v321
    %v323 = vrot.slane %v290, 4
    %v324 = vadd.f32 %v290, %v323
    %v325 = vrot.slane %v324, 2
    %v326 = vadd.f32 %v324, %v325
    %v327 = vrot.slane %v326, 1
    %v328 = vadd.f32 %v326, %v327
    %v329 = vrot.slane %v291, 4
    %v330 = vadd.f32 %v291, %v329
    %v331 = vrot.slane %v330, 2
    %v332 = vadd.f32 %v330, %v331
    %v333 = vrot.slane %v332, 1
    %v334 = vadd.f32 %v332, %v333
    %v335 = vrot.slane %v292, 4
    %v336 = vadd.f32 %v292, %v335
    %v337 = vrot.slane %v336, 2
    %v338 = vadd.f32 %v336, %v337
    %v339 = vrot.slane %v338, 1
    %v340 = vadd.f32 %v338, %v339
    %v341 = vsub.f32 %v298, %v285
    %v342 = vsub.f32 %v304, %v286
    %v343 = vsub.f32 %v310, %v287
    %v344 = vsub.f32 %v316, %v288
    %v345 = vsub.f32 %v322, %v289
    %v346 = vsub.f32 %v328, %v290
    %v347 = vsub.f32 %v334, %v291
    %v348 = vsub.f32 %v340, %v292
    %v349 = vstv %s95
    %v350 = vadd.f32 %v341, %v349
    %v351 = vadd.f32 %v342, %v349
    %v352 = vadd.f32 %v343, %v349
    %v353 = vadd.f32 %v344, %v349
    %v354 = vadd.f32 %v345, %v349
    %v355 = vadd.f32 %v346, %v349
    %v356 = vadd.f32 %v347, %v349
    %v357 = vadd.f32 %v348, %v349
    %v358 = vrcp.pop %v350
    %v359 = vrcp.pop %v351
    %v360 = vrcp.pop %v352
    %v361 = vrcp.pop %v353
    %v362 = vrcp.pop %v354
    %v363 = vrcp.pop %v355
    %v364 = vrcp.pop %v356
    %v365 = vrcp.pop %v357
    %v366 = vmul.f32 %v350, %v358
    %v367 = vmul.f32 %v351, %v359
    %v368 = vmul.f32 %v352, %v360
    %v369 = vmul.f32 %v353, %v361
    %v370 = vmul.f32 %v354, %v362
    %v371 = vmul.f32 %v355, %v363
    %v372 = vmul.f32 %v356, %v364
    %v373 = vmul.f32 %v357, %v365
    %v374 = vsub.f32 2.0, %v366
    %v375 = vsub.f32 2.0, %v367
    %v376 = vsub.f32 2.0, %v368
    %v377 = vsub.f32 2.0, %v369
    %v378 = vsub.f32 2.0, %v370
    %v379 = vsub.f32 2.0, %v371
    %v380 = vsub.f32 2.0, %v372
    %v381 = vsub.f32 2.0, %v373
    %v382 = vmul.f32 %v358, %v374
    %v383 = vmul.f32 %v359, %v375
    %v384 = vmul.f32 %v360, %v376
    %v385 = vmul.f32 %v361, %v377
    %v386 = vmul.f32 %v362, %v378
    %v387 = vmul.f32 %v363, %v379
    %v388 = vmul.f32 %v364, %v380
    %v389 = vmul.f32 %v365, %v381
    %v398 = vlaneseq
    %v399 = vshrl.u32 %v398, 7
    %v400 = vsub.s32 0, %v399
    %v401 = vrot.slane %v87, %v400
    %v402 = vlaneseq
    %v403 = vshrl.u32 %v402, 7
    %v404 = vsub.s32 0, %v403
    %v405 = vrot.slane %v88, %v404
    %v406 = vlaneseq
    %v407 = vshrl.u32 %v406, 7
    %v408 = vsub.s32 0, %v407
    %v409 = vrot.slane %v89, %v408
    %v410 = vlaneseq
    %v411 = vshrl.u32 %v410, 7
    %v412 = vsub.s32 0, %v411
    %v413 = vrot.slane %v90, %v412
    %v414 = vlaneseq
    %v415 = vshrl.u32 %v414, 7
    %v416 = vsub.s32 0, %v415
    %v417 = vrot.slane %v91, %v416
    %v418 = vlaneseq
    %v419 = vshrl.u32 %v418, 7
    %v420 = vsub.s32 0, %v419
    %v421 = vrot.slane %v92, %v420
    %v422 = vlaneseq
    %v423 = vshrl.u32 %v422, 7
    %v424 = vsub.s32 0, %v423
    %v425 = vrot.slane %v93, %v424
    %v426 = vlaneseq
    %v427 = vshrl.u32 %v426, 7
    %v428 = vsub.s32 0, %v427
    %v429 = vrot.slane %v94, %v428
    %v438 = vsub.f32 %v401, %v229
    %v439 = vsub.f32 %v405, %v230
    %v440 = vsub.f32 %v409, %v231
    %v441 = vsub.f32 %v413, %v232
    %v442 = vsub.f32 %v417, %v233
    %v443 = vsub.f32 %v421, %v234
    %v444 = vsub.f32 %v425, %v235
    %v445 = vsub.f32 %v429, %v236
    %v446 = vmul.f32 %v79, %v438
    %v447 = vmul.f32 %v80, %v439
    %v448 = vmul.f32 %v81, %v440
    %v449 = vmul.f32 %v82, %v441
    %v450 = vmul.f32 %v83, %v442
    %v451 = vmul.f32 %v84, %v443
    %v452 = vmul.f32 %v85, %v444
    %v453 = vmul.f32 %v86, %v445
    %v454 = vmul.f32 %v446, 2.0
    %v455 = vmul.f32 %v447, 2.0
    %v456 = vmul.f32 %v448, 2.0
    %v457 = vmul.f32 %v449, 2.0
    %v458 = vmul.f32 %v450, 2.0
    %v459 = vmul.f32 %v451, 2.0
    %v460 = vmul.f32 %v452, 2.0
    %v461 = vmul.f32 %v453, 2.0
    %v462 = vmul.f32 %v454, %v382
    %v463 = vmul.f32 %v455, %v383
    %v464 = vmul.f32 %v456, %v384
    %v465 = vmul.f32 %v457, %v385
    %v466 = vmul.f32 %v458, %v386
    %v467 = vmul.f32 %v459, %v387
    %v468 = vmul.f32 %v460, %v388
    %v469 = vmul.f32 %v461, %v389
    %v470 = vmul.f32 %v96, 4.0
    %v471 = vmul.f32 %v97, 4.0
    %v472 = vmul.f32 %v98, 4.0
    %v473 = vmul.f32 %v99, 4.0
    %v474 = vmul.f32 %v100, 4.0
    %v475 = vmul.f32 %v101, 4.0
    %v476 = vmul.f32 %v102, 4.0
    %v477 = vmul.f32 %v103, 4.0
    %v478 = vmul.f32 %v470, %v382
    %v479 = vmul.f32 %v471, %v383
    %v480 = vmul.f32 %v472, %v384
    %v481 = vmul.f32 %v473, %v385
    %v482 = vmul.f32 %v474, %v386
    %v483 = vmul.f32 %v475, %v387
    %v484 = vmul.f32 %v476, %v388
    %v485 = vmul.f32 %v477, %v389
    %v486 = vadd.f32 %v462, %v463
    %v487 = vadd.f32 %v486, %v464
    %v488 = vadd.f32 %v487, %v465
    %v489 = vadd.f32 %v488, %v466
    %v490 = vadd.f32 %v489, %v467
    %v491 = vadd.f32 %v490, %v468
    %v492 = vadd.f32 %v491, %v469
    %v493 = vadd.f32 %v478, %v479
    %v494 = vadd.f32 %v493, %v480
    %v495 = vadd.f32 %v494, %v481
    %v496 = vadd.f32 %v495, %v482
    %v497 = vadd.f32 %v496, %v483
    %v498 = vadd.f32 %v497, %v484
    %v499 = vadd.f32 %v498, %v485
    %v500 = vsub.f32 %v492, %v462
    %v501 = vsub.f32 %v492, %v463
    %v502 = vsub.f32 %v492, %v464
    %v503 = vsub.f32 %v492, %v465
    %v504 = vsub.f32 %v492, %v466
    %v505 = vsub.f32 %v492, %v467
    %v506 = vsub.f32 %v492, %v468
    %v507 = vsub.f32 %v492, %v469
    %v508 = vsub.f32 %v499, %v478
    %v509 = vsub.f32 %v499, %v479
    %v510 = vsub.f32 %v499, %v480
    %v511 = vsub.f32 %v499, %v481
    %v512 = vsub.f32 %v499, %v482
    %v513 = vsub.f32 %v499, %v483
    %v514 = vsub.f32 %v499, %v484
    %v515 = vsub.f32 %v499, %v485
    %v516 = vadd.f32 %v500, %v508
    %v517 = vadd.f32 %v501, %v509
    %v518 = vadd.f32 %v502, %v510
    %v519 = vadd.f32 %v503, %v511
    %v520 = vadd.f32 %v504, %v512
    %v521 = vadd.f32 %v505, %v513
    %v522 = vadd.f32 %v506, %v514
    %v523 = vadd.f32 %v507, %v515
    %v524 = vadd.f32 %v516, %v500
    %v525 = vadd.f32 %v517, %v501
    %v526 = vadd.f32 %v518, %v502
    %v527 = vadd.f32 %v519, %v503
    %v528 = vadd.f32 %v520, %v504
    %v529 = vadd.f32 %v521, %v505
    %v530 = vadd.f32 %v522, %v506
    %v531 = vadd.f32 %v523, %v507
    %v532 = vmul.f32 %v500, 3.0
    %v533 = vmul.f32 %v501, 3.0
    %v534 = vmul.f32 %v502, 3.0
    %v535 = vmul.f32 %v503, 3.0
    %v536 = vmul.f32 %v504, 3.0
    %v537 = vmul.f32 %v505, 3.0
    %v538 = vmul.f32 %v506, 3.0
    %v539 = vmul.f32 %v507, 3.0
    %v540 = vmax.f32 %v516, %v524
    %v541 = vmax.f32 %v517, %v525
    %v542 = vmax.f32 %v518, %v526
    %v543 = vmax.f32 %v519, %v527
    %v544 = vmax.f32 %v520, %v528
    %v545 = vmax.f32 %v521, %v529
    %v546 = vmax.f32 %v522, %v530
    %v547 = vmax.f32 %v523, %v531
    %v548 = vmax.f32 %v532, 0.0
    %v549 = vmax.f32 %v533, 0.0
    %v550 = vmax.f32 %v534, 0.0
    %v551 = vmax.f32 %v535, 0.0
    %v552 = vmax.f32 %v536, 0.0
    %v553 = vmax.f32 %v537, 0.0
    %v554 = vmax.f32 %v538, 0.0
    %v555 = vmax.f32 %v539, 0.0
    %v556 = vmax.f32 %v540, %v548
    %v557 = vmax.f32 %v541, %v549
    %v558 = vmax.f32 %v542, %v550
    %v559 = vmax.f32 %v543, %v551
    %v560 = vmax.f32 %v544, %v552
    %v561 = vmax.f32 %v545, %v553
    %v562 = vmax.f32 %v546, %v554
    %v563 = vmax.f32 %v547, %v555
    %v564 = vsub.f32 0.0, %v556
    %v565 = vsub.f32 0.0, %v557
    %v566 = vsub.f32 0.0, %v558
    %v567 = vsub.f32 0.0, %v559
    %v568 = vsub.f32 0.0, %v560
    %v569 = vsub.f32 0.0, %v561
    %v570 = vsub.f32 0.0, %v562
    %v571 = vsub.f32 0.0, %v563
    %v572 = vmul.f32 %v564, 1.442695
    %v573 = vpow.pop %v572
    %v574 = vmul.f32 %v565, 1.442695
    %v575 = vpow.pop %v574
    %v576 = vmul.f32 %v566, 1.442695
    %v577 = vpow.pop %v576
    %v578 = vmul.f32 %v567, 1.442695
    %v579 = vpow.pop %v578
    %v580 = vmul.f32 %v568, 1.442695
    %v581 = vpow.pop %v580
    %v582 = vmul.f32 %v569, 1.442695
    %v583 = vpow.pop %v582
    %v584 = vmul.f32 %v570, 1.442695
    %v585 = vpow.pop %v584
    %v586 = vmul.f32 %v571, 1.442695
    %v587 = vpow.pop %v586
    %v588 = vsub.f32 %v516, %v556
    %v589 = vsub.f32 %v517, %v557
    %v590 = vsub.f32 %v518, %v558
    %v591 = vsub.f32 %v519, %v559
    %v592 = vsub.f32 %v520, %v560
    %v593 = vsub.f32 %v521, %v561
    %v594 = vsub.f32 %v522, %v562
    %v595 = vsub.f32 %v523, %v563
    %v596 = vmul.f32 %v588, 1.442695
    %v597 = vpow.pop %v596
    %v598 = vmul.f32 %v589, 1.442695
    %v599 = vpow.pop %v598
    %v600 = vmul.f32 %v590, 1.442695
    %v601 = vpow.pop %v600
    %v602 = vmul.f32 %v591, 1.442695
    %v603 = vpow.pop %v602
    %v604 = vmul.f32 %v592, 1.442695
    %v605 = vpow.pop %v604
    %v606 = vmul.f32 %v593, 1.442695
    %v607 = vpow.pop %v606
    %v608 = vmul.f32 %v594, 1.442695
    %v609 = vpow.pop %v608
    %v610 = vmul.f32 %v595, 1.442695
    %v611 = vpow.pop %v610
    %v612 = vsub.f32 %v524, %v556
    %v613 = vsub.f32 %v525, %v557
    %v614 = vsub.f32 %v526, %v558
    %v615 = vsub.f32 %v527, %v559
    %v616 = vsub.f32 %v528, %v560
    %v617 = vsub.f32 %v529, %v561
    %v618 = vsub.f32 %v530, %v562
    %v619 = vsub.f32 %v531, %v563
    %v620 = vmul.f32 %v612, 1.442695
    %v621 = vpow.pop %v620
    %v622 = vmul.f32 %v613, 1.442695
    %v623 = vpow.pop %v622
    %v624 = vmul.f32 %v614, 1.442695
    %v625 = vpow.pop %v624
    %v626 = vmul.f32 %v615, 1.442695
    %v627 = vpow.pop %v626
    %v628 = vmul.f32 %v616, 1.442695
    %v629 = vpow.pop %v628
    %v630 = vmul.f32 %v617, 1.442695
    %v631 = vpow.pop %v630
    %v632 = vmul.f32 %v618, 1.442695
    %v633 = vpow.pop %v632
    %v634 = vmul.f32 %v619, 1.442695
    %v635 = vpow.pop %v634
    %v636 = vsub.f32 %v532, %v556
    %v637 = vsub.f32 %v533, %v557
    %v638 = vsub.f32 %v534, %v558
    %v639 = vsub.f32 %v535, %v559
    %v640 = vsub.f32 %v536, %v560
    %v641 = vsub.f32 %v537, %v561
    %v642 = vsub.f32 %v538, %v562
    %v643 = vsub.f32 %v539, %v563
    %v644 = vmul.f32 %v636, 1.442695
    %v645 = vpow.pop %v644
    %v646 = vmul.f32 %v637, 1.442695
    %v647 = vpow.pop %v646
    %v648 = vmul.f32 %v638, 1.442695
    %v649 = vpow.pop %v648
    %v650 = vmul.f32 %v639, 1.442695
    %v651 = vpow.pop %v650
    %v652 = vmul.f32 %v640, 1.442695
    %v653 = vpow.pop %v652
    %v654 = vmul.f32 %v641, 1.442695
    %v655 = vpow.pop %v654
    %v656 = vmul.f32 %v642, 1.442695
    %v657 = vpow.pop %v656
    %v658 = vmul.f32 %v643, 1.442695
    %v659 = vpow.pop %v658
    %v660 = vadd.f32 %v573, %v597
    %v661 = vadd.f32 %v575, %v599
    %v662 = vadd.f32 %v577, %v601
    %v663 = vadd.f32 %v579, %v603
    %v664 = vadd.f32 %v581, %v605
    %v665 = vadd.f32 %v583, %v607
    %v666 = vadd.f32 %v585, %v609
    %v667 = vadd.f32 %v587, %v611
    %v668 = vadd.f32 %v660, %v621
    %v669 = vadd.f32 %v661, %v623
    %v670 = vadd.f32 %v662, %v625
    %v671 = vadd.f32 %v663, %v627
    %v672 = vadd.f32 %v664, %v629
    %v673 = vadd.f32 %v665, %v631
    %v674 = vadd.f32 %v666, %v633
    %v675 = vadd.f32 %v667, %v635
    %v676 = vadd.f32 %v668, %v645
    %v677 = vadd.f32 %v669, %v647
    %v678 = vadd.f32 %v670, %v649
    %v679 = vadd.f32 %v671, %v651
    %v680 = vadd.f32 %v672, %v653
    %v681 = vadd.f32 %v673, %v655
    %v682 = vadd.f32 %v674, %v657
    %v683 = vadd.f32 %v675, %v659
    %v684 = vrcp.pop %v676
    %v685 = vrcp.pop %v677
    %v686 = vrcp.pop %v678
    %v687 = vrcp.pop %v679
    %v688 = vrcp.pop %v680
    %v689 = vrcp.pop %v681
    %v690 = vrcp.pop %v682
    %v691 = vrcp.pop %v683
    %v692 = vmul.f32 %v676, %v684
    %v693 = vmul.f32 %v677, %v685
    %v694 = vmul.f32 %v678, %v686
    %v695 = vmul.f32 %v679, %v687
    %v696 = vmul.f32 %v680, %v688
    %v697 = vmul.f32 %v681, %v689
    %v698 = vmul.f32 %v682, %v690
    %v699 = vmul.f32 %v683, %v691
    %v700 = vsub.f32 2.0, %v692
    %v701 = vsub.f32 2.0, %v693
    %v702 = vsub.f32 2.0, %v694
    %v703 = vsub.f32 2.0, %v695
    %v704 = vsub.f32 2.0, %v696
    %v705 = vsub.f32 2.0, %v697
    %v706 = vsub.f32 2.0, %v698
    %v707 = vsub.f32 2.0, %v699
    %v708 = vmul.f32 %v684, %v700
    %v709 = vmul.f32 %v685, %v701
    %v710 = vmul.f32 %v686, %v702
    %v711 = vmul.f32 %v687, %v703
    %v712 = vmul.f32 %v688, %v704
    %v713 = vmul.f32 %v689, %v705
    %v714 = vmul.f32 %v690, %v706
    %v715 = vmul.f32 %v691, %v707
    %v716 = vstv %s140
    %v717 = vmul.f32 %v716, %v708
    %v718 = vmul.f32 %v716, %v709
    %v719 = vmul.f32 %v716, %v710
    %v720 = vmul.f32 %v716, %v711
    %v721 = vmul.f32 %v716, %v712
    %v722 = vmul.f32 %v716, %v713
    %v723 = vmul.f32 %v716, %v714
    %v724 = vmul.f32 %v716, %v715
    %v725 = vmul.f32 %v573, %v717
    %v726 = vmul.f32 %v575, %v718
    %v727 = vmul.f32 %v577, %v719
    %v728 = vmul.f32 %v579, %v720
    %v729 = vmul.f32 %v581, %v721
    %v730 = vmul.f32 %v583, %v722
    %v731 = vmul.f32 %v585, %v723
    %v732 = vmul.f32 %v587, %v724
    %v733 = vstv %s139
    %v734 = vmul.f32 %v733, %v104
    %v735 = vmul.f32 %v733, %v105
    %v736 = vmul.f32 %v733, %v106
    %v737 = vmul.f32 %v733, %v107
    %v738 = vmul.f32 %v733, %v108
    %v739 = vmul.f32 %v733, %v109
    %v740 = vmul.f32 %v733, %v110
    %v741 = vmul.f32 %v733, %v111
    %v742 = vadd.f32 %v725, %v734
    %v743 = vadd.f32 %v726, %v735
    %v744 = vadd.f32 %v727, %v736
    %v745 = vadd.f32 %v728, %v737
    %v746 = vadd.f32 %v729, %v738
    %v747 = vadd.f32 %v730, %v739
    %v748 = vadd.f32 %v731, %v740
    %v749 = vadd.f32 %v732, %v741
    %v750 = vmul.f32 %v597, %v717
    %v751 = vmul.f32 %v599, %v718
    %v752 = vmul.f32 %v601, %v719
    %v753 = vmul.f32 %v603, %v720
    %v754 = vmul.f32 %v605, %v721
    %v755 = vmul.f32 %v607, %v722
    %v756 = vmul.f32 %v609, %v723
    %v757 = vmul.f32 %v611, %v724
    %v758 = vmul.f32 %v733, %v113
    %v759 = vmul.f32 %v733, %v114
    %v760 = vmul.f32 %v733, %v115
    %v761 = vmul.f32 %v733, %v116
    %v762 = vmul.f32 %v733, %v117
    %v763 = vmul.f32 %v733, %v118
    %v764 = vmul.f32 %v733, %v119
    %v765 = vmul.f32 %v733, %v120
    %v766 = vadd.f32 %v750, %v758
    %v767 = vadd.f32 %v751, %v759
    %v768 = vadd.f32 %v752, %v760
    %v769 = vadd.f32 %v753, %v761
    %v770 = vadd.f32 %v754, %v762
    %v771 = vadd.f32 %v755, %v763
    %v772 = vadd.f32 %v756, %v764
    %v773 = vadd.f32 %v757, %v765
    %v774 = vmul.f32 %v621, %v717
    %v775 = vmul.f32 %v623, %v718
    %v776 = vmul.f32 %v625, %v719
    %v777 = vmul.f32 %v627, %v720
    %v778 = vmul.f32 %v629, %v721
    %v779 = vmul.f32 %v631, %v722
    %v780 = vmul.f32 %v633, %v723
    %v781 = vmul.f32 %v635, %v724
    %v782 = vmul.f32 %v733, %v122
    %v783 = vmul.f32 %v733, %v123
    %v784 = vmul.f32 %v733, %v124
    %v785 = vmul.f32 %v733, %v125
    %v786 = vmul.f32 %v733, %v126
    %v787 = vmul.f32 %v733, %v127
    %v788 = vmul.f32 %v733, %v128
    %v789 = vmul.f32 %v733, %v129
    %v790 = vadd.f32 %v774, %v782
    %v791 = vadd.f32 %v775, %v783
    %v792 = vadd.f32 %v776, %v784
    %v793 = vadd.f32 %v777, %v785
    %v794 = vadd.f32 %v778, %v786
    %v795 = vadd.f32 %v779, %v787
    %v796 = vadd.f32 %v780, %v788
    %v797 = vadd.f32 %v781, %v789
    %v798 = vmul.f32 %v645, %v717
    %v799 = vmul.f32 %v647, %v718
    %v800 = vmul.f32 %v649, %v719
    %v801 = vmul.f32 %v651, %v720
    %v802 = vmul.f32 %v653, %v721
    %v803 = vmul.f32 %v655, %v722
    %v804 = vmul.f32 %v657, %v723
    %v805 = vmul.f32 %v659, %v724
    %v806 = vmul.f32 %v733, %v131
    %v807 = vmul.f32 %v733, %v132
    %v808 = vmul.f32 %v733, %v133
    %v809 = vmul.f32 %v733, %v134
    %v810 = vmul.f32 %v733, %v135
    %v811 = vmul.f32 %v733, %v136
    %v812 = vmul.f32 %v733, %v137
    %v813 = vmul.f32 %v733, %v138
    %v814 = vadd.f32 %v798, %v806
    %v815 = vadd.f32 %v799, %v807
    %v816 = vadd.f32 %v800, %v808
    %v817 = vadd.f32 %v801, %v809
    %v818 = vadd.f32 %v802, %v810
    %v819 = vadd.f32 %v803, %v811
    %v820 = vadd.f32 %v804, %v812
    %v821 = vadd.f32 %v805, %v813
    %s822 = sld [smem:[#allocation3 + $0x1]]
    %s823 = ssub.f32 1.0, %s822
    %v824 = vsub.f32 %v790, %v766
    %v825 = vsub.f32 %v791, %v767
    %v826 = vsub.f32 %v792, %v768
    %v827 = vsub.f32 %v793, %v769
    %v828 = vsub.f32 %v794, %v770
    %v829 = vsub.f32 %v795, %v771
    %v830 = vsub.f32 %v796, %v772
    %v831 = vsub.f32 %v797, %v773
    %v832 = vsub.f32 %v814, %v742
    %v833 = vsub.f32 %v815, %v743
    %v834 = vsub.f32 %v816, %v744
    %v835 = vsub.f32 %v817, %v745
    %v836 = vsub.f32 %v818, %v746
    %v837 = vsub.f32 %v819, %v747
    %v838 = vsub.f32 %v820, %v748
    %v839 = vsub.f32 %v821, %v749
    %v840 = vmul.f32 %v832, 3.0
    %v841 = vmul.f32 %v833, 3.0
    %v842 = vmul.f32 %v834, 3.0
    %v843 = vmul.f32 %v835, 3.0
    %v844 = vmul.f32 %v836, 3.0
    %v845 = vmul.f32 %v837, 3.0
    %v846 = vmul.f32 %v838, 3.0
    %v847 = vmul.f32 %v839, 3.0
    %v848 = vadd.f32 %v824, %v840
    %v849 = vadd.f32 %v825, %v841
    %v850 = vadd.f32 %v826, %v842
    %v851 = vadd.f32 %v827, %v843
    %v852 = vadd.f32 %v828, %v844
    %v853 = vadd.f32 %v829, %v845
    %v854 = vadd.f32 %v830, %v846
    %v855 = vadd.f32 %v831, %v847
    %v856 = vmul.f32 %v79, %v848
    %v857 = vmul.f32 %v80, %v849
    %v858 = vmul.f32 %v81, %v850
    %v859 = vmul.f32 %v82, %v851
    %v860 = vmul.f32 %v83, %v852
    %v861 = vmul.f32 %v84, %v853
    %v862 = vmul.f32 %v85, %v854
    %v863 = vmul.f32 %v86, %v855
    %v864 = vrot.slane %v856, 4
    %v865 = vadd.f32 %v856, %v864
    %v866 = vrot.slane %v865, 2
    %v867 = vadd.f32 %v865, %v866
    %v868 = vrot.slane %v867, 1
    %v869 = vadd.f32 %v867, %v868
    %v870 = vrot.slane %v857, 4
    %v871 = vadd.f32 %v857, %v870
    %v872 = vrot.slane %v871, 2
    %v873 = vadd.f32 %v871, %v872
    %v874 = vrot.slane %v873, 1
    %v875 = vadd.f32 %v873, %v874
    %v876 = vrot.slane %v858, 4
    %v877 = vadd.f32 %v858, %v876
    %v878 = vrot.slane %v877, 2
    %v879 = vadd.f32 %v877, %v878
    %v880 = vrot.slane %v879, 1
    %v881 = vadd.f32 %v879, %v880
    %v882 = vrot.slane %v859, 4
    %v883 = vadd.f32 %v859, %v882
    %v884 = vrot.slane %v883, 2
    %v885 = vadd.f32 %v883, %v884
    %v886 = vrot.slane %v885, 1
    %v887 = vadd.f32 %v885, %v886
    %v888 = vrot.slane %v860, 4
    %v889 = vadd.f32 %v860, %v888
    %v890 = vrot.slane %v889, 2
    %v891 = vadd.f32 %v889, %v890
    %v892 = vrot.slane %v891, 1
    %v893 = vadd.f32 %v891, %v892
    %v894 = vrot.slane %v861, 4
    %v895 = vadd.f32 %v861, %v894
    %v896 = vrot.slane %v895, 2
    %v897 = vadd.f32 %v895, %v896
    %v898 = vrot.slane %v897, 1
    %v899 = vadd.f32 %v897, %v898
    %v900 = vrot.slane %v862, 4
    %v901 = vadd.f32 %v862, %v900
    %v902 = vrot.slane %v901, 2
    %v903 = vadd.f32 %v901, %v902
    %v904 = vrot.slane %v903, 1
    %v905 = vadd.f32 %v903, %v904
    %v906 = vrot.slane %v863, 4
    %v907 = vadd.f32 %v863, %v906
    %v908 = vrot.slane %v907, 2
    %v909 = vadd.f32 %v907, %v908
    %v910 = vrot.slane %v909, 1
    %v911 = vadd.f32 %v909, %v910
    %v912 = vsub.f32 %v869, %v856
    %v913 = vsub.f32 %v875, %v857
    %v914 = vsub.f32 %v881, %v858
    %v915 = vsub.f32 %v887, %v859
    %v916 = vsub.f32 %v893, %v860
    %v917 = vsub.f32 %v899, %v861
    %v918 = vsub.f32 %v905, %v862
    %v919 = vsub.f32 %v911, %v863
    %v920 = vadd.f32 %v766, %v790
    %v921 = vadd.f32 %v767, %v791
    %v922 = vadd.f32 %v768, %v792
    %v923 = vadd.f32 %v769, %v793
    %v924 = vadd.f32 %v770, %v794
    %v925 = vadd.f32 %v771, %v795
    %v926 = vadd.f32 %v772, %v796
    %v927 = vadd.f32 %v773, %v797
    %v928 = vadd.f32 %v742, %v814
    %v929 = vadd.f32 %v743, %v815
    %v930 = vadd.f32 %v744, %v816
    %v931 = vadd.f32 %v745, %v817
    %v932 = vadd.f32 %v746, %v818
    %v933 = vadd.f32 %v747, %v819
    %v934 = vadd.f32 %v748, %v820
    %v935 = vadd.f32 %v749, %v821
    %v936 = vmul.f32 %v928, 9.0
    %v937 = vmul.f32 %v929, 9.0
    %v938 = vmul.f32 %v930, 9.0
    %v939 = vmul.f32 %v931, 9.0
    %v940 = vmul.f32 %v932, 9.0
    %v941 = vmul.f32 %v933, 9.0
    %v942 = vmul.f32 %v934, 9.0
    %v943 = vmul.f32 %v935, 9.0
    %v944 = vadd.f32 %v920, %v936
    %v945 = vadd.f32 %v921, %v937
    %v946 = vadd.f32 %v922, %v938
    %v947 = vadd.f32 %v923, %v939
    %v948 = vadd.f32 %v924, %v940
    %v949 = vadd.f32 %v925, %v941
    %v950 = vadd.f32 %v926, %v942
    %v951 = vadd.f32 %v927, %v943
    %v952 = vmul.f32 %v848, %v848
    %v953 = vmul.f32 %v849, %v849
    %v954 = vmul.f32 %v850, %v850
    %v955 = vmul.f32 %v851, %v851
    %v956 = vmul.f32 %v852, %v852
    %v957 = vmul.f32 %v853, %v853
    %v958 = vmul.f32 %v854, %v854
    %v959 = vmul.f32 %v855, %v855
    %v960 = vsub.f32 %v944, %v952
    %v961 = vsub.f32 %v945, %v953
    %v962 = vsub.f32 %v946, %v954
    %v963 = vsub.f32 %v947, %v955
    %v964 = vsub.f32 %v948, %v956
    %v965 = vsub.f32 %v949, %v957
    %v966 = vsub.f32 %v950, %v958
    %v967 = vsub.f32 %v951, %v959
    %v968 = vmul.f32 %v96, %v960
    %v969 = vmul.f32 %v97, %v961
    %v970 = vmul.f32 %v98, %v962
    %v971 = vmul.f32 %v99, %v963
    %v972 = vmul.f32 %v100, %v964
    %v973 = vmul.f32 %v101, %v965
    %v974 = vmul.f32 %v102, %v966
    %v975 = vmul.f32 %v103, %v967
    %v976 = vrot.slane %v968, 4
    %v977 = vadd.f32 %v968, %v976
    %v978 = vrot.slane %v977, 2
    %v979 = vadd.f32 %v977, %v978
    %v980 = vrot.slane %v979, 1
    %v981 = vadd.f32 %v979, %v980
    %v982 = vrot.slane %v969, 4
    %v983 = vadd.f32 %v969, %v982
    %v984 = vrot.slane %v983, 2
    %v985 = vadd.f32 %v983, %v984
    %v986 = vrot.slane %v985, 1
    %v987 = vadd.f32 %v985, %v986
    %v988 = vrot.slane %v970, 4
    %v989 = vadd.f32 %v970, %v988
    %v990 = vrot.slane %v989, 2
    %v991 = vadd.f32 %v989, %v990
    %v992 = vrot.slane %v991, 1
    %v993 = vadd.f32 %v991, %v992
    %v994 = vrot.slane %v971, 4
    %v995 = vadd.f32 %v971, %v994
    %v996 = vrot.slane %v995, 2
    %v997 = vadd.f32 %v995, %v996
    %v998 = vrot.slane %v997, 1
    %v999 = vadd.f32 %v997, %v998
    %v1000 = vrot.slane %v972, 4
    %v1001 = vadd.f32 %v972, %v1000
    %v1002 = vrot.slane %v1001, 2
    %v1003 = vadd.f32 %v1001, %v1002
    %v1004 = vrot.slane %v1003, 1
    %v1005 = vadd.f32 %v1003, %v1004
    %v1006 = vrot.slane %v973, 4
    %v1007 = vadd.f32 %v973, %v1006
    %v1008 = vrot.slane %v1007, 2
    %v1009 = vadd.f32 %v1007, %v1008
    %v1010 = vrot.slane %v1009, 1
    %v1011 = vadd.f32 %v1009, %v1010
    %v1012 = vrot.slane %v974, 4
    %v1013 = vadd.f32 %v974, %v1012
    %v1014 = vrot.slane %v1013, 2
    %v1015 = vadd.f32 %v1013, %v1014
    %v1016 = vrot.slane %v1015, 1
    %v1017 = vadd.f32 %v1015, %v1016
    %v1018 = vrot.slane %v975, 4
    %v1019 = vadd.f32 %v975, %v1018
    %v1020 = vrot.slane %v1019, 2
    %v1021 = vadd.f32 %v1019, %v1020
    %v1022 = vrot.slane %v1021, 1
    %v1023 = vadd.f32 %v1021, %v1022
    %v1024 = vsub.f32 %v981, %v968
    %v1025 = vsub.f32 %v987, %v969
    %v1026 = vsub.f32 %v993, %v970
    %v1027 = vsub.f32 %v999, %v971
    %v1028 = vsub.f32 %v1005, %v972
    %v1029 = vsub.f32 %v1011, %v973
    %v1030 = vsub.f32 %v1017, %v974
    %v1031 = vsub.f32 %v1023, %v975
    %v1032 = vadd.f32 %v1024, %v349
    %v1033 = vadd.f32 %v1025, %v349
    %v1034 = vadd.f32 %v1026, %v349
    %v1035 = vadd.f32 %v1027, %v349
    %v1036 = vadd.f32 %v1028, %v349
    %v1037 = vadd.f32 %v1029, %v349
    %v1038 = vadd.f32 %v1030, %v349
    %v1039 = vadd.f32 %v1031, %v349
    %v1040 = vrcp.pop %v1032
    %v1041 = vrcp.pop %v1033
    %v1042 = vrcp.pop %v1034
    %v1043 = vrcp.pop %v1035
    %v1044 = vrcp.pop %v1036
    %v1045 = vrcp.pop %v1037
    %v1046 = vrcp.pop %v1038
    %v1047 = vrcp.pop %v1039
    %v1048 = vmul.f32 %v1032, %v1040
    %v1049 = vmul.f32 %v1033, %v1041
    %v1050 = vmul.f32 %v1034, %v1042
    %v1051 = vmul.f32 %v1035, %v1043
    %v1052 = vmul.f32 %v1036, %v1044
    %v1053 = vmul.f32 %v1037, %v1045
    %v1054 = vmul.f32 %v1038, %v1046
    %v1055 = vmul.f32 %v1039, %v1047
    %v1056 = vsub.f32 2.0, %v1048
    %v1057 = vsub.f32 2.0, %v1049
    %v1058 = vsub.f32 2.0, %v1050
    %v1059 = vsub.f32 2.0, %v1051
    %v1060 = vsub.f32 2.0, %v1052
    %v1061 = vsub.f32 2.0, %v1053
    %v1062 = vsub.f32 2.0, %v1054
    %v1063 = vsub.f32 2.0, %v1055
    %v1064 = vmul.f32 %v1040, %v1056
    %v1065 = vmul.f32 %v1041, %v1057
    %v1066 = vmul.f32 %v1042, %v1058
    %v1067 = vmul.f32 %v1043, %v1059
    %v1068 = vmul.f32 %v1044, %v1060
    %v1069 = vmul.f32 %v1045, %v1061
    %v1070 = vmul.f32 %v1046, %v1062
    %v1071 = vmul.f32 %v1047, %v1063
    %v1072 = vsub.f32 %v401, %v912
    %v1073 = vsub.f32 %v405, %v913
    %v1074 = vsub.f32 %v409, %v914
    %v1075 = vsub.f32 %v413, %v915
    %v1076 = vsub.f32 %v417, %v916
    %v1077 = vsub.f32 %v421, %v917
    %v1078 = vsub.f32 %v425, %v918
    %v1079 = vsub.f32 %v429, %v919
    %v1080 = vmul.f32 %v79, %v1072
    %v1081 = vmul.f32 %v80, %v1073
    %v1082 = vmul.f32 %v81, %v1074
    %v1083 = vmul.f32 %v82, %v1075
    %v1084 = vmul.f32 %v83, %v1076
    %v1085 = vmul.f32 %v84, %v1077
    %v1086 = vmul.f32 %v85, %v1078
    %v1087 = vmul.f32 %v86, %v1079
    %v1088 = vmul.f32 %v1080, 2.0
    %v1089 = vmul.f32 %v1081, 2.0
    %v1090 = vmul.f32 %v1082, 2.0
    %v1091 = vmul.f32 %v1083, 2.0
    %v1092 = vmul.f32 %v1084, 2.0
    %v1093 = vmul.f32 %v1085, 2.0
    %v1094 = vmul.f32 %v1086, 2.0
    %v1095 = vmul.f32 %v1087, 2.0
    %v1096 = vmul.f32 %v1088, %v1064
    %v1097 = vmul.f32 %v1089, %v1065
    %v1098 = vmul.f32 %v1090, %v1066
    %v1099 = vmul.f32 %v1091, %v1067
    %v1100 = vmul.f32 %v1092, %v1068
    %v1101 = vmul.f32 %v1093, %v1069
    %v1102 = vmul.f32 %v1094, %v1070
    %v1103 = vmul.f32 %v1095, %v1071
    %v1104 = vmul.f32 %v470, %v1064
    %v1105 = vmul.f32 %v471, %v1065
    %v1106 = vmul.f32 %v472, %v1066
    %v1107 = vmul.f32 %v473, %v1067
    %v1108 = vmul.f32 %v474, %v1068
    %v1109 = vmul.f32 %v475, %v1069
    %v1110 = vmul.f32 %v476, %v1070
    %v1111 = vmul.f32 %v477, %v1071
    %v1112 = vadd.f32 %v1096, %v1097
    %v1113 = vadd.f32 %v1112, %v1098
    %v1114 = vadd.f32 %v1113, %v1099
    %v1115 = vadd.f32 %v1114, %v1100
    %v1116 = vadd.f32 %v1115, %v1101
    %v1117 = vadd.f32 %v1116, %v1102
    %v1118 = vadd.f32 %v1117, %v1103
    %v1119 = vadd.f32 %v1104, %v1105
    %v1120 = vadd.f32 %v1119, %v1106
    %v1121 = vadd.f32 %v1120, %v1107
    %v1122 = vadd.f32 %v1121, %v1108
    %v1123 = vadd.f32 %v1122, %v1109
    %v1124 = vadd.f32 %v1123, %v1110
    %v1125 = vadd.f32 %v1124, %v1111
    %v1126 = vsub.f32 %v1118, %v1096
    %v1127 = vsub.f32 %v1118, %v1097
    %v1128 = vsub.f32 %v1118, %v1098
    %v1129 = vsub.f32 %v1118, %v1099
    %v1130 = vsub.f32 %v1118, %v1100
    %v1131 = vsub.f32 %v1118, %v1101
    %v1132 = vsub.f32 %v1118, %v1102
    %v1133 = vsub.f32 %v1118, %v1103
    %v1134 = vsub.f32 %v1125, %v1104
    %v1135 = vsub.f32 %v1125, %v1105
    %v1136 = vsub.f32 %v1125, %v1106
    %v1137 = vsub.f32 %v1125, %v1107
    %v1138 = vsub.f32 %v1125, %v1108
    %v1139 = vsub.f32 %v1125, %v1109
    %v1140 = vsub.f32 %v1125, %v1110
    %v1141 = vsub.f32 %v1125, %v1111
    %v1142 = vadd.f32 %v1126, %v1134
    %v1143 = vadd.f32 %v1127, %v1135
    %v1144 = vadd.f32 %v1128, %v1136
    %v1145 = vadd.f32 %v1129, %v1137
    %v1146 = vadd.f32 %v1130, %v1138
    %v1147 = vadd.f32 %v1131, %v1139
    %v1148 = vadd.f32 %v1132, %v1140
    %v1149 = vadd.f32 %v1133, %v1141
    %v1150 = vadd.f32 %v1142, %v1126
    %v1151 = vadd.f32 %v1143, %v1127
    %v1152 = vadd.f32 %v1144, %v1128
    %v1153 = vadd.f32 %v1145, %v1129
    %v1154 = vadd.f32 %v1146, %v1130
    %v1155 = vadd.f32 %v1147, %v1131
    %v1156 = vadd.f32 %v1148, %v1132
    %v1157 = vadd.f32 %v1149, %v1133
    %v1158 = vmul.f32 %v1126, 3.0
    %v1159 = vmul.f32 %v1127, 3.0
    %v1160 = vmul.f32 %v1128, 3.0
    %v1161 = vmul.f32 %v1129, 3.0
    %v1162 = vmul.f32 %v1130, 3.0
    %v1163 = vmul.f32 %v1131, 3.0
    %v1164 = vmul.f32 %v1132, 3.0
    %v1165 = vmul.f32 %v1133, 3.0
    %v1166 = vmax.f32 %v1142, %v1150
    %v1167 = vmax.f32 %v1143, %v1151
    %v1168 = vmax.f32 %v1144, %v1152
    %v1169 = vmax.f32 %v1145, %v1153
    %v1170 = vmax.f32 %v1146, %v1154
    %v1171 = vmax.f32 %v1147, %v1155
    %v1172 = vmax.f32 %v1148, %v1156
    %v1173 = vmax.f32 %v1149, %v1157
    %v1174 = vmax.f32 %v1158, 0.0
    %v1175 = vmax.f32 %v1159, 0.0
    %v1176 = vmax.f32 %v1160, 0.0
    %v1177 = vmax.f32 %v1161, 0.0
    %v1178 = vmax.f32 %v1162, 0.0
    %v1179 = vmax.f32 %v1163, 0.0
    %v1180 = vmax.f32 %v1164, 0.0
    %v1181 = vmax.f32 %v1165, 0.0
    %v1182 = vmax.f32 %v1166, %v1174
    %v1183 = vmax.f32 %v1167, %v1175
    %v1184 = vmax.f32 %v1168, %v1176
    %v1185 = vmax.f32 %v1169, %v1177
    %v1186 = vmax.f32 %v1170, %v1178
    %v1187 = vmax.f32 %v1171, %v1179
    %v1188 = vmax.f32 %v1172, %v1180
    %v1189 = vmax.f32 %v1173, %v1181
    %v1190 = vsub.f32 0.0, %v1182
    %v1191 = vsub.f32 0.0, %v1183
    %v1192 = vsub.f32 0.0, %v1184
    %v1193 = vsub.f32 0.0, %v1185
    %v1194 = vsub.f32 0.0, %v1186
    %v1195 = vsub.f32 0.0, %v1187
    %v1196 = vsub.f32 0.0, %v1188
    %v1197 = vsub.f32 0.0, %v1189
    %v1198 = vmul.f32 %v1190, 1.442695
    %v1199 = vpow.pop %v1198
    %v1200 = vmul.f32 %v1191, 1.442695
    %v1201 = vpow.pop %v1200
    %v1202 = vmul.f32 %v1192, 1.442695
    %v1203 = vpow.pop %v1202
    %v1204 = vmul.f32 %v1193, 1.442695
    %v1205 = vpow.pop %v1204
    %v1206 = vmul.f32 %v1194, 1.442695
    %v1207 = vpow.pop %v1206
    %v1208 = vmul.f32 %v1195, 1.442695
    %v1209 = vpow.pop %v1208
    %v1210 = vmul.f32 %v1196, 1.442695
    %v1211 = vpow.pop %v1210
    %v1212 = vmul.f32 %v1197, 1.442695
    %v1213 = vpow.pop %v1212
    %v1214 = vsub.f32 %v1142, %v1182
    %v1215 = vsub.f32 %v1143, %v1183
    %v1216 = vsub.f32 %v1144, %v1184
    %v1217 = vsub.f32 %v1145, %v1185
    %v1218 = vsub.f32 %v1146, %v1186
    %v1219 = vsub.f32 %v1147, %v1187
    %v1220 = vsub.f32 %v1148, %v1188
    %v1221 = vsub.f32 %v1149, %v1189
    %v1222 = vmul.f32 %v1214, 1.442695
    %v1223 = vpow.pop %v1222
    %v1224 = vmul.f32 %v1215, 1.442695
    %v1225 = vpow.pop %v1224
    %v1226 = vmul.f32 %v1216, 1.442695
    %v1227 = vpow.pop %v1226
    %v1228 = vmul.f32 %v1217, 1.442695
    %v1229 = vpow.pop %v1228
    %v1230 = vmul.f32 %v1218, 1.442695
    %v1231 = vpow.pop %v1230
    %v1232 = vmul.f32 %v1219, 1.442695
    %v1233 = vpow.pop %v1232
    %v1234 = vmul.f32 %v1220, 1.442695
    %v1235 = vpow.pop %v1234
    %v1236 = vmul.f32 %v1221, 1.442695
    %v1237 = vpow.pop %v1236
    %v1238 = vsub.f32 %v1150, %v1182
    %v1239 = vsub.f32 %v1151, %v1183
    %v1240 = vsub.f32 %v1152, %v1184
    %v1241 = vsub.f32 %v1153, %v1185
    %v1242 = vsub.f32 %v1154, %v1186
    %v1243 = vsub.f32 %v1155, %v1187
    %v1244 = vsub.f32 %v1156, %v1188
    %v1245 = vsub.f32 %v1157, %v1189
    %v1246 = vmul.f32 %v1238, 1.442695
    %v1247 = vpow.pop %v1246
    %v1248 = vmul.f32 %v1239, 1.442695
    %v1249 = vpow.pop %v1248
    %v1250 = vmul.f32 %v1240, 1.442695
    %v1251 = vpow.pop %v1250
    %v1252 = vmul.f32 %v1241, 1.442695
    %v1253 = vpow.pop %v1252
    %v1254 = vmul.f32 %v1242, 1.442695
    %v1255 = vpow.pop %v1254
    %v1256 = vmul.f32 %v1243, 1.442695
    %v1257 = vpow.pop %v1256
    %v1258 = vmul.f32 %v1244, 1.442695
    %v1259 = vpow.pop %v1258
    %v1260 = vmul.f32 %v1245, 1.442695
    %v1261 = vpow.pop %v1260
    %v1262 = vsub.f32 %v1158, %v1182
    %v1263 = vsub.f32 %v1159, %v1183
    %v1264 = vsub.f32 %v1160, %v1184
    %v1265 = vsub.f32 %v1161, %v1185
    %v1266 = vsub.f32 %v1162, %v1186
    %v1267 = vsub.f32 %v1163, %v1187
    %v1268 = vsub.f32 %v1164, %v1188
    %v1269 = vsub.f32 %v1165, %v1189
    %v1270 = vmul.f32 %v1262, 1.442695
    %v1271 = vpow.pop %v1270
    %v1272 = vmul.f32 %v1263, 1.442695
    %v1273 = vpow.pop %v1272
    %v1274 = vmul.f32 %v1264, 1.442695
    %v1275 = vpow.pop %v1274
    %v1276 = vmul.f32 %v1265, 1.442695
    %v1277 = vpow.pop %v1276
    %v1278 = vmul.f32 %v1266, 1.442695
    %v1279 = vpow.pop %v1278
    %v1280 = vmul.f32 %v1267, 1.442695
    %v1281 = vpow.pop %v1280
    %v1282 = vmul.f32 %v1268, 1.442695
    %v1283 = vpow.pop %v1282
    %v1284 = vmul.f32 %v1269, 1.442695
    %v1285 = vpow.pop %v1284
    %v1286 = vadd.f32 %v1199, %v1223
    %v1287 = vadd.f32 %v1201, %v1225
    %v1288 = vadd.f32 %v1203, %v1227
    %v1289 = vadd.f32 %v1205, %v1229
    %v1290 = vadd.f32 %v1207, %v1231
    %v1291 = vadd.f32 %v1209, %v1233
    %v1292 = vadd.f32 %v1211, %v1235
    %v1293 = vadd.f32 %v1213, %v1237
    %v1294 = vadd.f32 %v1286, %v1247
    %v1295 = vadd.f32 %v1287, %v1249
    %v1296 = vadd.f32 %v1288, %v1251
    %v1297 = vadd.f32 %v1289, %v1253
    %v1298 = vadd.f32 %v1290, %v1255
    %v1299 = vadd.f32 %v1291, %v1257
    %v1300 = vadd.f32 %v1292, %v1259
    %v1301 = vadd.f32 %v1293, %v1261
    %v1302 = vadd.f32 %v1294, %v1271
    %v1303 = vadd.f32 %v1295, %v1273
    %v1304 = vadd.f32 %v1296, %v1275
    %v1305 = vadd.f32 %v1297, %v1277
    %v1306 = vadd.f32 %v1298, %v1279
    %v1307 = vadd.f32 %v1299, %v1281
    %v1308 = vadd.f32 %v1300, %v1283
    %v1309 = vadd.f32 %v1301, %v1285
    %v1310 = vrcp.pop %v1302
    %v1311 = vrcp.pop %v1303
    %v1312 = vrcp.pop %v1304
    %v1313 = vrcp.pop %v1305
    %v1314 = vrcp.pop %v1306
    %v1315 = vrcp.pop %v1307
    %v1316 = vrcp.pop %v1308
    %v1317 = vrcp.pop %v1309
    %v1318 = vmul.f32 %v1302, %v1310
    %v1319 = vmul.f32 %v1303, %v1311
    %v1320 = vmul.f32 %v1304, %v1312
    %v1321 = vmul.f32 %v1305, %v1313
    %v1322 = vmul.f32 %v1306, %v1314
    %v1323 = vmul.f32 %v1307, %v1315
    %v1324 = vmul.f32 %v1308, %v1316
    %v1325 = vmul.f32 %v1309, %v1317
    %v1326 = vsub.f32 2.0, %v1318
    %v1327 = vsub.f32 2.0, %v1319
    %v1328 = vsub.f32 2.0, %v1320
    %v1329 = vsub.f32 2.0, %v1321
    %v1330 = vsub.f32 2.0, %v1322
    %v1331 = vsub.f32 2.0, %v1323
    %v1332 = vsub.f32 2.0, %v1324
    %v1333 = vsub.f32 2.0, %v1325
    %v1334 = vmul.f32 %v1310, %v1326
    %v1335 = vmul.f32 %v1311, %v1327
    %v1336 = vmul.f32 %v1312, %v1328
    %v1337 = vmul.f32 %v1313, %v1329
    %v1338 = vmul.f32 %v1314, %v1330
    %v1339 = vmul.f32 %v1315, %v1331
    %v1340 = vmul.f32 %v1316, %v1332
    %v1341 = vmul.f32 %v1317, %v1333
    %v1342 = vstv %s823
    %v1343 = vmul.f32 %v1342, %v1334
    %v1344 = vmul.f32 %v1342, %v1335
    %v1345 = vmul.f32 %v1342, %v1336
    %v1346 = vmul.f32 %v1342, %v1337
    %v1347 = vmul.f32 %v1342, %v1338
    %v1348 = vmul.f32 %v1342, %v1339
    %v1349 = vmul.f32 %v1342, %v1340
    %v1350 = vmul.f32 %v1342, %v1341
    %v1351 = vmul.f32 %v1199, %v1343
    %v1352 = vmul.f32 %v1201, %v1344
    %v1353 = vmul.f32 %v1203, %v1345
    %v1354 = vmul.f32 %v1205, %v1346
    %v1355 = vmul.f32 %v1207, %v1347
    %v1356 = vmul.f32 %v1209, %v1348
    %v1357 = vmul.f32 %v1211, %v1349
    %v1358 = vmul.f32 %v1213, %v1350
    %v1359 = vstv %s822
    %v1360 = vmul.f32 %v1359, %v742
    %v1361 = vmul.f32 %v1359, %v743
    %v1362 = vmul.f32 %v1359, %v744
    %v1363 = vmul.f32 %v1359, %v745
    %v1364 = vmul.f32 %v1359, %v746
    %v1365 = vmul.f32 %v1359, %v747
    %v1366 = vmul.f32 %v1359, %v748
    %v1367 = vmul.f32 %v1359, %v749
    %v1368 = vadd.f32 %v1351, %v1360
    %v1369 = vadd.f32 %v1352, %v1361
    %v1370 = vadd.f32 %v1353, %v1362
    %v1371 = vadd.f32 %v1354, %v1363
    %v1372 = vadd.f32 %v1355, %v1364
    %v1373 = vadd.f32 %v1356, %v1365
    %v1374 = vadd.f32 %v1357, %v1366
    %v1375 = vadd.f32 %v1358, %v1367
    %v1376 = vmul.f32 %v1223, %v1343
    %v1377 = vmul.f32 %v1225, %v1344
    %v1378 = vmul.f32 %v1227, %v1345
    %v1379 = vmul.f32 %v1229, %v1346
    %v1380 = vmul.f32 %v1231, %v1347
    %v1381 = vmul.f32 %v1233, %v1348
    %v1382 = vmul.f32 %v1235, %v1349
    %v1383 = vmul.f32 %v1237, %v1350
    %v1384 = vmul.f32 %v1359, %v766
    %v1385 = vmul.f32 %v1359, %v767
    %v1386 = vmul.f32 %v1359, %v768
    %v1387 = vmul.f32 %v1359, %v769
    %v1388 = vmul.f32 %v1359, %v770
    %v1389 = vmul.f32 %v1359, %v771
    %v1390 = vmul.f32 %v1359, %v772
    %v1391 = vmul.f32 %v1359, %v773
    %v1392 = vadd.f32 %v1376, %v1384
    %v1393 = vadd.f32 %v1377, %v1385
    %v1394 = vadd.f32 %v1378, %v1386
    %v1395 = vadd.f32 %v1379, %v1387
    %v1396 = vadd.f32 %v1380, %v1388
    %v1397 = vadd.f32 %v1381, %v1389
    %v1398 = vadd.f32 %v1382, %v1390
    %v1399 = vadd.f32 %v1383, %v1391
    %v1400 = vmul.f32 %v1247, %v1343
    %v1401 = vmul.f32 %v1249, %v1344
    %v1402 = vmul.f32 %v1251, %v1345
    %v1403 = vmul.f32 %v1253, %v1346
    %v1404 = vmul.f32 %v1255, %v1347
    %v1405 = vmul.f32 %v1257, %v1348
    %v1406 = vmul.f32 %v1259, %v1349
    %v1407 = vmul.f32 %v1261, %v1350
    %v1408 = vmul.f32 %v1359, %v790
    %v1409 = vmul.f32 %v1359, %v791
    %v1410 = vmul.f32 %v1359, %v792
    %v1411 = vmul.f32 %v1359, %v793
    %v1412 = vmul.f32 %v1359, %v794
    %v1413 = vmul.f32 %v1359, %v795
    %v1414 = vmul.f32 %v1359, %v796
    %v1415 = vmul.f32 %v1359, %v797
    %v1416 = vadd.f32 %v1400, %v1408
    %v1417 = vadd.f32 %v1401, %v1409
    %v1418 = vadd.f32 %v1402, %v1410
    %v1419 = vadd.f32 %v1403, %v1411
    %v1420 = vadd.f32 %v1404, %v1412
    %v1421 = vadd.f32 %v1405, %v1413
    %v1422 = vadd.f32 %v1406, %v1414
    %v1423 = vadd.f32 %v1407, %v1415
    %v1424 = vmul.f32 %v1271, %v1343
    %v1425 = vmul.f32 %v1273, %v1344
    %v1426 = vmul.f32 %v1275, %v1345
    %v1427 = vmul.f32 %v1277, %v1346
    %v1428 = vmul.f32 %v1279, %v1347
    %v1429 = vmul.f32 %v1281, %v1348
    %v1430 = vmul.f32 %v1283, %v1349
    %v1431 = vmul.f32 %v1285, %v1350
    %v1432 = vmul.f32 %v1359, %v814
    %v1433 = vmul.f32 %v1359, %v815
    %v1434 = vmul.f32 %v1359, %v816
    %v1435 = vmul.f32 %v1359, %v817
    %v1436 = vmul.f32 %v1359, %v818
    %v1437 = vmul.f32 %v1359, %v819
    %v1438 = vmul.f32 %v1359, %v820
    %v1439 = vmul.f32 %v1359, %v821
    %v1440 = vadd.f32 %v1424, %v1432
    %v1441 = vadd.f32 %v1425, %v1433
    %v1442 = vadd.f32 %v1426, %v1434
    %v1443 = vadd.f32 %v1427, %v1435
    %v1444 = vadd.f32 %v1428, %v1436
    %v1445 = vadd.f32 %v1429, %v1437
    %v1446 = vadd.f32 %v1430, %v1438
    %v1447 = vadd.f32 %v1431, %v1439
    %s1448 = sld [smem:[#allocation3 + $0x2]]
    %s1449 = ssub.f32 1.0, %s1448
    %v1450 = vsub.f32 %v1416, %v1392
    %v1451 = vsub.f32 %v1417, %v1393
    %v1452 = vsub.f32 %v1418, %v1394
    %v1453 = vsub.f32 %v1419, %v1395
    %v1454 = vsub.f32 %v1420, %v1396
    %v1455 = vsub.f32 %v1421, %v1397
    %v1456 = vsub.f32 %v1422, %v1398
    %v1457 = vsub.f32 %v1423, %v1399
    %v1458 = vsub.f32 %v1440, %v1368
    %v1459 = vsub.f32 %v1441, %v1369
    %v1460 = vsub.f32 %v1442, %v1370
    %v1461 = vsub.f32 %v1443, %v1371
    %v1462 = vsub.f32 %v1444, %v1372
    %v1463 = vsub.f32 %v1445, %v1373
    %v1464 = vsub.f32 %v1446, %v1374
    %v1465 = vsub.f32 %v1447, %v1375
    %v1466 = vmul.f32 %v1458, 3.0
    %v1467 = vmul.f32 %v1459, 3.0
    %v1468 = vmul.f32 %v1460, 3.0
    %v1469 = vmul.f32 %v1461, 3.0
    %v1470 = vmul.f32 %v1462, 3.0
    %v1471 = vmul.f32 %v1463, 3.0
    %v1472 = vmul.f32 %v1464, 3.0
    %v1473 = vmul.f32 %v1465, 3.0
    %v1474 = vadd.f32 %v1450, %v1466
    %v1475 = vadd.f32 %v1451, %v1467
    %v1476 = vadd.f32 %v1452, %v1468
    %v1477 = vadd.f32 %v1453, %v1469
    %v1478 = vadd.f32 %v1454, %v1470
    %v1479 = vadd.f32 %v1455, %v1471
    %v1480 = vadd.f32 %v1456, %v1472
    %v1481 = vadd.f32 %v1457, %v1473
    %v1482 = vmul.f32 %v79, %v1474
    %v1483 = vmul.f32 %v80, %v1475
    %v1484 = vmul.f32 %v81, %v1476
    %v1485 = vmul.f32 %v82, %v1477
    %v1486 = vmul.f32 %v83, %v1478
    %v1487 = vmul.f32 %v84, %v1479
    %v1488 = vmul.f32 %v85, %v1480
    %v1489 = vmul.f32 %v86, %v1481
    %v1490 = vrot.slane %v1482, 4
    %v1491 = vadd.f32 %v1482, %v1490
    %v1492 = vrot.slane %v1491, 2
    %v1493 = vadd.f32 %v1491, %v1492
    %v1494 = vrot.slane %v1493, 1
    %v1495 = vadd.f32 %v1493, %v1494
    %v1496 = vrot.slane %v1483, 4
    %v1497 = vadd.f32 %v1483, %v1496
    %v1498 = vrot.slane %v1497, 2
    %v1499 = vadd.f32 %v1497, %v1498
    %v1500 = vrot.slane %v1499, 1
    %v1501 = vadd.f32 %v1499, %v1500
    %v1502 = vrot.slane %v1484, 4
    %v1503 = vadd.f32 %v1484, %v1502
    %v1504 = vrot.slane %v1503, 2
    %v1505 = vadd.f32 %v1503, %v1504
    %v1506 = vrot.slane %v1505, 1
    %v1507 = vadd.f32 %v1505, %v1506
    %v1508 = vrot.slane %v1485, 4
    %v1509 = vadd.f32 %v1485, %v1508
    %v1510 = vrot.slane %v1509, 2
    %v1511 = vadd.f32 %v1509, %v1510
    %v1512 = vrot.slane %v1511, 1
    %v1513 = vadd.f32 %v1511, %v1512
    %v1514 = vrot.slane %v1486, 4
    %v1515 = vadd.f32 %v1486, %v1514
    %v1516 = vrot.slane %v1515, 2
    %v1517 = vadd.f32 %v1515, %v1516
    %v1518 = vrot.slane %v1517, 1
    %v1519 = vadd.f32 %v1517, %v1518
    %v1520 = vrot.slane %v1487, 4
    %v1521 = vadd.f32 %v1487, %v1520
    %v1522 = vrot.slane %v1521, 2
    %v1523 = vadd.f32 %v1521, %v1522
    %v1524 = vrot.slane %v1523, 1
    %v1525 = vadd.f32 %v1523, %v1524
    %v1526 = vrot.slane %v1488, 4
    %v1527 = vadd.f32 %v1488, %v1526
    %v1528 = vrot.slane %v1527, 2
    %v1529 = vadd.f32 %v1527, %v1528
    %v1530 = vrot.slane %v1529, 1
    %v1531 = vadd.f32 %v1529, %v1530
    %v1532 = vrot.slane %v1489, 4
    %v1533 = vadd.f32 %v1489, %v1532
    %v1534 = vrot.slane %v1533, 2
    %v1535 = vadd.f32 %v1533, %v1534
    %v1536 = vrot.slane %v1535, 1
    %v1537 = vadd.f32 %v1535, %v1536
    %v1538 = vsub.f32 %v1495, %v1482
    %v1539 = vsub.f32 %v1501, %v1483
    %v1540 = vsub.f32 %v1507, %v1484
    %v1541 = vsub.f32 %v1513, %v1485
    %v1542 = vsub.f32 %v1519, %v1486
    %v1543 = vsub.f32 %v1525, %v1487
    %v1544 = vsub.f32 %v1531, %v1488
    %v1545 = vsub.f32 %v1537, %v1489
    %v1546 = vadd.f32 %v1392, %v1416
    %v1547 = vadd.f32 %v1393, %v1417
    %v1548 = vadd.f32 %v1394, %v1418
    %v1549 = vadd.f32 %v1395, %v1419
    %v1550 = vadd.f32 %v1396, %v1420
    %v1551 = vadd.f32 %v1397, %v1421
    %v1552 = vadd.f32 %v1398, %v1422
    %v1553 = vadd.f32 %v1399, %v1423
    %v1554 = vadd.f32 %v1368, %v1440
    %v1555 = vadd.f32 %v1369, %v1441
    %v1556 = vadd.f32 %v1370, %v1442
    %v1557 = vadd.f32 %v1371, %v1443
    %v1558 = vadd.f32 %v1372, %v1444
    %v1559 = vadd.f32 %v1373, %v1445
    %v1560 = vadd.f32 %v1374, %v1446
    %v1561 = vadd.f32 %v1375, %v1447
    %v1562 = vmul.f32 %v1554, 9.0
    %v1563 = vmul.f32 %v1555, 9.0
    %v1564 = vmul.f32 %v1556, 9.0
    %v1565 = vmul.f32 %v1557, 9.0
    %v1566 = vmul.f32 %v1558, 9.0
    %v1567 = vmul.f32 %v1559, 9.0
    %v1568 = vmul.f32 %v1560, 9.0
    %v1569 = vmul.f32 %v1561, 9.0
    %v1570 = vadd.f32 %v1546, %v1562
    %v1571 = vadd.f32 %v1547, %v1563
    %v1572 = vadd.f32 %v1548, %v1564
    %v1573 = vadd.f32 %v1549, %v1565
    %v1574 = vadd.f32 %v1550, %v1566
    %v1575 = vadd.f32 %v1551, %v1567
    %v1576 = vadd.f32 %v1552, %v1568
    %v1577 = vadd.f32 %v1553, %v1569
    %v1578 = vmul.f32 %v1474, %v1474
    %v1579 = vmul.f32 %v1475, %v1475
    %v1580 = vmul.f32 %v1476, %v1476
    %v1581 = vmul.f32 %v1477, %v1477
    %v1582 = vmul.f32 %v1478, %v1478
    %v1583 = vmul.f32 %v1479, %v1479
    %v1584 = vmul.f32 %v1480, %v1480
    %v1585 = vmul.f32 %v1481, %v1481
    %v1586 = vsub.f32 %v1570, %v1578
    %v1587 = vsub.f32 %v1571, %v1579
    %v1588 = vsub.f32 %v1572, %v1580
    %v1589 = vsub.f32 %v1573, %v1581
    %v1590 = vsub.f32 %v1574, %v1582
    %v1591 = vsub.f32 %v1575, %v1583
    %v1592 = vsub.f32 %v1576, %v1584
    %v1593 = vsub.f32 %v1577, %v1585
    %v1594 = vmul.f32 %v96, %v1586
    %v1595 = vmul.f32 %v97, %v1587
    %v1596 = vmul.f32 %v98, %v1588
    %v1597 = vmul.f32 %v99, %v1589
    %v1598 = vmul.f32 %v100, %v1590
    %v1599 = vmul.f32 %v101, %v1591
    %v1600 = vmul.f32 %v102, %v1592
    %v1601 = vmul.f32 %v103, %v1593
    %v1602 = vrot.slane %v1594, 4
    %v1603 = vadd.f32 %v1594, %v1602
    %v1604 = vrot.slane %v1603, 2
    %v1605 = vadd.f32 %v1603, %v1604
    %v1606 = vrot.slane %v1605, 1
    %v1607 = vadd.f32 %v1605, %v1606
    %v1608 = vrot.slane %v1595, 4
    %v1609 = vadd.f32 %v1595, %v1608
    %v1610 = vrot.slane %v1609, 2
    %v1611 = vadd.f32 %v1609, %v1610
    %v1612 = vrot.slane %v1611, 1
    %v1613 = vadd.f32 %v1611, %v1612
    %v1614 = vrot.slane %v1596, 4
    %v1615 = vadd.f32 %v1596, %v1614
    %v1616 = vrot.slane %v1615, 2
    %v1617 = vadd.f32 %v1615, %v1616
    %v1618 = vrot.slane %v1617, 1
    %v1619 = vadd.f32 %v1617, %v1618
    %v1620 = vrot.slane %v1597, 4
    %v1621 = vadd.f32 %v1597, %v1620
    %v1622 = vrot.slane %v1621, 2
    %v1623 = vadd.f32 %v1621, %v1622
    %v1624 = vrot.slane %v1623, 1
    %v1625 = vadd.f32 %v1623, %v1624
    %v1626 = vrot.slane %v1598, 4
    %v1627 = vadd.f32 %v1598, %v1626
    %v1628 = vrot.slane %v1627, 2
    %v1629 = vadd.f32 %v1627, %v1628
    %v1630 = vrot.slane %v1629, 1
    %v1631 = vadd.f32 %v1629, %v1630
    %v1632 = vrot.slane %v1599, 4
    %v1633 = vadd.f32 %v1599, %v1632
    %v1634 = vrot.slane %v1633, 2
    %v1635 = vadd.f32 %v1633, %v1634
    %v1636 = vrot.slane %v1635, 1
    %v1637 = vadd.f32 %v1635, %v1636
    %v1638 = vrot.slane %v1600, 4
    %v1639 = vadd.f32 %v1600, %v1638
    %v1640 = vrot.slane %v1639, 2
    %v1641 = vadd.f32 %v1639, %v1640
    %v1642 = vrot.slane %v1641, 1
    %v1643 = vadd.f32 %v1641, %v1642
    %v1644 = vrot.slane %v1601, 4
    %v1645 = vadd.f32 %v1601, %v1644
    %v1646 = vrot.slane %v1645, 2
    %v1647 = vadd.f32 %v1645, %v1646
    %v1648 = vrot.slane %v1647, 1
    %v1649 = vadd.f32 %v1647, %v1648
    %v1650 = vsub.f32 %v1607, %v1594
    %v1651 = vsub.f32 %v1613, %v1595
    %v1652 = vsub.f32 %v1619, %v1596
    %v1653 = vsub.f32 %v1625, %v1597
    %v1654 = vsub.f32 %v1631, %v1598
    %v1655 = vsub.f32 %v1637, %v1599
    %v1656 = vsub.f32 %v1643, %v1600
    %v1657 = vsub.f32 %v1649, %v1601
    %v1658 = vadd.f32 %v1650, %v349
    %v1659 = vadd.f32 %v1651, %v349
    %v1660 = vadd.f32 %v1652, %v349
    %v1661 = vadd.f32 %v1653, %v349
    %v1662 = vadd.f32 %v1654, %v349
    %v1663 = vadd.f32 %v1655, %v349
    %v1664 = vadd.f32 %v1656, %v349
    %v1665 = vadd.f32 %v1657, %v349
    %v1666 = vrcp.pop %v1658
    %v1667 = vrcp.pop %v1659
    %v1668 = vrcp.pop %v1660
    %v1669 = vrcp.pop %v1661
    %v1670 = vrcp.pop %v1662
    %v1671 = vrcp.pop %v1663
    %v1672 = vrcp.pop %v1664
    %v1673 = vrcp.pop %v1665
    %v1674 = vmul.f32 %v1658, %v1666
    %v1675 = vmul.f32 %v1659, %v1667
    %v1676 = vmul.f32 %v1660, %v1668
    %v1677 = vmul.f32 %v1661, %v1669
    %v1678 = vmul.f32 %v1662, %v1670
    %v1679 = vmul.f32 %v1663, %v1671
    %v1680 = vmul.f32 %v1664, %v1672
    %v1681 = vmul.f32 %v1665, %v1673
    %v1682 = vsub.f32 2.0, %v1674
    %v1683 = vsub.f32 2.0, %v1675
    %v1684 = vsub.f32 2.0, %v1676
    %v1685 = vsub.f32 2.0, %v1677
    %v1686 = vsub.f32 2.0, %v1678
    %v1687 = vsub.f32 2.0, %v1679
    %v1688 = vsub.f32 2.0, %v1680
    %v1689 = vsub.f32 2.0, %v1681
    %v1690 = vmul.f32 %v1666, %v1682
    %v1691 = vmul.f32 %v1667, %v1683
    %v1692 = vmul.f32 %v1668, %v1684
    %v1693 = vmul.f32 %v1669, %v1685
    %v1694 = vmul.f32 %v1670, %v1686
    %v1695 = vmul.f32 %v1671, %v1687
    %v1696 = vmul.f32 %v1672, %v1688
    %v1697 = vmul.f32 %v1673, %v1689
    %v1698 = vsub.f32 %v401, %v1538
    %v1699 = vsub.f32 %v405, %v1539
    %v1700 = vsub.f32 %v409, %v1540
    %v1701 = vsub.f32 %v413, %v1541
    %v1702 = vsub.f32 %v417, %v1542
    %v1703 = vsub.f32 %v421, %v1543
    %v1704 = vsub.f32 %v425, %v1544
    %v1705 = vsub.f32 %v429, %v1545
    %v1706 = vmul.f32 %v79, %v1698
    %v1707 = vmul.f32 %v80, %v1699
    %v1708 = vmul.f32 %v81, %v1700
    %v1709 = vmul.f32 %v82, %v1701
    %v1710 = vmul.f32 %v83, %v1702
    %v1711 = vmul.f32 %v84, %v1703
    %v1712 = vmul.f32 %v85, %v1704
    %v1713 = vmul.f32 %v86, %v1705
    %v1714 = vmul.f32 %v1706, 2.0
    %v1715 = vmul.f32 %v1707, 2.0
    %v1716 = vmul.f32 %v1708, 2.0
    %v1717 = vmul.f32 %v1709, 2.0
    %v1718 = vmul.f32 %v1710, 2.0
    %v1719 = vmul.f32 %v1711, 2.0
    %v1720 = vmul.f32 %v1712, 2.0
    %v1721 = vmul.f32 %v1713, 2.0
    %v1722 = vmul.f32 %v1714, %v1690
    %v1723 = vmul.f32 %v1715, %v1691
    %v1724 = vmul.f32 %v1716, %v1692
    %v1725 = vmul.f32 %v1717, %v1693
    %v1726 = vmul.f32 %v1718, %v1694
    %v1727 = vmul.f32 %v1719, %v1695
    %v1728 = vmul.f32 %v1720, %v1696
    %v1729 = vmul.f32 %v1721, %v1697
    %v1730 = vmul.f32 %v470, %v1690
    %v1731 = vmul.f32 %v471, %v1691
    %v1732 = vmul.f32 %v472, %v1692
    %v1733 = vmul.f32 %v473, %v1693
    %v1734 = vmul.f32 %v474, %v1694
    %v1735 = vmul.f32 %v475, %v1695
    %v1736 = vmul.f32 %v476, %v1696
    %v1737 = vmul.f32 %v477, %v1697
    %v1738 = vadd.f32 %v1722, %v1723
    %v1739 = vadd.f32 %v1738, %v1724
    %v1740 = vadd.f32 %v1739, %v1725
    %v1741 = vadd.f32 %v1740, %v1726
    %v1742 = vadd.f32 %v1741, %v1727
    %v1743 = vadd.f32 %v1742, %v1728
    %v1744 = vadd.f32 %v1743, %v1729
    %v1745 = vadd.f32 %v1730, %v1731
    %v1746 = vadd.f32 %v1745, %v1732
    %v1747 = vadd.f32 %v1746, %v1733
    %v1748 = vadd.f32 %v1747, %v1734
    %v1749 = vadd.f32 %v1748, %v1735
    %v1750 = vadd.f32 %v1749, %v1736
    %v1751 = vadd.f32 %v1750, %v1737
    %v1752 = vsub.f32 %v1744, %v1722
    %v1753 = vsub.f32 %v1744, %v1723
    %v1754 = vsub.f32 %v1744, %v1724
    %v1755 = vsub.f32 %v1744, %v1725
    %v1756 = vsub.f32 %v1744, %v1726
    %v1757 = vsub.f32 %v1744, %v1727
    %v1758 = vsub.f32 %v1744, %v1728
    %v1759 = vsub.f32 %v1744, %v1729
    %v1760 = vsub.f32 %v1751, %v1730
    %v1761 = vsub.f32 %v1751, %v1731
    %v1762 = vsub.f32 %v1751, %v1732
    %v1763 = vsub.f32 %v1751, %v1733
    %v1764 = vsub.f32 %v1751, %v1734
    %v1765 = vsub.f32 %v1751, %v1735
    %v1766 = vsub.f32 %v1751, %v1736
    %v1767 = vsub.f32 %v1751, %v1737
    %v1768 = vadd.f32 %v1752, %v1760
    %v1769 = vadd.f32 %v1753, %v1761
    %v1770 = vadd.f32 %v1754, %v1762
    %v1771 = vadd.f32 %v1755, %v1763
    %v1772 = vadd.f32 %v1756, %v1764
    %v1773 = vadd.f32 %v1757, %v1765
    %v1774 = vadd.f32 %v1758, %v1766
    %v1775 = vadd.f32 %v1759, %v1767
    %v1776 = vadd.f32 %v1768, %v1752
    %v1777 = vadd.f32 %v1769, %v1753
    %v1778 = vadd.f32 %v1770, %v1754
    %v1779 = vadd.f32 %v1771, %v1755
    %v1780 = vadd.f32 %v1772, %v1756
    %v1781 = vadd.f32 %v1773, %v1757
    %v1782 = vadd.f32 %v1774, %v1758
    %v1783 = vadd.f32 %v1775, %v1759
    %v1784 = vmul.f32 %v1752, 3.0
    %v1785 = vmul.f32 %v1753, 3.0
    %v1786 = vmul.f32 %v1754, 3.0
    %v1787 = vmul.f32 %v1755, 3.0
    %v1788 = vmul.f32 %v1756, 3.0
    %v1789 = vmul.f32 %v1757, 3.0
    %v1790 = vmul.f32 %v1758, 3.0
    %v1791 = vmul.f32 %v1759, 3.0
    %v1792 = vmax.f32 %v1768, %v1776
    %v1793 = vmax.f32 %v1769, %v1777
    %v1794 = vmax.f32 %v1770, %v1778
    %v1795 = vmax.f32 %v1771, %v1779
    %v1796 = vmax.f32 %v1772, %v1780
    %v1797 = vmax.f32 %v1773, %v1781
    %v1798 = vmax.f32 %v1774, %v1782
    %v1799 = vmax.f32 %v1775, %v1783
    %v1800 = vmax.f32 %v1784, 0.0
    %v1801 = vmax.f32 %v1785, 0.0
    %v1802 = vmax.f32 %v1786, 0.0
    %v1803 = vmax.f32 %v1787, 0.0
    %v1804 = vmax.f32 %v1788, 0.0
    %v1805 = vmax.f32 %v1789, 0.0
    %v1806 = vmax.f32 %v1790, 0.0
    %v1807 = vmax.f32 %v1791, 0.0
    %v1808 = vmax.f32 %v1792, %v1800
    %v1809 = vmax.f32 %v1793, %v1801
    %v1810 = vmax.f32 %v1794, %v1802
    %v1811 = vmax.f32 %v1795, %v1803
    %v1812 = vmax.f32 %v1796, %v1804
    %v1813 = vmax.f32 %v1797, %v1805
    %v1814 = vmax.f32 %v1798, %v1806
    %v1815 = vmax.f32 %v1799, %v1807
    %v1816 = vsub.f32 0.0, %v1808
    %v1817 = vsub.f32 0.0, %v1809
    %v1818 = vsub.f32 0.0, %v1810
    %v1819 = vsub.f32 0.0, %v1811
    %v1820 = vsub.f32 0.0, %v1812
    %v1821 = vsub.f32 0.0, %v1813
    %v1822 = vsub.f32 0.0, %v1814
    %v1823 = vsub.f32 0.0, %v1815
    %v1824 = vmul.f32 %v1816, 1.442695
    %v1825 = vpow.pop %v1824
    %v1826 = vmul.f32 %v1817, 1.442695
    %v1827 = vpow.pop %v1826
    %v1828 = vmul.f32 %v1818, 1.442695
    %v1829 = vpow.pop %v1828
    %v1830 = vmul.f32 %v1819, 1.442695
    %v1831 = vpow.pop %v1830
    %v1832 = vmul.f32 %v1820, 1.442695
    %v1833 = vpow.pop %v1832
    %v1834 = vmul.f32 %v1821, 1.442695
    %v1835 = vpow.pop %v1834
    %v1836 = vmul.f32 %v1822, 1.442695
    %v1837 = vpow.pop %v1836
    %v1838 = vmul.f32 %v1823, 1.442695
    %v1839 = vpow.pop %v1838
    %v1840 = vsub.f32 %v1768, %v1808
    %v1841 = vsub.f32 %v1769, %v1809
    %v1842 = vsub.f32 %v1770, %v1810
    %v1843 = vsub.f32 %v1771, %v1811
    %v1844 = vsub.f32 %v1772, %v1812
    %v1845 = vsub.f32 %v1773, %v1813
    %v1846 = vsub.f32 %v1774, %v1814
    %v1847 = vsub.f32 %v1775, %v1815
    %v1848 = vmul.f32 %v1840, 1.442695
    %v1849 = vpow.pop %v1848
    %v1850 = vmul.f32 %v1841, 1.442695
    %v1851 = vpow.pop %v1850
    %v1852 = vmul.f32 %v1842, 1.442695
    %v1853 = vpow.pop %v1852
    %v1854 = vmul.f32 %v1843, 1.442695
    %v1855 = vpow.pop %v1854
    %v1856 = vmul.f32 %v1844, 1.442695
    %v1857 = vpow.pop %v1856
    %v1858 = vmul.f32 %v1845, 1.442695
    %v1859 = vpow.pop %v1858
    %v1860 = vmul.f32 %v1846, 1.442695
    %v1861 = vpow.pop %v1860
    %v1862 = vmul.f32 %v1847, 1.442695
    %v1863 = vpow.pop %v1862
    %v1864 = vsub.f32 %v1776, %v1808
    %v1865 = vsub.f32 %v1777, %v1809
    %v1866 = vsub.f32 %v1778, %v1810
    %v1867 = vsub.f32 %v1779, %v1811
    %v1868 = vsub.f32 %v1780, %v1812
    %v1869 = vsub.f32 %v1781, %v1813
    %v1870 = vsub.f32 %v1782, %v1814
    %v1871 = vsub.f32 %v1783, %v1815
    %v1872 = vmul.f32 %v1864, 1.442695
    %v1873 = vpow.pop %v1872
    %v1874 = vmul.f32 %v1865, 1.442695
    %v1875 = vpow.pop %v1874
    %v1876 = vmul.f32 %v1866, 1.442695
    %v1877 = vpow.pop %v1876
    %v1878 = vmul.f32 %v1867, 1.442695
    %v1879 = vpow.pop %v1878
    %v1880 = vmul.f32 %v1868, 1.442695
    %v1881 = vpow.pop %v1880
    %v1882 = vmul.f32 %v1869, 1.442695
    %v1883 = vpow.pop %v1882
    %v1884 = vmul.f32 %v1870, 1.442695
    %v1885 = vpow.pop %v1884
    %v1886 = vmul.f32 %v1871, 1.442695
    %v1887 = vpow.pop %v1886
    %v1888 = vsub.f32 %v1784, %v1808
    %v1889 = vsub.f32 %v1785, %v1809
    %v1890 = vsub.f32 %v1786, %v1810
    %v1891 = vsub.f32 %v1787, %v1811
    %v1892 = vsub.f32 %v1788, %v1812
    %v1893 = vsub.f32 %v1789, %v1813
    %v1894 = vsub.f32 %v1790, %v1814
    %v1895 = vsub.f32 %v1791, %v1815
    %v1896 = vmul.f32 %v1888, 1.442695
    %v1897 = vpow.pop %v1896
    %v1898 = vmul.f32 %v1889, 1.442695
    %v1899 = vpow.pop %v1898
    %v1900 = vmul.f32 %v1890, 1.442695
    %v1901 = vpow.pop %v1900
    %v1902 = vmul.f32 %v1891, 1.442695
    %v1903 = vpow.pop %v1902
    %v1904 = vmul.f32 %v1892, 1.442695
    %v1905 = vpow.pop %v1904
    %v1906 = vmul.f32 %v1893, 1.442695
    %v1907 = vpow.pop %v1906
    %v1908 = vmul.f32 %v1894, 1.442695
    %v1909 = vpow.pop %v1908
    %v1910 = vmul.f32 %v1895, 1.442695
    %v1911 = vpow.pop %v1910
    %v1912 = vadd.f32 %v1825, %v1849
    %v1913 = vadd.f32 %v1827, %v1851
    %v1914 = vadd.f32 %v1829, %v1853
    %v1915 = vadd.f32 %v1831, %v1855
    %v1916 = vadd.f32 %v1833, %v1857
    %v1917 = vadd.f32 %v1835, %v1859
    %v1918 = vadd.f32 %v1837, %v1861
    %v1919 = vadd.f32 %v1839, %v1863
    %v1920 = vadd.f32 %v1912, %v1873
    %v1921 = vadd.f32 %v1913, %v1875
    %v1922 = vadd.f32 %v1914, %v1877
    %v1923 = vadd.f32 %v1915, %v1879
    %v1924 = vadd.f32 %v1916, %v1881
    %v1925 = vadd.f32 %v1917, %v1883
    %v1926 = vadd.f32 %v1918, %v1885
    %v1927 = vadd.f32 %v1919, %v1887
    %v1928 = vadd.f32 %v1920, %v1897
    %v1929 = vadd.f32 %v1921, %v1899
    %v1930 = vadd.f32 %v1922, %v1901
    %v1931 = vadd.f32 %v1923, %v1903
    %v1932 = vadd.f32 %v1924, %v1905
    %v1933 = vadd.f32 %v1925, %v1907
    %v1934 = vadd.f32 %v1926, %v1909
    %v1935 = vadd.f32 %v1927, %v1911
    %v1936 = vrcp.pop %v1928
    %v1937 = vrcp.pop %v1929
    %v1938 = vrcp.pop %v1930
    %v1939 = vrcp.pop %v1931
    %v1940 = vrcp.pop %v1932
    %v1941 = vrcp.pop %v1933
    %v1942 = vrcp.pop %v1934
    %v1943 = vrcp.pop %v1935
    %v1944 = vmul.f32 %v1928, %v1936
    %v1945 = vmul.f32 %v1929, %v1937
    %v1946 = vmul.f32 %v1930, %v1938
    %v1947 = vmul.f32 %v1931, %v1939
    %v1948 = vmul.f32 %v1932, %v1940
    %v1949 = vmul.f32 %v1933, %v1941
    %v1950 = vmul.f32 %v1934, %v1942
    %v1951 = vmul.f32 %v1935, %v1943
    %v1952 = vsub.f32 2.0, %v1944
    %v1953 = vsub.f32 2.0, %v1945
    %v1954 = vsub.f32 2.0, %v1946
    %v1955 = vsub.f32 2.0, %v1947
    %v1956 = vsub.f32 2.0, %v1948
    %v1957 = vsub.f32 2.0, %v1949
    %v1958 = vsub.f32 2.0, %v1950
    %v1959 = vsub.f32 2.0, %v1951
    %v1960 = vmul.f32 %v1936, %v1952
    %v1961 = vmul.f32 %v1937, %v1953
    %v1962 = vmul.f32 %v1938, %v1954
    %v1963 = vmul.f32 %v1939, %v1955
    %v1964 = vmul.f32 %v1940, %v1956
    %v1965 = vmul.f32 %v1941, %v1957
    %v1966 = vmul.f32 %v1942, %v1958
    %v1967 = vmul.f32 %v1943, %v1959
    %v1968 = vstv %s1449
    %v1969 = vmul.f32 %v1968, %v1960
    %v1970 = vmul.f32 %v1968, %v1961
    %v1971 = vmul.f32 %v1968, %v1962
    %v1972 = vmul.f32 %v1968, %v1963
    %v1973 = vmul.f32 %v1968, %v1964
    %v1974 = vmul.f32 %v1968, %v1965
    %v1975 = vmul.f32 %v1968, %v1966
    %v1976 = vmul.f32 %v1968, %v1967
    %v1977 = vmul.f32 %v1825, %v1969
    %v1978 = vmul.f32 %v1827, %v1970
    %v1979 = vmul.f32 %v1829, %v1971
    %v1980 = vmul.f32 %v1831, %v1972
    %v1981 = vmul.f32 %v1833, %v1973
    %v1982 = vmul.f32 %v1835, %v1974
    %v1983 = vmul.f32 %v1837, %v1975
    %v1984 = vmul.f32 %v1839, %v1976
    %v1985 = vstv %s1448
    %v1986 = vmul.f32 %v1985, %v1368
    %v1987 = vmul.f32 %v1985, %v1369
    %v1988 = vmul.f32 %v1985, %v1370
    %v1989 = vmul.f32 %v1985, %v1371
    %v1990 = vmul.f32 %v1985, %v1372
    %v1991 = vmul.f32 %v1985, %v1373
    %v1992 = vmul.f32 %v1985, %v1374
    %v1993 = vmul.f32 %v1985, %v1375
    %v1994 = vadd.f32 %v1977, %v1986
    %v1995 = vadd.f32 %v1978, %v1987
    %v1996 = vadd.f32 %v1979, %v1988
    %v1997 = vadd.f32 %v1980, %v1989
    %v1998 = vadd.f32 %v1981, %v1990
    %v1999 = vadd.f32 %v1982, %v1991
    %v2000 = vadd.f32 %v1983, %v1992
    %v2001 = vadd.f32 %v1984, %v1993
    %v2002 = vmul.f32 %v1849, %v1969
    %v2003 = vmul.f32 %v1851, %v1970
    %v2004 = vmul.f32 %v1853, %v1971
    %v2005 = vmul.f32 %v1855, %v1972
    %v2006 = vmul.f32 %v1857, %v1973
    %v2007 = vmul.f32 %v1859, %v1974
    %v2008 = vmul.f32 %v1861, %v1975
    %v2009 = vmul.f32 %v1863, %v1976
    %v2010 = vmul.f32 %v1985, %v1392
    %v2011 = vmul.f32 %v1985, %v1393
    %v2012 = vmul.f32 %v1985, %v1394
    %v2013 = vmul.f32 %v1985, %v1395
    %v2014 = vmul.f32 %v1985, %v1396
    %v2015 = vmul.f32 %v1985, %v1397
    %v2016 = vmul.f32 %v1985, %v1398
    %v2017 = vmul.f32 %v1985, %v1399
    %v2018 = vadd.f32 %v2002, %v2010
    %v2019 = vadd.f32 %v2003, %v2011
    %v2020 = vadd.f32 %v2004, %v2012
    %v2021 = vadd.f32 %v2005, %v2013
    %v2022 = vadd.f32 %v2006, %v2014
    %v2023 = vadd.f32 %v2007, %v2015
    %v2024 = vadd.f32 %v2008, %v2016
    %v2025 = vadd.f32 %v2009, %v2017
    %v2026 = vmul.f32 %v1873, %v1969
    %v2027 = vmul.f32 %v1875, %v1970
    %v2028 = vmul.f32 %v1877, %v1971
    %v2029 = vmul.f32 %v1879, %v1972
    %v2030 = vmul.f32 %v1881, %v1973
    %v2031 = vmul.f32 %v1883, %v1974
    %v2032 = vmul.f32 %v1885, %v1975
    %v2033 = vmul.f32 %v1887, %v1976
    %v2034 = vmul.f32 %v1985, %v1416
    %v2035 = vmul.f32 %v1985, %v1417
    %v2036 = vmul.f32 %v1985, %v1418
    %v2037 = vmul.f32 %v1985, %v1419
    %v2038 = vmul.f32 %v1985, %v1420
    %v2039 = vmul.f32 %v1985, %v1421
    %v2040 = vmul.f32 %v1985, %v1422
    %v2041 = vmul.f32 %v1985, %v1423
    %v2042 = vadd.f32 %v2026, %v2034
    %v2043 = vadd.f32 %v2027, %v2035
    %v2044 = vadd.f32 %v2028, %v2036
    %v2045 = vadd.f32 %v2029, %v2037
    %v2046 = vadd.f32 %v2030, %v2038
    %v2047 = vadd.f32 %v2031, %v2039
    %v2048 = vadd.f32 %v2032, %v2040
    %v2049 = vadd.f32 %v2033, %v2041
    %v2050 = vmul.f32 %v1897, %v1969
    %v2051 = vmul.f32 %v1899, %v1970
    %v2052 = vmul.f32 %v1901, %v1971
    %v2053 = vmul.f32 %v1903, %v1972
    %v2054 = vmul.f32 %v1905, %v1973
    %v2055 = vmul.f32 %v1907, %v1974
    %v2056 = vmul.f32 %v1909, %v1975
    %v2057 = vmul.f32 %v1911, %v1976
    %v2058 = vmul.f32 %v1985, %v1440
    %v2059 = vmul.f32 %v1985, %v1441
    %v2060 = vmul.f32 %v1985, %v1442
    %v2061 = vmul.f32 %v1985, %v1443
    %v2062 = vmul.f32 %v1985, %v1444
    %v2063 = vmul.f32 %v1985, %v1445
    %v2064 = vmul.f32 %v1985, %v1446
    %v2065 = vmul.f32 %v1985, %v1447
    %v2066 = vadd.f32 %v2050, %v2058
    %v2067 = vadd.f32 %v2051, %v2059
    %v2068 = vadd.f32 %v2052, %v2060
    %v2069 = vadd.f32 %v2053, %v2061
    %v2070 = vadd.f32 %v2054, %v2062
    %v2071 = vadd.f32 %v2055, %v2063
    %v2072 = vadd.f32 %v2056, %v2064
    %v2073 = vadd.f32 %v2057, %v2065
    %s2074 = sld [smem:[#allocation3 + $0x3]]
    %s2075 = ssub.f32 1.0, %s2074
    %v2076 = vsub.f32 %v2042, %v2018
    %v2077 = vsub.f32 %v2043, %v2019
    %v2078 = vsub.f32 %v2044, %v2020
    %v2079 = vsub.f32 %v2045, %v2021
    %v2080 = vsub.f32 %v2046, %v2022
    %v2081 = vsub.f32 %v2047, %v2023
    %v2082 = vsub.f32 %v2048, %v2024
    %v2083 = vsub.f32 %v2049, %v2025
    %v2084 = vsub.f32 %v2066, %v1994
    %v2085 = vsub.f32 %v2067, %v1995
    %v2086 = vsub.f32 %v2068, %v1996
    %v2087 = vsub.f32 %v2069, %v1997
    %v2088 = vsub.f32 %v2070, %v1998
    %v2089 = vsub.f32 %v2071, %v1999
    %v2090 = vsub.f32 %v2072, %v2000
    %v2091 = vsub.f32 %v2073, %v2001
    %v2092 = vmul.f32 %v2084, 3.0
    %v2093 = vmul.f32 %v2085, 3.0
    %v2094 = vmul.f32 %v2086, 3.0
    %v2095 = vmul.f32 %v2087, 3.0
    %v2096 = vmul.f32 %v2088, 3.0
    %v2097 = vmul.f32 %v2089, 3.0
    %v2098 = vmul.f32 %v2090, 3.0
    %v2099 = vmul.f32 %v2091, 3.0
    %v2100 = vadd.f32 %v2076, %v2092
    %v2101 = vadd.f32 %v2077, %v2093
    %v2102 = vadd.f32 %v2078, %v2094
    %v2103 = vadd.f32 %v2079, %v2095
    %v2104 = vadd.f32 %v2080, %v2096
    %v2105 = vadd.f32 %v2081, %v2097
    %v2106 = vadd.f32 %v2082, %v2098
    %v2107 = vadd.f32 %v2083, %v2099
    %v2108 = vmul.f32 %v79, %v2100
    %v2109 = vmul.f32 %v80, %v2101
    %v2110 = vmul.f32 %v81, %v2102
    %v2111 = vmul.f32 %v82, %v2103
    %v2112 = vmul.f32 %v83, %v2104
    %v2113 = vmul.f32 %v84, %v2105
    %v2114 = vmul.f32 %v85, %v2106
    %v2115 = vmul.f32 %v86, %v2107
    %v2116 = vrot.slane %v2108, 4
    %v2117 = vadd.f32 %v2108, %v2116
    %v2118 = vrot.slane %v2117, 2
    %v2119 = vadd.f32 %v2117, %v2118
    %v2120 = vrot.slane %v2119, 1
    %v2121 = vadd.f32 %v2119, %v2120
    %v2122 = vrot.slane %v2109, 4
    %v2123 = vadd.f32 %v2109, %v2122
    %v2124 = vrot.slane %v2123, 2
    %v2125 = vadd.f32 %v2123, %v2124
    %v2126 = vrot.slane %v2125, 1
    %v2127 = vadd.f32 %v2125, %v2126
    %v2128 = vrot.slane %v2110, 4
    %v2129 = vadd.f32 %v2110, %v2128
    %v2130 = vrot.slane %v2129, 2
    %v2131 = vadd.f32 %v2129, %v2130
    %v2132 = vrot.slane %v2131, 1
    %v2133 = vadd.f32 %v2131, %v2132
    %v2134 = vrot.slane %v2111, 4
    %v2135 = vadd.f32 %v2111, %v2134
    %v2136 = vrot.slane %v2135, 2
    %v2137 = vadd.f32 %v2135, %v2136
    %v2138 = vrot.slane %v2137, 1
    %v2139 = vadd.f32 %v2137, %v2138
    %v2140 = vrot.slane %v2112, 4
    %v2141 = vadd.f32 %v2112, %v2140
    %v2142 = vrot.slane %v2141, 2
    %v2143 = vadd.f32 %v2141, %v2142
    %v2144 = vrot.slane %v2143, 1
    %v2145 = vadd.f32 %v2143, %v2144
    %v2146 = vrot.slane %v2113, 4
    %v2147 = vadd.f32 %v2113, %v2146
    %v2148 = vrot.slane %v2147, 2
    %v2149 = vadd.f32 %v2147, %v2148
    %v2150 = vrot.slane %v2149, 1
    %v2151 = vadd.f32 %v2149, %v2150
    %v2152 = vrot.slane %v2114, 4
    %v2153 = vadd.f32 %v2114, %v2152
    %v2154 = vrot.slane %v2153, 2
    %v2155 = vadd.f32 %v2153, %v2154
    %v2156 = vrot.slane %v2155, 1
    %v2157 = vadd.f32 %v2155, %v2156
    %v2158 = vrot.slane %v2115, 4
    %v2159 = vadd.f32 %v2115, %v2158
    %v2160 = vrot.slane %v2159, 2
    %v2161 = vadd.f32 %v2159, %v2160
    %v2162 = vrot.slane %v2161, 1
    %v2163 = vadd.f32 %v2161, %v2162
    %v2164 = vsub.f32 %v2121, %v2108
    %v2165 = vsub.f32 %v2127, %v2109
    %v2166 = vsub.f32 %v2133, %v2110
    %v2167 = vsub.f32 %v2139, %v2111
    %v2168 = vsub.f32 %v2145, %v2112
    %v2169 = vsub.f32 %v2151, %v2113
    %v2170 = vsub.f32 %v2157, %v2114
    %v2171 = vsub.f32 %v2163, %v2115
    %v2172 = vadd.f32 %v2018, %v2042
    %v2173 = vadd.f32 %v2019, %v2043
    %v2174 = vadd.f32 %v2020, %v2044
    %v2175 = vadd.f32 %v2021, %v2045
    %v2176 = vadd.f32 %v2022, %v2046
    %v2177 = vadd.f32 %v2023, %v2047
    %v2178 = vadd.f32 %v2024, %v2048
    %v2179 = vadd.f32 %v2025, %v2049
    %v2180 = vadd.f32 %v1994, %v2066
    %v2181 = vadd.f32 %v1995, %v2067
    %v2182 = vadd.f32 %v1996, %v2068
    %v2183 = vadd.f32 %v1997, %v2069
    %v2184 = vadd.f32 %v1998, %v2070
    %v2185 = vadd.f32 %v1999, %v2071
    %v2186 = vadd.f32 %v2000, %v2072
    %v2187 = vadd.f32 %v2001, %v2073
    %v2188 = vmul.f32 %v2180, 9.0
    %v2189 = vmul.f32 %v2181, 9.0
    %v2190 = vmul.f32 %v2182, 9.0
    %v2191 = vmul.f32 %v2183, 9.0
    %v2192 = vmul.f32 %v2184, 9.0
    %v2193 = vmul.f32 %v2185, 9.0
    %v2194 = vmul.f32 %v2186, 9.0
    %v2195 = vmul.f32 %v2187, 9.0
    %v2196 = vadd.f32 %v2172, %v2188
    %v2197 = vadd.f32 %v2173, %v2189
    %v2198 = vadd.f32 %v2174, %v2190
    %v2199 = vadd.f32 %v2175, %v2191
    %v2200 = vadd.f32 %v2176, %v2192
    %v2201 = vadd.f32 %v2177, %v2193
    %v2202 = vadd.f32 %v2178, %v2194
    %v2203 = vadd.f32 %v2179, %v2195
    %v2204 = vmul.f32 %v2100, %v2100
    %v2205 = vmul.f32 %v2101, %v2101
    %v2206 = vmul.f32 %v2102, %v2102
    %v2207 = vmul.f32 %v2103, %v2103
    %v2208 = vmul.f32 %v2104, %v2104
    %v2209 = vmul.f32 %v2105, %v2105
    %v2210 = vmul.f32 %v2106, %v2106
    %v2211 = vmul.f32 %v2107, %v2107
    %v2212 = vsub.f32 %v2196, %v2204
    %v2213 = vsub.f32 %v2197, %v2205
    %v2214 = vsub.f32 %v2198, %v2206
    %v2215 = vsub.f32 %v2199, %v2207
    %v2216 = vsub.f32 %v2200, %v2208
    %v2217 = vsub.f32 %v2201, %v2209
    %v2218 = vsub.f32 %v2202, %v2210
    %v2219 = vsub.f32 %v2203, %v2211
    %v2220 = vmul.f32 %v96, %v2212
    %v2221 = vmul.f32 %v97, %v2213
    %v2222 = vmul.f32 %v98, %v2214
    %v2223 = vmul.f32 %v99, %v2215
    %v2224 = vmul.f32 %v100, %v2216
    %v2225 = vmul.f32 %v101, %v2217
    %v2226 = vmul.f32 %v102, %v2218
    %v2227 = vmul.f32 %v103, %v2219
    %v2228 = vrot.slane %v2220, 4
    %v2229 = vadd.f32 %v2220, %v2228
    %v2230 = vrot.slane %v2229, 2
    %v2231 = vadd.f32 %v2229, %v2230
    %v2232 = vrot.slane %v2231, 1
    %v2233 = vadd.f32 %v2231, %v2232
    %v2234 = vrot.slane %v2221, 4
    %v2235 = vadd.f32 %v2221, %v2234
    %v2236 = vrot.slane %v2235, 2
    %v2237 = vadd.f32 %v2235, %v2236
    %v2238 = vrot.slane %v2237, 1
    %v2239 = vadd.f32 %v2237, %v2238
    %v2240 = vrot.slane %v2222, 4
    %v2241 = vadd.f32 %v2222, %v2240
    %v2242 = vrot.slane %v2241, 2
    %v2243 = vadd.f32 %v2241, %v2242
    %v2244 = vrot.slane %v2243, 1
    %v2245 = vadd.f32 %v2243, %v2244
    %v2246 = vrot.slane %v2223, 4
    %v2247 = vadd.f32 %v2223, %v2246
    %v2248 = vrot.slane %v2247, 2
    %v2249 = vadd.f32 %v2247, %v2248
    %v2250 = vrot.slane %v2249, 1
    %v2251 = vadd.f32 %v2249, %v2250
    %v2252 = vrot.slane %v2224, 4
    %v2253 = vadd.f32 %v2224, %v2252
    %v2254 = vrot.slane %v2253, 2
    %v2255 = vadd.f32 %v2253, %v2254
    %v2256 = vrot.slane %v2255, 1
    %v2257 = vadd.f32 %v2255, %v2256
    %v2258 = vrot.slane %v2225, 4
    %v2259 = vadd.f32 %v2225, %v2258
    %v2260 = vrot.slane %v2259, 2
    %v2261 = vadd.f32 %v2259, %v2260
    %v2262 = vrot.slane %v2261, 1
    %v2263 = vadd.f32 %v2261, %v2262
    %v2264 = vrot.slane %v2226, 4
    %v2265 = vadd.f32 %v2226, %v2264
    %v2266 = vrot.slane %v2265, 2
    %v2267 = vadd.f32 %v2265, %v2266
    %v2268 = vrot.slane %v2267, 1
    %v2269 = vadd.f32 %v2267, %v2268
    %v2270 = vrot.slane %v2227, 4
    %v2271 = vadd.f32 %v2227, %v2270
    %v2272 = vrot.slane %v2271, 2
    %v2273 = vadd.f32 %v2271, %v2272
    %v2274 = vrot.slane %v2273, 1
    %v2275 = vadd.f32 %v2273, %v2274
    %v2276 = vsub.f32 %v2233, %v2220
    %v2277 = vsub.f32 %v2239, %v2221
    %v2278 = vsub.f32 %v2245, %v2222
    %v2279 = vsub.f32 %v2251, %v2223
    %v2280 = vsub.f32 %v2257, %v2224
    %v2281 = vsub.f32 %v2263, %v2225
    %v2282 = vsub.f32 %v2269, %v2226
    %v2283 = vsub.f32 %v2275, %v2227
    %v2284 = vadd.f32 %v2276, %v349
    %v2285 = vadd.f32 %v2277, %v349
    %v2286 = vadd.f32 %v2278, %v349
    %v2287 = vadd.f32 %v2279, %v349
    %v2288 = vadd.f32 %v2280, %v349
    %v2289 = vadd.f32 %v2281, %v349
    %v2290 = vadd.f32 %v2282, %v349
    %v2291 = vadd.f32 %v2283, %v349
    %v2292 = vrcp.pop %v2284
    %v2293 = vrcp.pop %v2285
    %v2294 = vrcp.pop %v2286
    %v2295 = vrcp.pop %v2287
    %v2296 = vrcp.pop %v2288
    %v2297 = vrcp.pop %v2289
    %v2298 = vrcp.pop %v2290
    %v2299 = vrcp.pop %v2291
    %v2300 = vmul.f32 %v2284, %v2292
    %v2301 = vmul.f32 %v2285, %v2293
    %v2302 = vmul.f32 %v2286, %v2294
    %v2303 = vmul.f32 %v2287, %v2295
    %v2304 = vmul.f32 %v2288, %v2296
    %v2305 = vmul.f32 %v2289, %v2297
    %v2306 = vmul.f32 %v2290, %v2298
    %v2307 = vmul.f32 %v2291, %v2299
    %v2308 = vsub.f32 2.0, %v2300
    %v2309 = vsub.f32 2.0, %v2301
    %v2310 = vsub.f32 2.0, %v2302
    %v2311 = vsub.f32 2.0, %v2303
    %v2312 = vsub.f32 2.0, %v2304
    %v2313 = vsub.f32 2.0, %v2305
    %v2314 = vsub.f32 2.0, %v2306
    %v2315 = vsub.f32 2.0, %v2307
    %v2316 = vmul.f32 %v2292, %v2308
    %v2317 = vmul.f32 %v2293, %v2309
    %v2318 = vmul.f32 %v2294, %v2310
    %v2319 = vmul.f32 %v2295, %v2311
    %v2320 = vmul.f32 %v2296, %v2312
    %v2321 = vmul.f32 %v2297, %v2313
    %v2322 = vmul.f32 %v2298, %v2314
    %v2323 = vmul.f32 %v2299, %v2315
    %v2324 = vsub.f32 %v401, %v2164
    %v2325 = vsub.f32 %v405, %v2165
    %v2326 = vsub.f32 %v409, %v2166
    %v2327 = vsub.f32 %v413, %v2167
    %v2328 = vsub.f32 %v417, %v2168
    %v2329 = vsub.f32 %v421, %v2169
    %v2330 = vsub.f32 %v425, %v2170
    %v2331 = vsub.f32 %v429, %v2171
    %v2332 = vmul.f32 %v79, %v2324
    %v2333 = vmul.f32 %v80, %v2325
    %v2334 = vmul.f32 %v81, %v2326
    %v2335 = vmul.f32 %v82, %v2327
    %v2336 = vmul.f32 %v83, %v2328
    %v2337 = vmul.f32 %v84, %v2329
    %v2338 = vmul.f32 %v85, %v2330
    %v2339 = vmul.f32 %v86, %v2331
    %v2340 = vmul.f32 %v2332, 2.0
    %v2341 = vmul.f32 %v2333, 2.0
    %v2342 = vmul.f32 %v2334, 2.0
    %v2343 = vmul.f32 %v2335, 2.0
    %v2344 = vmul.f32 %v2336, 2.0
    %v2345 = vmul.f32 %v2337, 2.0
    %v2346 = vmul.f32 %v2338, 2.0
    %v2347 = vmul.f32 %v2339, 2.0
    %v2348 = vmul.f32 %v2340, %v2316
    %v2349 = vmul.f32 %v2341, %v2317
    %v2350 = vmul.f32 %v2342, %v2318
    %v2351 = vmul.f32 %v2343, %v2319
    %v2352 = vmul.f32 %v2344, %v2320
    %v2353 = vmul.f32 %v2345, %v2321
    %v2354 = vmul.f32 %v2346, %v2322
    %v2355 = vmul.f32 %v2347, %v2323
    %v2356 = vmul.f32 %v470, %v2316
    %v2357 = vmul.f32 %v471, %v2317
    %v2358 = vmul.f32 %v472, %v2318
    %v2359 = vmul.f32 %v473, %v2319
    %v2360 = vmul.f32 %v474, %v2320
    %v2361 = vmul.f32 %v475, %v2321
    %v2362 = vmul.f32 %v476, %v2322
    %v2363 = vmul.f32 %v477, %v2323
    %v2364 = vadd.f32 %v2348, %v2349
    %v2365 = vadd.f32 %v2364, %v2350
    %v2366 = vadd.f32 %v2365, %v2351
    %v2367 = vadd.f32 %v2366, %v2352
    %v2368 = vadd.f32 %v2367, %v2353
    %v2369 = vadd.f32 %v2368, %v2354
    %v2370 = vadd.f32 %v2369, %v2355
    %v2371 = vadd.f32 %v2356, %v2357
    %v2372 = vadd.f32 %v2371, %v2358
    %v2373 = vadd.f32 %v2372, %v2359
    %v2374 = vadd.f32 %v2373, %v2360
    %v2375 = vadd.f32 %v2374, %v2361
    %v2376 = vadd.f32 %v2375, %v2362
    %v2377 = vadd.f32 %v2376, %v2363
    %v2378 = vsub.f32 %v2370, %v2348
    %v2379 = vsub.f32 %v2370, %v2349
    %v2380 = vsub.f32 %v2370, %v2350
    %v2381 = vsub.f32 %v2370, %v2351
    %v2382 = vsub.f32 %v2370, %v2352
    %v2383 = vsub.f32 %v2370, %v2353
    %v2384 = vsub.f32 %v2370, %v2354
    %v2385 = vsub.f32 %v2370, %v2355
    %v2386 = vsub.f32 %v2377, %v2356
    %v2387 = vsub.f32 %v2377, %v2357
    %v2388 = vsub.f32 %v2377, %v2358
    %v2389 = vsub.f32 %v2377, %v2359
    %v2390 = vsub.f32 %v2377, %v2360
    %v2391 = vsub.f32 %v2377, %v2361
    %v2392 = vsub.f32 %v2377, %v2362
    %v2393 = vsub.f32 %v2377, %v2363
    %v2394 = vadd.f32 %v2378, %v2386
    %v2395 = vadd.f32 %v2379, %v2387
    %v2396 = vadd.f32 %v2380, %v2388
    %v2397 = vadd.f32 %v2381, %v2389
    %v2398 = vadd.f32 %v2382, %v2390
    %v2399 = vadd.f32 %v2383, %v2391
    %v2400 = vadd.f32 %v2384, %v2392
    %v2401 = vadd.f32 %v2385, %v2393
    %v2402 = vadd.f32 %v2394, %v2378
    %v2403 = vadd.f32 %v2395, %v2379
    %v2404 = vadd.f32 %v2396, %v2380
    %v2405 = vadd.f32 %v2397, %v2381
    %v2406 = vadd.f32 %v2398, %v2382
    %v2407 = vadd.f32 %v2399, %v2383
    %v2408 = vadd.f32 %v2400, %v2384
    %v2409 = vadd.f32 %v2401, %v2385
    %v2410 = vmul.f32 %v2378, 3.0
    %v2411 = vmul.f32 %v2379, 3.0
    %v2412 = vmul.f32 %v2380, 3.0
    %v2413 = vmul.f32 %v2381, 3.0
    %v2414 = vmul.f32 %v2382, 3.0
    %v2415 = vmul.f32 %v2383, 3.0
    %v2416 = vmul.f32 %v2384, 3.0
    %v2417 = vmul.f32 %v2385, 3.0
    %v2418 = vmax.f32 %v2394, %v2402
    %v2419 = vmax.f32 %v2395, %v2403
    %v2420 = vmax.f32 %v2396, %v2404
    %v2421 = vmax.f32 %v2397, %v2405
    %v2422 = vmax.f32 %v2398, %v2406
    %v2423 = vmax.f32 %v2399, %v2407
    %v2424 = vmax.f32 %v2400, %v2408
    %v2425 = vmax.f32 %v2401, %v2409
    %v2426 = vmax.f32 %v2410, 0.0
    %v2427 = vmax.f32 %v2411, 0.0
    %v2428 = vmax.f32 %v2412, 0.0
    %v2429 = vmax.f32 %v2413, 0.0
    %v2430 = vmax.f32 %v2414, 0.0
    %v2431 = vmax.f32 %v2415, 0.0
    %v2432 = vmax.f32 %v2416, 0.0
    %v2433 = vmax.f32 %v2417, 0.0
    %v2434 = vmax.f32 %v2418, %v2426
    %v2435 = vmax.f32 %v2419, %v2427
    %v2436 = vmax.f32 %v2420, %v2428
    %v2437 = vmax.f32 %v2421, %v2429
    %v2438 = vmax.f32 %v2422, %v2430
    %v2439 = vmax.f32 %v2423, %v2431
    %v2440 = vmax.f32 %v2424, %v2432
    %v2441 = vmax.f32 %v2425, %v2433
    %v2442 = vsub.f32 0.0, %v2434
    %v2443 = vsub.f32 0.0, %v2435
    %v2444 = vsub.f32 0.0, %v2436
    %v2445 = vsub.f32 0.0, %v2437
    %v2446 = vsub.f32 0.0, %v2438
    %v2447 = vsub.f32 0.0, %v2439
    %v2448 = vsub.f32 0.0, %v2440
    %v2449 = vsub.f32 0.0, %v2441
    %v2450 = vmul.f32 %v2442, 1.442695
    %v2451 = vpow.pop %v2450
    %v2452 = vmul.f32 %v2443, 1.442695
    %v2453 = vpow.pop %v2452
    %v2454 = vmul.f32 %v2444, 1.442695
    %v2455 = vpow.pop %v2454
    %v2456 = vmul.f32 %v2445, 1.442695
    %v2457 = vpow.pop %v2456
    %v2458 = vmul.f32 %v2446, 1.442695
    %v2459 = vpow.pop %v2458
    %v2460 = vmul.f32 %v2447, 1.442695
    %v2461 = vpow.pop %v2460
    %v2462 = vmul.f32 %v2448, 1.442695
    %v2463 = vpow.pop %v2462
    %v2464 = vmul.f32 %v2449, 1.442695
    %v2465 = vpow.pop %v2464
    %v2466 = vsub.f32 %v2394, %v2434
    %v2467 = vsub.f32 %v2395, %v2435
    %v2468 = vsub.f32 %v2396, %v2436
    %v2469 = vsub.f32 %v2397, %v2437
    %v2470 = vsub.f32 %v2398, %v2438
    %v2471 = vsub.f32 %v2399, %v2439
    %v2472 = vsub.f32 %v2400, %v2440
    %v2473 = vsub.f32 %v2401, %v2441
    %v2474 = vmul.f32 %v2466, 1.442695
    %v2475 = vpow.pop %v2474
    %v2476 = vmul.f32 %v2467, 1.442695
    %v2477 = vpow.pop %v2476
    %v2478 = vmul.f32 %v2468, 1.442695
    %v2479 = vpow.pop %v2478
    %v2480 = vmul.f32 %v2469, 1.442695
    %v2481 = vpow.pop %v2480
    %v2482 = vmul.f32 %v2470, 1.442695
    %v2483 = vpow.pop %v2482
    %v2484 = vmul.f32 %v2471, 1.442695
    %v2485 = vpow.pop %v2484
    %v2486 = vmul.f32 %v2472, 1.442695
    %v2487 = vpow.pop %v2486
    %v2488 = vmul.f32 %v2473, 1.442695
    %v2489 = vpow.pop %v2488
    %v2490 = vsub.f32 %v2402, %v2434
    %v2491 = vsub.f32 %v2403, %v2435
    %v2492 = vsub.f32 %v2404, %v2436
    %v2493 = vsub.f32 %v2405, %v2437
    %v2494 = vsub.f32 %v2406, %v2438
    %v2495 = vsub.f32 %v2407, %v2439
    %v2496 = vsub.f32 %v2408, %v2440
    %v2497 = vsub.f32 %v2409, %v2441
    %v2498 = vmul.f32 %v2490, 1.442695
    %v2499 = vpow.pop %v2498
    %v2500 = vmul.f32 %v2491, 1.442695
    %v2501 = vpow.pop %v2500
    %v2502 = vmul.f32 %v2492, 1.442695
    %v2503 = vpow.pop %v2502
    %v2504 = vmul.f32 %v2493, 1.442695
    %v2505 = vpow.pop %v2504
    %v2506 = vmul.f32 %v2494, 1.442695
    %v2507 = vpow.pop %v2506
    %v2508 = vmul.f32 %v2495, 1.442695
    %v2509 = vpow.pop %v2508
    %v2510 = vmul.f32 %v2496, 1.442695
    %v2511 = vpow.pop %v2510
    %v2512 = vmul.f32 %v2497, 1.442695
    %v2513 = vpow.pop %v2512
    %v2514 = vsub.f32 %v2410, %v2434
    %v2515 = vsub.f32 %v2411, %v2435
    %v2516 = vsub.f32 %v2412, %v2436
    %v2517 = vsub.f32 %v2413, %v2437
    %v2518 = vsub.f32 %v2414, %v2438
    %v2519 = vsub.f32 %v2415, %v2439
    %v2520 = vsub.f32 %v2416, %v2440
    %v2521 = vsub.f32 %v2417, %v2441
    %v2522 = vmul.f32 %v2514, 1.442695
    %v2523 = vpow.pop %v2522
    %v2524 = vmul.f32 %v2515, 1.442695
    %v2525 = vpow.pop %v2524
    %v2526 = vmul.f32 %v2516, 1.442695
    %v2527 = vpow.pop %v2526
    %v2528 = vmul.f32 %v2517, 1.442695
    %v2529 = vpow.pop %v2528
    %v2530 = vmul.f32 %v2518, 1.442695
    %v2531 = vpow.pop %v2530
    %v2532 = vmul.f32 %v2519, 1.442695
    %v2533 = vpow.pop %v2532
    %v2534 = vmul.f32 %v2520, 1.442695
    %v2535 = vpow.pop %v2534
    %v2536 = vmul.f32 %v2521, 1.442695
    %v2537 = vpow.pop %v2536
    %v2538 = vadd.f32 %v2451, %v2475
    %v2539 = vadd.f32 %v2453, %v2477
    %v2540 = vadd.f32 %v2455, %v2479
    %v2541 = vadd.f32 %v2457, %v2481
    %v2542 = vadd.f32 %v2459, %v2483
    %v2543 = vadd.f32 %v2461, %v2485
    %v2544 = vadd.f32 %v2463, %v2487
    %v2545 = vadd.f32 %v2465, %v2489
    %v2546 = vadd.f32 %v2538, %v2499
    %v2547 = vadd.f32 %v2539, %v2501
    %v2548 = vadd.f32 %v2540, %v2503
    %v2549 = vadd.f32 %v2541, %v2505
    %v2550 = vadd.f32 %v2542, %v2507
    %v2551 = vadd.f32 %v2543, %v2509
    %v2552 = vadd.f32 %v2544, %v2511
    %v2553 = vadd.f32 %v2545, %v2513
    %v2554 = vadd.f32 %v2546, %v2523
    %v2555 = vadd.f32 %v2547, %v2525
    %v2556 = vadd.f32 %v2548, %v2527
    %v2557 = vadd.f32 %v2549, %v2529
    %v2558 = vadd.f32 %v2550, %v2531
    %v2559 = vadd.f32 %v2551, %v2533
    %v2560 = vadd.f32 %v2552, %v2535
    %v2561 = vadd.f32 %v2553, %v2537
    %v2562 = vrcp.pop %v2554
    %v2563 = vrcp.pop %v2555
    %v2564 = vrcp.pop %v2556
    %v2565 = vrcp.pop %v2557
    %v2566 = vrcp.pop %v2558
    %v2567 = vrcp.pop %v2559
    %v2568 = vrcp.pop %v2560
    %v2569 = vrcp.pop %v2561
    %v2570 = vmul.f32 %v2554, %v2562
    %v2571 = vmul.f32 %v2555, %v2563
    %v2572 = vmul.f32 %v2556, %v2564
    %v2573 = vmul.f32 %v2557, %v2565
    %v2574 = vmul.f32 %v2558, %v2566
    %v2575 = vmul.f32 %v2559, %v2567
    %v2576 = vmul.f32 %v2560, %v2568
    %v2577 = vmul.f32 %v2561, %v2569
    %v2578 = vsub.f32 2.0, %v2570
    %v2579 = vsub.f32 2.0, %v2571
    %v2580 = vsub.f32 2.0, %v2572
    %v2581 = vsub.f32 2.0, %v2573
    %v2582 = vsub.f32 2.0, %v2574
    %v2583 = vsub.f32 2.0, %v2575
    %v2584 = vsub.f32 2.0, %v2576
    %v2585 = vsub.f32 2.0, %v2577
    %v2586 = vmul.f32 %v2562, %v2578
    %v2587 = vmul.f32 %v2563, %v2579
    %v2588 = vmul.f32 %v2564, %v2580
    %v2589 = vmul.f32 %v2565, %v2581
    %v2590 = vmul.f32 %v2566, %v2582
    %v2591 = vmul.f32 %v2567, %v2583
    %v2592 = vmul.f32 %v2568, %v2584
    %v2593 = vmul.f32 %v2569, %v2585
    %v2594 = vstv %s2075
    %v2595 = vmul.f32 %v2594, %v2586
    %v2596 = vmul.f32 %v2594, %v2587
    %v2597 = vmul.f32 %v2594, %v2588
    %v2598 = vmul.f32 %v2594, %v2589
    %v2599 = vmul.f32 %v2594, %v2590
    %v2600 = vmul.f32 %v2594, %v2591
    %v2601 = vmul.f32 %v2594, %v2592
    %v2602 = vmul.f32 %v2594, %v2593
    %v2603 = vmul.f32 %v2451, %v2595
    %v2604 = vmul.f32 %v2453, %v2596
    %v2605 = vmul.f32 %v2455, %v2597
    %v2606 = vmul.f32 %v2457, %v2598
    %v2607 = vmul.f32 %v2459, %v2599
    %v2608 = vmul.f32 %v2461, %v2600
    %v2609 = vmul.f32 %v2463, %v2601
    %v2610 = vmul.f32 %v2465, %v2602
    %v2611 = vstv %s2074
    %v2612 = vmul.f32 %v2611, %v1994
    %v2613 = vmul.f32 %v2611, %v1995
    %v2614 = vmul.f32 %v2611, %v1996
    %v2615 = vmul.f32 %v2611, %v1997
    %v2616 = vmul.f32 %v2611, %v1998
    %v2617 = vmul.f32 %v2611, %v1999
    %v2618 = vmul.f32 %v2611, %v2000
    %v2619 = vmul.f32 %v2611, %v2001
    %v2620 = vadd.f32 %v2603, %v2612
    %v2621 = vadd.f32 %v2604, %v2613
    %v2622 = vadd.f32 %v2605, %v2614
    %v2623 = vadd.f32 %v2606, %v2615
    %v2624 = vadd.f32 %v2607, %v2616
    %v2625 = vadd.f32 %v2608, %v2617
    %v2626 = vadd.f32 %v2609, %v2618
    %v2627 = vadd.f32 %v2610, %v2619
    %v2628 = vmul.f32 %v2475, %v2595
    %v2629 = vmul.f32 %v2477, %v2596
    %v2630 = vmul.f32 %v2479, %v2597
    %v2631 = vmul.f32 %v2481, %v2598
    %v2632 = vmul.f32 %v2483, %v2599
    %v2633 = vmul.f32 %v2485, %v2600
    %v2634 = vmul.f32 %v2487, %v2601
    %v2635 = vmul.f32 %v2489, %v2602
    %v2636 = vmul.f32 %v2611, %v2018
    %v2637 = vmul.f32 %v2611, %v2019
    %v2638 = vmul.f32 %v2611, %v2020
    %v2639 = vmul.f32 %v2611, %v2021
    %v2640 = vmul.f32 %v2611, %v2022
    %v2641 = vmul.f32 %v2611, %v2023
    %v2642 = vmul.f32 %v2611, %v2024
    %v2643 = vmul.f32 %v2611, %v2025
    %v2644 = vadd.f32 %v2628, %v2636
    %v2645 = vadd.f32 %v2629, %v2637
    %v2646 = vadd.f32 %v2630, %v2638
    %v2647 = vadd.f32 %v2631, %v2639
    %v2648 = vadd.f32 %v2632, %v2640
    %v2649 = vadd.f32 %v2633, %v2641
    %v2650 = vadd.f32 %v2634, %v2642
    %v2651 = vadd.f32 %v2635, %v2643
    %v2652 = vmul.f32 %v2499, %v2595
    %v2653 = vmul.f32 %v2501, %v2596
    %v2654 = vmul.f32 %v2503, %v2597
    %v2655 = vmul.f32 %v2505, %v2598
    %v2656 = vmul.f32 %v2507, %v2599
    %v2657 = vmul.f32 %v2509, %v2600
    %v2658 = vmul.f32 %v2511, %v2601
    %v2659 = vmul.f32 %v2513, %v2602
    %v2660 = vmul.f32 %v2611, %v2042
    %v2661 = vmul.f32 %v2611, %v2043
    %v2662 = vmul.f32 %v2611, %v2044
    %v2663 = vmul.f32 %v2611, %v2045
    %v2664 = vmul.f32 %v2611, %v2046
    %v2665 = vmul.f32 %v2611, %v2047
    %v2666 = vmul.f32 %v2611, %v2048
    %v2667 = vmul.f32 %v2611, %v2049
    %v2668 = vadd.f32 %v2652, %v2660
    %v2669 = vadd.f32 %v2653, %v2661
    %v2670 = vadd.f32 %v2654, %v2662
    %v2671 = vadd.f32 %v2655, %v2663
    %v2672 = vadd.f32 %v2656, %v2664
    %v2673 = vadd.f32 %v2657, %v2665
    %v2674 = vadd.f32 %v2658, %v2666
    %v2675 = vadd.f32 %v2659, %v2667
    %v2676 = vmul.f32 %v2523, %v2595
    %v2677 = vmul.f32 %v2525, %v2596
    %v2678 = vmul.f32 %v2527, %v2597
    %v2679 = vmul.f32 %v2529, %v2598
    %v2680 = vmul.f32 %v2531, %v2599
    %v2681 = vmul.f32 %v2533, %v2600
    %v2682 = vmul.f32 %v2535, %v2601
    %v2683 = vmul.f32 %v2537, %v2602
    %v2684 = vmul.f32 %v2611, %v2066
    %v2685 = vmul.f32 %v2611, %v2067
    %v2686 = vmul.f32 %v2611, %v2068
    %v2687 = vmul.f32 %v2611, %v2069
    %v2688 = vmul.f32 %v2611, %v2070
    %v2689 = vmul.f32 %v2611, %v2071
    %v2690 = vmul.f32 %v2611, %v2072
    %v2691 = vmul.f32 %v2611, %v2073
    %v2692 = vadd.f32 %v2676, %v2684
    %v2693 = vadd.f32 %v2677, %v2685
    %v2694 = vadd.f32 %v2678, %v2686
    %v2695 = vadd.f32 %v2679, %v2687
    %v2696 = vadd.f32 %v2680, %v2688
    %v2697 = vadd.f32 %v2681, %v2689
    %v2698 = vadd.f32 %v2682, %v2690
    %v2699 = vadd.f32 %v2683, %v2691
    %s2700 = sld [smem:[#allocation3 + $0x4]]
    %s2701 = ssub.f32 1.0, %s2700
    %v2702 = vsub.f32 %v2668, %v2644
    %v2703 = vsub.f32 %v2669, %v2645
    %v2704 = vsub.f32 %v2670, %v2646
    %v2705 = vsub.f32 %v2671, %v2647
    %v2706 = vsub.f32 %v2672, %v2648
    %v2707 = vsub.f32 %v2673, %v2649
    %v2708 = vsub.f32 %v2674, %v2650
    %v2709 = vsub.f32 %v2675, %v2651
    %v2710 = vsub.f32 %v2692, %v2620
    %v2711 = vsub.f32 %v2693, %v2621
    %v2712 = vsub.f32 %v2694, %v2622
    %v2713 = vsub.f32 %v2695, %v2623
    %v2714 = vsub.f32 %v2696, %v2624
    %v2715 = vsub.f32 %v2697, %v2625
    %v2716 = vsub.f32 %v2698, %v2626
    %v2717 = vsub.f32 %v2699, %v2627
    %v2718 = vmul.f32 %v2710, 3.0
    %v2719 = vmul.f32 %v2711, 3.0
    %v2720 = vmul.f32 %v2712, 3.0
    %v2721 = vmul.f32 %v2713, 3.0
    %v2722 = vmul.f32 %v2714, 3.0
    %v2723 = vmul.f32 %v2715, 3.0
    %v2724 = vmul.f32 %v2716, 3.0
    %v2725 = vmul.f32 %v2717, 3.0
    %v2726 = vadd.f32 %v2702, %v2718
    %v2727 = vadd.f32 %v2703, %v2719
    %v2728 = vadd.f32 %v2704, %v2720
    %v2729 = vadd.f32 %v2705, %v2721
    %v2730 = vadd.f32 %v2706, %v2722
    %v2731 = vadd.f32 %v2707, %v2723
    %v2732 = vadd.f32 %v2708, %v2724
    %v2733 = vadd.f32 %v2709, %v2725
    %v2734 = vmul.f32 %v79, %v2726
    %v2735 = vmul.f32 %v80, %v2727
    %v2736 = vmul.f32 %v81, %v2728
    %v2737 = vmul.f32 %v82, %v2729
    %v2738 = vmul.f32 %v83, %v2730
    %v2739 = vmul.f32 %v84, %v2731
    %v2740 = vmul.f32 %v85, %v2732
    %v2741 = vmul.f32 %v86, %v2733
    %v2742 = vrot.slane %v2734, 4
    %v2743 = vadd.f32 %v2734, %v2742
    %v2744 = vrot.slane %v2743, 2
    %v2745 = vadd.f32 %v2743, %v2744
    %v2746 = vrot.slane %v2745, 1
    %v2747 = vadd.f32 %v2745, %v2746
    %v2748 = vrot.slane %v2735, 4
    %v2749 = vadd.f32 %v2735, %v2748
    %v2750 = vrot.slane %v2749, 2
    %v2751 = vadd.f32 %v2749, %v2750
    %v2752 = vrot.slane %v2751, 1
    %v2753 = vadd.f32 %v2751, %v2752
    %v2754 = vrot.slane %v2736, 4
    %v2755 = vadd.f32 %v2736, %v2754
    %v2756 = vrot.slane %v2755, 2
    %v2757 = vadd.f32 %v2755, %v2756
    %v2758 = vrot.slane %v2757, 1
    %v2759 = vadd.f32 %v2757, %v2758
    %v2760 = vrot.slane %v2737, 4
    %v2761 = vadd.f32 %v2737, %v2760
    %v2762 = vrot.slane %v2761, 2
    %v2763 = vadd.f32 %v2761, %v2762
    %v2764 = vrot.slane %v2763, 1
    %v2765 = vadd.f32 %v2763, %v2764
    %v2766 = vrot.slane %v2738, 4
    %v2767 = vadd.f32 %v2738, %v2766
    %v2768 = vrot.slane %v2767, 2
    %v2769 = vadd.f32 %v2767, %v2768
    %v2770 = vrot.slane %v2769, 1
    %v2771 = vadd.f32 %v2769, %v2770
    %v2772 = vrot.slane %v2739, 4
    %v2773 = vadd.f32 %v2739, %v2772
    %v2774 = vrot.slane %v2773, 2
    %v2775 = vadd.f32 %v2773, %v2774
    %v2776 = vrot.slane %v2775, 1
    %v2777 = vadd.f32 %v2775, %v2776
    %v2778 = vrot.slane %v2740, 4
    %v2779 = vadd.f32 %v2740, %v2778
    %v2780 = vrot.slane %v2779, 2
    %v2781 = vadd.f32 %v2779, %v2780
    %v2782 = vrot.slane %v2781, 1
    %v2783 = vadd.f32 %v2781, %v2782
    %v2784 = vrot.slane %v2741, 4
    %v2785 = vadd.f32 %v2741, %v2784
    %v2786 = vrot.slane %v2785, 2
    %v2787 = vadd.f32 %v2785, %v2786
    %v2788 = vrot.slane %v2787, 1
    %v2789 = vadd.f32 %v2787, %v2788
    %v2790 = vsub.f32 %v2747, %v2734
    %v2791 = vsub.f32 %v2753, %v2735
    %v2792 = vsub.f32 %v2759, %v2736
    %v2793 = vsub.f32 %v2765, %v2737
    %v2794 = vsub.f32 %v2771, %v2738
    %v2795 = vsub.f32 %v2777, %v2739
    %v2796 = vsub.f32 %v2783, %v2740
    %v2797 = vsub.f32 %v2789, %v2741
    %v2798 = vadd.f32 %v2644, %v2668
    %v2799 = vadd.f32 %v2645, %v2669
    %v2800 = vadd.f32 %v2646, %v2670
    %v2801 = vadd.f32 %v2647, %v2671
    %v2802 = vadd.f32 %v2648, %v2672
    %v2803 = vadd.f32 %v2649, %v2673
    %v2804 = vadd.f32 %v2650, %v2674
    %v2805 = vadd.f32 %v2651, %v2675
    %v2806 = vadd.f32 %v2620, %v2692
    %v2807 = vadd.f32 %v2621, %v2693
    %v2808 = vadd.f32 %v2622, %v2694
    %v2809 = vadd.f32 %v2623, %v2695
    %v2810 = vadd.f32 %v2624, %v2696
    %v2811 = vadd.f32 %v2625, %v2697
    %v2812 = vadd.f32 %v2626, %v2698
    %v2813 = vadd.f32 %v2627, %v2699
    %v2814 = vmul.f32 %v2806, 9.0
    %v2815 = vmul.f32 %v2807, 9.0
    %v2816 = vmul.f32 %v2808, 9.0
    %v2817 = vmul.f32 %v2809, 9.0
    %v2818 = vmul.f32 %v2810, 9.0
    %v2819 = vmul.f32 %v2811, 9.0
    %v2820 = vmul.f32 %v2812, 9.0
    %v2821 = vmul.f32 %v2813, 9.0
    %v2822 = vadd.f32 %v2798, %v2814
    %v2823 = vadd.f32 %v2799, %v2815
    %v2824 = vadd.f32 %v2800, %v2816
    %v2825 = vadd.f32 %v2801, %v2817
    %v2826 = vadd.f32 %v2802, %v2818
    %v2827 = vadd.f32 %v2803, %v2819
    %v2828 = vadd.f32 %v2804, %v2820
    %v2829 = vadd.f32 %v2805, %v2821
    %v2830 = vmul.f32 %v2726, %v2726
    %v2831 = vmul.f32 %v2727, %v2727
    %v2832 = vmul.f32 %v2728, %v2728
    %v2833 = vmul.f32 %v2729, %v2729
    %v2834 = vmul.f32 %v2730, %v2730
    %v2835 = vmul.f32 %v2731, %v2731
    %v2836 = vmul.f32 %v2732, %v2732
    %v2837 = vmul.f32 %v2733, %v2733
    %v2838 = vsub.f32 %v2822, %v2830
    %v2839 = vsub.f32 %v2823, %v2831
    %v2840 = vsub.f32 %v2824, %v2832
    %v2841 = vsub.f32 %v2825, %v2833
    %v2842 = vsub.f32 %v2826, %v2834
    %v2843 = vsub.f32 %v2827, %v2835
    %v2844 = vsub.f32 %v2828, %v2836
    %v2845 = vsub.f32 %v2829, %v2837
    %v2846 = vmul.f32 %v96, %v2838
    %v2847 = vmul.f32 %v97, %v2839
    %v2848 = vmul.f32 %v98, %v2840
    %v2849 = vmul.f32 %v99, %v2841
    %v2850 = vmul.f32 %v100, %v2842
    %v2851 = vmul.f32 %v101, %v2843
    %v2852 = vmul.f32 %v102, %v2844
    %v2853 = vmul.f32 %v103, %v2845
    %v2854 = vrot.slane %v2846, 4
    %v2855 = vadd.f32 %v2846, %v2854
    %v2856 = vrot.slane %v2855, 2
    %v2857 = vadd.f32 %v2855, %v2856
    %v2858 = vrot.slane %v2857, 1
    %v2859 = vadd.f32 %v2857, %v2858
    %v2860 = vrot.slane %v2847, 4
    %v2861 = vadd.f32 %v2847, %v2860
    %v2862 = vrot.slane %v2861, 2
    %v2863 = vadd.f32 %v2861, %v2862
    %v2864 = vrot.slane %v2863, 1
    %v2865 = vadd.f32 %v2863, %v2864
    %v2866 = vrot.slane %v2848, 4
    %v2867 = vadd.f32 %v2848, %v2866
    %v2868 = vrot.slane %v2867, 2
    %v2869 = vadd.f32 %v2867, %v2868
    %v2870 = vrot.slane %v2869, 1
    %v2871 = vadd.f32 %v2869, %v2870
    %v2872 = vrot.slane %v2849, 4
    %v2873 = vadd.f32 %v2849, %v2872
    %v2874 = vrot.slane %v2873, 2
    %v2875 = vadd.f32 %v2873, %v2874
    %v2876 = vrot.slane %v2875, 1
    %v2877 = vadd.f32 %v2875, %v2876
    %v2878 = vrot.slane %v2850, 4
    %v2879 = vadd.f32 %v2850, %v2878
    %v2880 = vrot.slane %v2879, 2
    %v2881 = vadd.f32 %v2879, %v2880
    %v2882 = vrot.slane %v2881, 1
    %v2883 = vadd.f32 %v2881, %v2882
    %v2884 = vrot.slane %v2851, 4
    %v2885 = vadd.f32 %v2851, %v2884
    %v2886 = vrot.slane %v2885, 2
    %v2887 = vadd.f32 %v2885, %v2886
    %v2888 = vrot.slane %v2887, 1
    %v2889 = vadd.f32 %v2887, %v2888
    %v2890 = vrot.slane %v2852, 4
    %v2891 = vadd.f32 %v2852, %v2890
    %v2892 = vrot.slane %v2891, 2
    %v2893 = vadd.f32 %v2891, %v2892
    %v2894 = vrot.slane %v2893, 1
    %v2895 = vadd.f32 %v2893, %v2894
    %v2896 = vrot.slane %v2853, 4
    %v2897 = vadd.f32 %v2853, %v2896
    %v2898 = vrot.slane %v2897, 2
    %v2899 = vadd.f32 %v2897, %v2898
    %v2900 = vrot.slane %v2899, 1
    %v2901 = vadd.f32 %v2899, %v2900
    %v2902 = vsub.f32 %v2859, %v2846
    %v2903 = vsub.f32 %v2865, %v2847
    %v2904 = vsub.f32 %v2871, %v2848
    %v2905 = vsub.f32 %v2877, %v2849
    %v2906 = vsub.f32 %v2883, %v2850
    %v2907 = vsub.f32 %v2889, %v2851
    %v2908 = vsub.f32 %v2895, %v2852
    %v2909 = vsub.f32 %v2901, %v2853
    %v2910 = vadd.f32 %v2902, %v349
    %v2911 = vadd.f32 %v2903, %v349
    %v2912 = vadd.f32 %v2904, %v349
    %v2913 = vadd.f32 %v2905, %v349
    %v2914 = vadd.f32 %v2906, %v349
    %v2915 = vadd.f32 %v2907, %v349
    %v2916 = vadd.f32 %v2908, %v349
    %v2917 = vadd.f32 %v2909, %v349
    %v2918 = vrcp.pop %v2910
    %v2919 = vrcp.pop %v2911
    %v2920 = vrcp.pop %v2912
    %v2921 = vrcp.pop %v2913
    %v2922 = vrcp.pop %v2914
    %v2923 = vrcp.pop %v2915
    %v2924 = vrcp.pop %v2916
    %v2925 = vrcp.pop %v2917
    %v2926 = vmul.f32 %v2910, %v2918
    %v2927 = vmul.f32 %v2911, %v2919
    %v2928 = vmul.f32 %v2912, %v2920
    %v2929 = vmul.f32 %v2913, %v2921
    %v2930 = vmul.f32 %v2914, %v2922
    %v2931 = vmul.f32 %v2915, %v2923
    %v2932 = vmul.f32 %v2916, %v2924
    %v2933 = vmul.f32 %v2917, %v2925
    %v2934 = vsub.f32 2.0, %v2926
    %v2935 = vsub.f32 2.0, %v2927
    %v2936 = vsub.f32 2.0, %v2928
    %v2937 = vsub.f32 2.0, %v2929
    %v2938 = vsub.f32 2.0, %v2930
    %v2939 = vsub.f32 2.0, %v2931
    %v2940 = vsub.f32 2.0, %v2932
    %v2941 = vsub.f32 2.0, %v2933
    %v2942 = vmul.f32 %v2918, %v2934
    %v2943 = vmul.f32 %v2919, %v2935
    %v2944 = vmul.f32 %v2920, %v2936
    %v2945 = vmul.f32 %v2921, %v2937
    %v2946 = vmul.f32 %v2922, %v2938
    %v2947 = vmul.f32 %v2923, %v2939
    %v2948 = vmul.f32 %v2924, %v2940
    %v2949 = vmul.f32 %v2925, %v2941
    %v2950 = vsub.f32 %v401, %v2790
    %v2951 = vsub.f32 %v405, %v2791
    %v2952 = vsub.f32 %v409, %v2792
    %v2953 = vsub.f32 %v413, %v2793
    %v2954 = vsub.f32 %v417, %v2794
    %v2955 = vsub.f32 %v421, %v2795
    %v2956 = vsub.f32 %v425, %v2796
    %v2957 = vsub.f32 %v429, %v2797
    %v2958 = vmul.f32 %v79, %v2950
    %v2959 = vmul.f32 %v80, %v2951
    %v2960 = vmul.f32 %v81, %v2952
    %v2961 = vmul.f32 %v82, %v2953
    %v2962 = vmul.f32 %v83, %v2954
    %v2963 = vmul.f32 %v84, %v2955
    %v2964 = vmul.f32 %v85, %v2956
    %v2965 = vmul.f32 %v86, %v2957
    %v2966 = vmul.f32 %v2958, 2.0
    %v2967 = vmul.f32 %v2959, 2.0
    %v2968 = vmul.f32 %v2960, 2.0
    %v2969 = vmul.f32 %v2961, 2.0
    %v2970 = vmul.f32 %v2962, 2.0
    %v2971 = vmul.f32 %v2963, 2.0
    %v2972 = vmul.f32 %v2964, 2.0
    %v2973 = vmul.f32 %v2965, 2.0
    %v2974 = vmul.f32 %v2966, %v2942
    %v2975 = vmul.f32 %v2967, %v2943
    %v2976 = vmul.f32 %v2968, %v2944
    %v2977 = vmul.f32 %v2969, %v2945
    %v2978 = vmul.f32 %v2970, %v2946
    %v2979 = vmul.f32 %v2971, %v2947
    %v2980 = vmul.f32 %v2972, %v2948
    %v2981 = vmul.f32 %v2973, %v2949
    %v2982 = vmul.f32 %v470, %v2942
    %v2983 = vmul.f32 %v471, %v2943
    %v2984 = vmul.f32 %v472, %v2944
    %v2985 = vmul.f32 %v473, %v2945
    %v2986 = vmul.f32 %v474, %v2946
    %v2987 = vmul.f32 %v475, %v2947
    %v2988 = vmul.f32 %v476, %v2948
    %v2989 = vmul.f32 %v477, %v2949
    %v2990 = vadd.f32 %v2974, %v2975
    %v2991 = vadd.f32 %v2990, %v2976
    %v2992 = vadd.f32 %v2991, %v2977
    %v2993 = vadd.f32 %v2992, %v2978
    %v2994 = vadd.f32 %v2993, %v2979
    %v2995 = vadd.f32 %v2994, %v2980
    %v2996 = vadd.f32 %v2995, %v2981
    %v2997 = vadd.f32 %v2982, %v2983
    %v2998 = vadd.f32 %v2997, %v2984
    %v2999 = vadd.f32 %v2998, %v2985
    %v3000 = vadd.f32 %v2999, %v2986
    %v3001 = vadd.f32 %v3000, %v2987
    %v3002 = vadd.f32 %v3001, %v2988
    %v3003 = vadd.f32 %v3002, %v2989
    %v3004 = vsub.f32 %v2996, %v2974
    %v3005 = vsub.f32 %v2996, %v2975
    %v3006 = vsub.f32 %v2996, %v2976
    %v3007 = vsub.f32 %v2996, %v2977
    %v3008 = vsub.f32 %v2996, %v2978
    %v3009 = vsub.f32 %v2996, %v2979
    %v3010 = vsub.f32 %v2996, %v2980
    %v3011 = vsub.f32 %v2996, %v2981
    %v3012 = vsub.f32 %v3003, %v2982
    %v3013 = vsub.f32 %v3003, %v2983
    %v3014 = vsub.f32 %v3003, %v2984
    %v3015 = vsub.f32 %v3003, %v2985
    %v3016 = vsub.f32 %v3003, %v2986
    %v3017 = vsub.f32 %v3003, %v2987
    %v3018 = vsub.f32 %v3003, %v2988
    %v3019 = vsub.f32 %v3003, %v2989
    %v3020 = vadd.f32 %v3004, %v3012
    %v3021 = vadd.f32 %v3005, %v3013
    %v3022 = vadd.f32 %v3006, %v3014
    %v3023 = vadd.f32 %v3007, %v3015
    %v3024 = vadd.f32 %v3008, %v3016
    %v3025 = vadd.f32 %v3009, %v3017
    %v3026 = vadd.f32 %v3010, %v3018
    %v3027 = vadd.f32 %v3011, %v3019
    %v3028 = vadd.f32 %v3020, %v3004
    %v3029 = vadd.f32 %v3021, %v3005
    %v3030 = vadd.f32 %v3022, %v3006
    %v3031 = vadd.f32 %v3023, %v3007
    %v3032 = vadd.f32 %v3024, %v3008
    %v3033 = vadd.f32 %v3025, %v3009
    %v3034 = vadd.f32 %v3026, %v3010
    %v3035 = vadd.f32 %v3027, %v3011
    %v3036 = vmul.f32 %v3004, 3.0
    %v3037 = vmul.f32 %v3005, 3.0
    %v3038 = vmul.f32 %v3006, 3.0
    %v3039 = vmul.f32 %v3007, 3.0
    %v3040 = vmul.f32 %v3008, 3.0
    %v3041 = vmul.f32 %v3009, 3.0
    %v3042 = vmul.f32 %v3010, 3.0
    %v3043 = vmul.f32 %v3011, 3.0
    %v3044 = vmax.f32 %v3020, %v3028
    %v3045 = vmax.f32 %v3021, %v3029
    %v3046 = vmax.f32 %v3022, %v3030
    %v3047 = vmax.f32 %v3023, %v3031
    %v3048 = vmax.f32 %v3024, %v3032
    %v3049 = vmax.f32 %v3025, %v3033
    %v3050 = vmax.f32 %v3026, %v3034
    %v3051 = vmax.f32 %v3027, %v3035
    %v3052 = vmax.f32 %v3036, 0.0
    %v3053 = vmax.f32 %v3037, 0.0
    %v3054 = vmax.f32 %v3038, 0.0
    %v3055 = vmax.f32 %v3039, 0.0
    %v3056 = vmax.f32 %v3040, 0.0
    %v3057 = vmax.f32 %v3041, 0.0
    %v3058 = vmax.f32 %v3042, 0.0
    %v3059 = vmax.f32 %v3043, 0.0
    %v3060 = vmax.f32 %v3044, %v3052
    %v3061 = vmax.f32 %v3045, %v3053
    %v3062 = vmax.f32 %v3046, %v3054
    %v3063 = vmax.f32 %v3047, %v3055
    %v3064 = vmax.f32 %v3048, %v3056
    %v3065 = vmax.f32 %v3049, %v3057
    %v3066 = vmax.f32 %v3050, %v3058
    %v3067 = vmax.f32 %v3051, %v3059
    %v3068 = vsub.f32 0.0, %v3060
    %v3069 = vsub.f32 0.0, %v3061
    %v3070 = vsub.f32 0.0, %v3062
    %v3071 = vsub.f32 0.0, %v3063
    %v3072 = vsub.f32 0.0, %v3064
    %v3073 = vsub.f32 0.0, %v3065
    %v3074 = vsub.f32 0.0, %v3066
    %v3075 = vsub.f32 0.0, %v3067
    %v3076 = vmul.f32 %v3068, 1.442695
    %v3077 = vpow.pop %v3076
    %v3078 = vmul.f32 %v3069, 1.442695
    %v3079 = vpow.pop %v3078
    %v3080 = vmul.f32 %v3070, 1.442695
    %v3081 = vpow.pop %v3080
    %v3082 = vmul.f32 %v3071, 1.442695
    %v3083 = vpow.pop %v3082
    %v3084 = vmul.f32 %v3072, 1.442695
    %v3085 = vpow.pop %v3084
    %v3086 = vmul.f32 %v3073, 1.442695
    %v3087 = vpow.pop %v3086
    %v3088 = vmul.f32 %v3074, 1.442695
    %v3089 = vpow.pop %v3088
    %v3090 = vmul.f32 %v3075, 1.442695
    %v3091 = vpow.pop %v3090
    %v3092 = vsub.f32 %v3020, %v3060
    %v3093 = vsub.f32 %v3021, %v3061
    %v3094 = vsub.f32 %v3022, %v3062
    %v3095 = vsub.f32 %v3023, %v3063
    %v3096 = vsub.f32 %v3024, %v3064
    %v3097 = vsub.f32 %v3025, %v3065
    %v3098 = vsub.f32 %v3026, %v3066
    %v3099 = vsub.f32 %v3027, %v3067
    %v3100 = vmul.f32 %v3092, 1.442695
    %v3101 = vpow.pop %v3100
    %v3102 = vmul.f32 %v3093, 1.442695
    %v3103 = vpow.pop %v3102
    %v3104 = vmul.f32 %v3094, 1.442695
    %v3105 = vpow.pop %v3104
    %v3106 = vmul.f32 %v3095, 1.442695
    %v3107 = vpow.pop %v3106
    %v3108 = vmul.f32 %v3096, 1.442695
    %v3109 = vpow.pop %v3108
    %v3110 = vmul.f32 %v3097, 1.442695
    %v3111 = vpow.pop %v3110
    %v3112 = vmul.f32 %v3098, 1.442695
    %v3113 = vpow.pop %v3112
    %v3114 = vmul.f32 %v3099, 1.442695
    %v3115 = vpow.pop %v3114
    %v3116 = vsub.f32 %v3028, %v3060
    %v3117 = vsub.f32 %v3029, %v3061
    %v3118 = vsub.f32 %v3030, %v3062
    %v3119 = vsub.f32 %v3031, %v3063
    %v3120 = vsub.f32 %v3032, %v3064
    %v3121 = vsub.f32 %v3033, %v3065
    %v3122 = vsub.f32 %v3034, %v3066
    %v3123 = vsub.f32 %v3035, %v3067
    %v3124 = vmul.f32 %v3116, 1.442695
    %v3125 = vpow.pop %v3124
    %v3126 = vmul.f32 %v3117, 1.442695
    %v3127 = vpow.pop %v3126
    %v3128 = vmul.f32 %v3118, 1.442695
    %v3129 = vpow.pop %v3128
    %v3130 = vmul.f32 %v3119, 1.442695
    %v3131 = vpow.pop %v3130
    %v3132 = vmul.f32 %v3120, 1.442695
    %v3133 = vpow.pop %v3132
    %v3134 = vmul.f32 %v3121, 1.442695
    %v3135 = vpow.pop %v3134
    %v3136 = vmul.f32 %v3122, 1.442695
    %v3137 = vpow.pop %v3136
    %v3138 = vmul.f32 %v3123, 1.442695
    %v3139 = vpow.pop %v3138
    %v3140 = vsub.f32 %v3036, %v3060
    %v3141 = vsub.f32 %v3037, %v3061
    %v3142 = vsub.f32 %v3038, %v3062
    %v3143 = vsub.f32 %v3039, %v3063
    %v3144 = vsub.f32 %v3040, %v3064
    %v3145 = vsub.f32 %v3041, %v3065
    %v3146 = vsub.f32 %v3042, %v3066
    %v3147 = vsub.f32 %v3043, %v3067
    %v3148 = vmul.f32 %v3140, 1.442695
    %v3149 = vpow.pop %v3148
    %v3150 = vmul.f32 %v3141, 1.442695
    %v3151 = vpow.pop %v3150
    %v3152 = vmul.f32 %v3142, 1.442695
    %v3153 = vpow.pop %v3152
    %v3154 = vmul.f32 %v3143, 1.442695
    %v3155 = vpow.pop %v3154
    %v3156 = vmul.f32 %v3144, 1.442695
    %v3157 = vpow.pop %v3156
    %v3158 = vmul.f32 %v3145, 1.442695
    %v3159 = vpow.pop %v3158
    %v3160 = vmul.f32 %v3146, 1.442695
    %v3161 = vpow.pop %v3160
    %v3162 = vmul.f32 %v3147, 1.442695
    %v3163 = vpow.pop %v3162
    %v3164 = vadd.f32 %v3077, %v3101
    %v3165 = vadd.f32 %v3079, %v3103
    %v3166 = vadd.f32 %v3081, %v3105
    %v3167 = vadd.f32 %v3083, %v3107
    %v3168 = vadd.f32 %v3085, %v3109
    %v3169 = vadd.f32 %v3087, %v3111
    %v3170 = vadd.f32 %v3089, %v3113
    %v3171 = vadd.f32 %v3091, %v3115
    %v3172 = vadd.f32 %v3164, %v3125
    %v3173 = vadd.f32 %v3165, %v3127
    %v3174 = vadd.f32 %v3166, %v3129
    %v3175 = vadd.f32 %v3167, %v3131
    %v3176 = vadd.f32 %v3168, %v3133
    %v3177 = vadd.f32 %v3169, %v3135
    %v3178 = vadd.f32 %v3170, %v3137
    %v3179 = vadd.f32 %v3171, %v3139
    %v3180 = vadd.f32 %v3172, %v3149
    %v3181 = vadd.f32 %v3173, %v3151
    %v3182 = vadd.f32 %v3174, %v3153
    %v3183 = vadd.f32 %v3175, %v3155
    %v3184 = vadd.f32 %v3176, %v3157
    %v3185 = vadd.f32 %v3177, %v3159
    %v3186 = vadd.f32 %v3178, %v3161
    %v3187 = vadd.f32 %v3179, %v3163
    %v3188 = vrcp.pop %v3180
    %v3189 = vrcp.pop %v3181
    %v3190 = vrcp.pop %v3182
    %v3191 = vrcp.pop %v3183
    %v3192 = vrcp.pop %v3184
    %v3193 = vrcp.pop %v3185
    %v3194 = vrcp.pop %v3186
    %v3195 = vrcp.pop %v3187
    %v3196 = vmul.f32 %v3180, %v3188
    %v3197 = vmul.f32 %v3181, %v3189
    %v3198 = vmul.f32 %v3182, %v3190
    %v3199 = vmul.f32 %v3183, %v3191
    %v3200 = vmul.f32 %v3184, %v3192
    %v3201 = vmul.f32 %v3185, %v3193
    %v3202 = vmul.f32 %v3186, %v3194
    %v3203 = vmul.f32 %v3187, %v3195
    %v3204 = vsub.f32 2.0, %v3196
    %v3205 = vsub.f32 2.0, %v3197
    %v3206 = vsub.f32 2.0, %v3198
    %v3207 = vsub.f32 2.0, %v3199
    %v3208 = vsub.f32 2.0, %v3200
    %v3209 = vsub.f32 2.0, %v3201
    %v3210 = vsub.f32 2.0, %v3202
    %v3211 = vsub.f32 2.0, %v3203
    %v3212 = vmul.f32 %v3188, %v3204
    %v3213 = vmul.f32 %v3189, %v3205
    %v3214 = vmul.f32 %v3190, %v3206
    %v3215 = vmul.f32 %v3191, %v3207
    %v3216 = vmul.f32 %v3192, %v3208
    %v3217 = vmul.f32 %v3193, %v3209
    %v3218 = vmul.f32 %v3194, %v3210
    %v3219 = vmul.f32 %v3195, %v3211
    %v3220 = vstv %s2701
    %v3221 = vmul.f32 %v3220, %v3212
    %v3222 = vmul.f32 %v3220, %v3213
    %v3223 = vmul.f32 %v3220, %v3214
    %v3224 = vmul.f32 %v3220, %v3215
    %v3225 = vmul.f32 %v3220, %v3216
    %v3226 = vmul.f32 %v3220, %v3217
    %v3227 = vmul.f32 %v3220, %v3218
    %v3228 = vmul.f32 %v3220, %v3219
    %v3229 = vmul.f32 %v3077, %v3221
    %v3230 = vmul.f32 %v3079, %v3222
    %v3231 = vmul.f32 %v3081, %v3223
    %v3232 = vmul.f32 %v3083, %v3224
    %v3233 = vmul.f32 %v3085, %v3225
    %v3234 = vmul.f32 %v3087, %v3226
    %v3235 = vmul.f32 %v3089, %v3227
    %v3236 = vmul.f32 %v3091, %v3228
    %v3237 = vstv %s2700
    %v3238 = vmul.f32 %v3237, %v2620
    %v3239 = vmul.f32 %v3237, %v2621
    %v3240 = vmul.f32 %v3237, %v2622
    %v3241 = vmul.f32 %v3237, %v2623
    %v3242 = vmul.f32 %v3237, %v2624
    %v3243 = vmul.f32 %v3237, %v2625
    %v3244 = vmul.f32 %v3237, %v2626
    %v3245 = vmul.f32 %v3237, %v2627
    %v3246 = vadd.f32 %v3229, %v3238
    %v3247 = vadd.f32 %v3230, %v3239
    %v3248 = vadd.f32 %v3231, %v3240
    %v3249 = vadd.f32 %v3232, %v3241
    %v3250 = vadd.f32 %v3233, %v3242
    %v3251 = vadd.f32 %v3234, %v3243
    %v3252 = vadd.f32 %v3235, %v3244
    %v3253 = vadd.f32 %v3236, %v3245
    %v3254 = vmul.f32 %v3101, %v3221
    %v3255 = vmul.f32 %v3103, %v3222
    %v3256 = vmul.f32 %v3105, %v3223
    %v3257 = vmul.f32 %v3107, %v3224
    %v3258 = vmul.f32 %v3109, %v3225
    %v3259 = vmul.f32 %v3111, %v3226
    %v3260 = vmul.f32 %v3113, %v3227
    %v3261 = vmul.f32 %v3115, %v3228
    %v3262 = vmul.f32 %v3237, %v2644
    %v3263 = vmul.f32 %v3237, %v2645
    %v3264 = vmul.f32 %v3237, %v2646
    %v3265 = vmul.f32 %v3237, %v2647
    %v3266 = vmul.f32 %v3237, %v2648
    %v3267 = vmul.f32 %v3237, %v2649
    %v3268 = vmul.f32 %v3237, %v2650
    %v3269 = vmul.f32 %v3237, %v2651
    %v3270 = vadd.f32 %v3254, %v3262
    %v3271 = vadd.f32 %v3255, %v3263
    %v3272 = vadd.f32 %v3256, %v3264
    %v3273 = vadd.f32 %v3257, %v3265
    %v3274 = vadd.f32 %v3258, %v3266
    %v3275 = vadd.f32 %v3259, %v3267
    %v3276 = vadd.f32 %v3260, %v3268
    %v3277 = vadd.f32 %v3261, %v3269
    %v3278 = vmul.f32 %v3125, %v3221
    %v3279 = vmul.f32 %v3127, %v3222
    %v3280 = vmul.f32 %v3129, %v3223
    %v3281 = vmul.f32 %v3131, %v3224
    %v3282 = vmul.f32 %v3133, %v3225
    %v3283 = vmul.f32 %v3135, %v3226
    %v3284 = vmul.f32 %v3137, %v3227
    %v3285 = vmul.f32 %v3139, %v3228
    %v3286 = vmul.f32 %v3237, %v2668
    %v3287 = vmul.f32 %v3237, %v2669
    %v3288 = vmul.f32 %v3237, %v2670
    %v3289 = vmul.f32 %v3237, %v2671
    %v3290 = vmul.f32 %v3237, %v2672
    %v3291 = vmul.f32 %v3237, %v2673
    %v3292 = vmul.f32 %v3237, %v2674
    %v3293 = vmul.f32 %v3237, %v2675
    %v3294 = vadd.f32 %v3278, %v3286
    %v3295 = vadd.f32 %v3279, %v3287
    %v3296 = vadd.f32 %v3280, %v3288
    %v3297 = vadd.f32 %v3281, %v3289
    %v3298 = vadd.f32 %v3282, %v3290
    %v3299 = vadd.f32 %v3283, %v3291
    %v3300 = vadd.f32 %v3284, %v3292
    %v3301 = vadd.f32 %v3285, %v3293
    %v3302 = vmul.f32 %v3149, %v3221
    %v3303 = vmul.f32 %v3151, %v3222
    %v3304 = vmul.f32 %v3153, %v3223
    %v3305 = vmul.f32 %v3155, %v3224
    %v3306 = vmul.f32 %v3157, %v3225
    %v3307 = vmul.f32 %v3159, %v3226
    %v3308 = vmul.f32 %v3161, %v3227
    %v3309 = vmul.f32 %v3163, %v3228
    %v3310 = vmul.f32 %v3237, %v2692
    %v3311 = vmul.f32 %v3237, %v2693
    %v3312 = vmul.f32 %v3237, %v2694
    %v3313 = vmul.f32 %v3237, %v2695
    %v3314 = vmul.f32 %v3237, %v2696
    %v3315 = vmul.f32 %v3237, %v2697
    %v3316 = vmul.f32 %v3237, %v2698
    %v3317 = vmul.f32 %v3237, %v2699
    %v3318 = vadd.f32 %v3302, %v3310
    %v3319 = vadd.f32 %v3303, %v3311
    %v3320 = vadd.f32 %v3304, %v3312
    %v3321 = vadd.f32 %v3305, %v3313
    %v3322 = vadd.f32 %v3306, %v3314
    %v3323 = vadd.f32 %v3307, %v3315
    %v3324 = vadd.f32 %v3308, %v3316
    %v3325 = vadd.f32 %v3309, %v3317
    %3326 = vst [vmem:[#allocation11] sm:$0xff] %v3246
    %3327 = vst [vmem:[#allocation11 + $0x8] sm:$0xff] %v3247
    %3328 = vst [vmem:[#allocation11 + $0x10] sm:$0xff] %v3248
    %3329 = vst [vmem:[#allocation11 + $0x18] sm:$0xff] %v3249
    %3330 = vst [vmem:[#allocation11 + $0x20] sm:$0xff] %v3250
    %3331 = vst [vmem:[#allocation11 + $0x28] sm:$0xff] %v3251
    %3332 = vst [vmem:[#allocation11 + $0x30] sm:$0xff] %v3252
    %3333 = vst [vmem:[#allocation11 + $0x38] sm:$0xff] %v3253
    %s3334 = scalar_lea.vmem [#allocation11], 64
    %3335 = vst [vmem:[%s3334] sm:$0xff] %v3270
    %3336 = vst [vmem:[%s3334 + $0x8] sm:$0xff] %v3271
    %3337 = vst [vmem:[%s3334 + $0x10] sm:$0xff] %v3272
    %3338 = vst [vmem:[%s3334 + $0x18] sm:$0xff] %v3273
    %3339 = vst [vmem:[%s3334 + $0x20] sm:$0xff] %v3274
    %3340 = vst [vmem:[%s3334 + $0x28] sm:$0xff] %v3275
    %3341 = vst [vmem:[%s3334 + $0x30] sm:$0xff] %v3276
    %3342 = vst [vmem:[%s3334 + $0x38] sm:$0xff] %v3277
    %s3343 = scalar_lea.vmem [#allocation11], 128
    %3344 = vst [vmem:[%s3343] sm:$0xff] %v3294
    %3345 = vst [vmem:[%s3343 + $0x8] sm:$0xff] %v3295
    %3346 = vst [vmem:[%s3343 + $0x10] sm:$0xff] %v3296
    %3347 = vst [vmem:[%s3343 + $0x18] sm:$0xff] %v3297
    %3348 = vst [vmem:[%s3343 + $0x20] sm:$0xff] %v3298
    %3349 = vst [vmem:[%s3343 + $0x28] sm:$0xff] %v3299
    %3350 = vst [vmem:[%s3343 + $0x30] sm:$0xff] %v3300
    %3351 = vst [vmem:[%s3343 + $0x38] sm:$0xff] %v3301
    %s3352 = scalar_lea.vmem [#allocation11], 192
    %3353 = vst [vmem:[%s3352] sm:$0xff] %v3318
    %3354 = vst [vmem:[%s3352 + $0x8] sm:$0xff] %v3319
    %3355 = vst [vmem:[%s3352 + $0x10] sm:$0xff] %v3320
    %3356 = vst [vmem:[%s3352 + $0x18] sm:$0xff] %v3321
    %3357 = vst [vmem:[%s3352 + $0x20] sm:$0xff] %v3322
    %3358 = vst [vmem:[%s3352 + $0x28] sm:$0xff] %v3323
    %3359 = vst [vmem:[%s3352 + $0x30] sm:$0xff] %v3324
    %3360 = vst [vmem:[%s3352 + $0x38] sm:$0xff] %v3325
    %v3361 = vadd.f32 %v2996, %v3003
    %3362 = vst [vmem:[#allocation12] sm:$0xff] 0.0
    %s3363 = scalar_lea.vmem [#allocation12], 8
    %3364 = vst [vmem:[%s3363] sm:$0xff] %v3361
    %v3365 = vadd.f32 %v3361, %v2996
    %s3366 = scalar_lea.vmem [#allocation12], 16
    %3367 = vst [vmem:[%s3366] sm:$0xff] %v3365
    %v3368 = vmul.f32 %v2996, 3.0
    %s3369 = scalar_lea.vmem [#allocation12], 24
    %3370 = vst [vmem:[%s3369] sm:$0xff] %v3368
    // Predicated region
    $region38: #{tpu_custom_call.1} parent=1 // pred_check
      _
    $region39: #{tpu_custom_call.1} parent=1 // pred_check_branch
      %3372 = sbr.rel (0) target = $region41
    $region40: #{tpu_custom_call.1} parent=1 // pred_region
      %s3374 = ssub.s32 4096, 4096
      %3375 = vsyncadd [#allocation5], %s3374
      %s3376 = sshll.u32 [#allocation11], 4
      %s3377 = int_to_ptr.vmem [resolvable:$true] %s3376
      %3382 = dma.vmem_to_hbm [thread:$0]  %s3377, 4096, %s5, [#allocation5], 128, 128, 8
    $region41: #{tpu_custom_call.1} parent=1 // pred_fallthru
      _
    // Predicated region
    $region42: #{tpu_custom_call.1} parent=1 // pred_check
      _
    $region43: #{tpu_custom_call.1} parent=1 // pred_check_branch
      %3384 = sbr.rel (0) target = $region45
    $region44: #{tpu_custom_call.1} parent=1 // pred_region
      %s3386 = ssub.s32 512, 512
      %3387 = vsyncadd [#allocation13], %s3386
      %s3388 = sshll.u32 [#allocation12], 4
      %s3389 = int_to_ptr.vmem [resolvable:$true] %s3388
      %3394 = dma.vmem_to_hbm [thread:$0]  %s3389, 512, %s6, [#allocation13], 128, 128, 8
    $region45: #{tpu_custom_call.1} parent=1 // pred_fallthru
      _
    // Predicated region
    $region46: #{tpu_custom_call.1} parent=1 // pred_check
      _
    $region47: #{tpu_custom_call.1} parent=1 // pred_check_branch
      %3396 = sbr.rel (0) target = $region49
    $region48: #{tpu_custom_call.1} parent=1 // pred_region
      %3397 = dma.done [#allocation5], 4096
    $region49: #{tpu_custom_call.1} parent=1 // pred_fallthru
      _
    // Predicated region
    $region50: #{tpu_custom_call.1} parent=1 // pred_check
      _
    $region51: #{tpu_custom_call.1} parent=1 // pred_check_branch
      %3399 = sbr.rel (0) target = $region53
    $region52: #{tpu_custom_call.1} parent=1 // pred_region
      %3400 = dma.done [#allocation13], 512
    $region53: #{tpu_custom_call.1} parent=1 // pred_fallthru
      _
    %3401 = vsyncpa [#allocation4], 1
    %3402 = vsyncpa [#allocation9], 1
    %3403 = vsyncpa [#allocation5], 1
    %3404 = vsyncpa [#allocation13], 1
    %3405 = vsyncpa [#allocation6], 1

</llo_original>
